<compile_context>
chip_gen: v7x
topology: tpu7x:2x2x1
jax: 0.10.0
libtpu: 0.0.40
codegen_flags: <defaults>
</compile_context>

<pallas_src>
import functools

import jax
import jax.numpy as jnp
from jax import lax
from jax.experimental import pallas as pl
from jax.experimental.pallas import tpu as pltpu


def _mm(a, w):
    """MXU matmul; LHS cast to the weight dtype (bf16 weights on v6e/v7x),
    accumulation always f32."""
    return jnp.dot(a.astype(w.dtype), w, preferred_element_type=jnp.float32)


# ----------------------------------------------------------------------------
# Fused whole-model kernel
# ----------------------------------------------------------------------------
def _model_kernel(num_layers, T, BP, H, *refs):
    """refs: x2(NP,2), misc(L+2,8H), whh_0, [wx_l, whh_l]*, headw(5H,2H),
    out(NP,2), scratch xg(NP,8H)."""
    H2 = 2 * H
    G = 8 * H
    NP = T * BP

    n_in = 2 * num_layers + 2
    x_ref, misc_ref = refs[0], refs[1]
    layer_w = refs[2:2 + 2 * num_layers - 1]
    headw_ref = refs[2 * num_layers + 1]
    out_ref = refs[n_in]
    xg_scr = refs[n_in + 1]

    # Hoisted constants (computed once, reused by every layer / timestep).
    lane = lax.broadcasted_iota(jnp.int32, (1, G), 1)
    fwd_lanes = (lane % H2) < H            # forward-direction gate columns
    misc = misc_ref[...]                   # (L+2, G) small-parameter blob
    x2 = x_ref[...]                        # (NP, 2): [x fwd order | x reversed]

    act_f = None                           # layer activations, forward order
    act_r = None                           # same, time-block reversed

    for layer in range(num_layers):
        # ---- hoisted, direction-pre-interleaved input projection ----------
        # Row-block s of xg holds [fwd gate cols of in[s] | bwd gate cols of
        # in[T-1-s]]; bias (bih+bhh, both directions) folded in exactly once.
        if layer == 0:
            whh_ref = layer_w[0]
            wx = misc[0:1, :]                         # input_size == 1
            bias = misc[1:2, :]
            wx_f = jnp.where(fwd_lanes, wx, 0.0)
            wx_b = wx - wx_f
            xg_scr[...] = x2[:, 0:1] * wx_f + x2[:, 1:2] * wx_b + bias
        else:
            wx_ref = layer_w[2 * layer - 1]
            whh_ref = layer_w[2 * layer]
            wx = wx_ref[...]
            bias = misc[1 + layer:2 + layer, :]
            wx_f = jnp.where(fwd_lanes, wx, 0.0)
            wx_b = wx - wx_f
            xg_scr[...] = _mm(act_f, wx_f) + _mm(act_r, wx_b) + bias

        # ---- fused fwd+bwd recurrence (serial, latency-bound) --------------
        whh = whh_ref[...]                  # hoisted: single read, resident
        h = jnp.zeros((BP, H2), jnp.float32)
        c = jnp.zeros((BP, H2), jnp.float32)
        hs = []
        # TODO(synk): lax.fori_loop(..., unroll=True) once T grows.
        for s in range(T):
            x_t = xg_scr[s * BP:(s + 1) * BP, :]      # aligned (BP, G) slice
            gates = x_t + _mm(h, whh)
            i = jax.nn.sigmoid(gates[:, 0 * H2:1 * H2])
            f = jax.nn.sigmoid(gates[:, 1 * H2:2 * H2])
            g = jnp.tanh(gates[:, 2 * H2:3 * H2])
            o = jax.nn.sigmoid(gates[:, 3 * H2:4 * H2])
            c = f * c + i * g
            h = o * jnp.tanh(c)
            hs.append(h)                               # deferred writeback

        # ---- deferred activation assembly (off the serial chain) -----------
        # fwd half of step t belongs to time t; bwd half of step t to T-1-t.
        blocks = [jnp.concatenate([hs[t][:, 0:H], hs[T - 1 - t][:, H:H2]],
                                  axis=1) for t in range(T)]
        act_f = jnp.concatenate(blocks, axis=0)        # (NP, 2H)
        act_r = (jnp.concatenate(blocks[::-1], axis=0)
                 if layer + 1 < num_layers else None)

    # ---- fused mean_net / logvar_net heads ----------------------------------
    w1 = headw_ref[0:2 * H, 0:2 * H]
    w2 = headw_ref[2 * H:4 * H, 0:H]
    w3 = headw_ref[4 * H:5 * H, 0:2]
    hb = misc[num_layers + 1:num_layers + 2, :]
    b1 = hb[:, 0:2 * H]
    b2 = hb[:, 2 * H:3 * H]
    b3 = hb[:, 3 * H:3 * H + 2]

    h1 = jax.nn.relu(_mm(act_f, w1) + b1)
    h2 = jax.nn.relu(_mm(h1, w2) + b2)
    out = _mm(h2, w3) + b3                             # (NP, 2) [mean | logvar]

    col = lax.broadcasted_iota(jnp.int32, (NP, 2), 1)
    out_ref[...] = jnp.where(col == 0, out, jnp.exp(0.5 * out)).astype(out_ref.dtype)


def _full_spec(shape):
    """Whole-array block for the trivial grid=(1,)."""
    nd = len(shape)
    return pl.BlockSpec(shape, lambda i, _nd=nd: (0,) * _nd)


def variational_bilstm_forward(x, flat_params, *, hidden_size, num_layers):
    """x: (B, T) float32 -> (mean, std), each (B, T)."""
    B, T = x.shape
    H = hidden_size
    BP = ((B + 7) // 8) * 8            # pad the batch row-block to 8 sublanes
    NP = T * BP

    xt = jnp.zeros((T, BP), x.dtype).at[:, :B].set(x.T)       # time-major
    x2 = jnp.concatenate([xt.reshape(NP, 1), xt[::-1].reshape(NP, 1)], axis=1)

    in_arrays = (x2,) + tuple(flat_params)
    kernel = functools.partial(_model_kernel, num_layers, T, BP, H)

    out2 = pl.pallas_call(
        kernel,
        grid=(1,),
        in_specs=[_full_spec(a.shape) for a in in_arrays],
        out_specs=_full_spec((NP, 2)),
        out_shape=jax.ShapeDtypeStruct((NP, 2), x.dtype),
        scratch_shapes=[pltpu.VMEM((NP, 8 * H), jnp.float32)],   # xg projections
        compiler_params=pltpu.CompilerParams(
            dimension_semantics=("arbitrary",)),
    )(*in_arrays)

    out3 = out2.reshape(T, BP, 2)
    mean = out3[:, :B, 0].T            # (B, T)
    std = out3[:, :B, 1].T
    return mean, std


# ----------------------------------------------------------------------------
# Parameter init (PyTorch-shaped) + packing into the fused kernel layout
# ----------------------------------------------------------------------------
def init_params(key, input_size=1, hidden_size=32, num_layers=2,
                output_size=1):
    H = hidden_size
    raw = {"lstm": []}
    bound_h = 1.0 / float(H) ** 0.5

    for layer in range(num_layers):
        din = input_size if layer == 0 else 2 * H
        layer_p = {}
        for d in ("fwd", "bwd"):
            key, k1, k2, k3, k4 = jax.random.split(key, 5)
            wih = jax.random.uniform(k1, (din, 4 * H), jnp.float32,
                                     -bound_h, bound_h)
            whh = jax.random.uniform(k2, (H, 4 * H), jnp.float32,
                                     -bound_h, bound_h)
            bih = jax.random.uniform(k3, (1, 4 * H), jnp.float32,
                                     -bound_h, bound_h)
            bhh = jax.random.uniform(k4, (1, 4 * H), jnp.float32,
                                     -bound_h, bound_h)
            layer_p[d] = (wih, whh, bih + bhh)   # PyTorch: bias_ih + bias_hh
        raw["lstm"].append(layer_p)

    def linear(key, din, dout):
        k1, k2 = jax.random.split(key)
        bound = 1.0 / float(din) ** 0.5
        return (jax.random.uniform(k1, (din, dout), jnp.float32, -bound, bound),
                jax.random.uniform(k2, (1, dout), jnp.float32, -bound, bound))

    key, km1, km2, km3, kl1, kl2, kl3 = jax.random.split(key, 7)
    raw["mean"] = linear(km1, 2 * H, H) + linear(km2, H, H // 2) + \
        linear(km3, H // 2, output_size)
    raw["logvar"] = linear(kl1, 2 * H, H) + linear(kl2, H, H // 2) + \
        linear(kl3, H // 2, output_size)
    return raw


def _interleave_gates(wf, wb, H):
    """(D,4H) fwd + (D,4H) bwd -> (D,8H) [i_f i_b | f_f f_b | g_f g_b | o_f o_b]."""
    D = wf.shape[0]
    return jnp.concatenate([wf.reshape(D, 4, H), wb.reshape(D, 4, H)],
                           axis=-1).reshape(D, 8 * H)


def _blockdiag_gates(whh_f, whh_b, H):
    """(H,4H) x 2 -> (2H,8H): rows 0:H feed fwd gate cols, rows H:2H feed bwd."""
    z = jnp.zeros((H, 4, H), whh_f.dtype)
    top = jnp.concatenate([whh_f.reshape(H, 4, H), z], axis=-1)
    bot = jnp.concatenate([z, whh_b.reshape(H, 4, H)], axis=-1)
    return jnp.concatenate([top, bot], axis=0).reshape(2 * H, 8 * H)


def pack_params(raw, hidden_size, dtype=jnp.float32):
    """Pack into: misc(L+2,8H), whh_0, [wx_l, whh_l]*, headw(5H,2H).
    Use dtype=jnp.bfloat16 on v6e/v7x; keep float32 on v5e."""
    H = hidden_size
    G = 8 * H
    num_layers = len(raw["lstm"])

    wx0 = None
    biases = []
    layer_ws = []
    for layer, layer_p in enumerate(raw["lstm"]):
        wih_f, whh_f, b_f = layer_p["fwd"]
        wih_b, whh_b, b_b = layer_p["bwd"]
        wx = _interleave_gates(wih_f, wih_b, H)
        whh = _blockdiag_gates(whh_f, whh_b, H)
        biases.append(_interleave_gates(b_f, b_b, H))
        if layer == 0:
            assert wx.shape[0] == 1, "layer-0 input_size must be 1"
            wx0 = wx
            layer_ws.append(whh)
        else:
            layer_ws += [wx, whh]

    wm1, bm1, wm2, bm2, wm3, bm3 = raw["mean"]
    wl1, bl1, wl2, bl2, wl3, bl3 = raw["logvar"]
    # head layer 1: concatenate output columns; layers 2/3: block-diagonal.
    w1 = jnp.concatenate([wm1, wl1], axis=1)                       # (2H, 2H)
    b1 = jnp.concatenate([bm1, bl1], axis=1)                       # (1, 2H)
    zh = jnp.zeros((H, H // 2), jnp.float32)
    w2 = jnp.concatenate([jnp.concatenate([wm2, zh], 1),
                          jnp.concatenate([zh, wl2], 1)], 0)       # (2H, H)
    b2 = jnp.concatenate([bm2, bl2], axis=1)                       # (1, H)
    z1 = jnp.zeros((H // 2, 1), jnp.float32)
    w3 = jnp.concatenate([jnp.concatenate([wm3, z1], 1),
                          jnp.concatenate([z1, wl3], 1)], 0)       # (H, 2)
    b3 = jnp.concatenate([bm3, bl3], axis=1)                       # (1, 2)

    head_bias_row = jnp.zeros((1, G), jnp.float32)
    head_bias_row = head_bias_row.at[:, 0:2 * H].set(b1)
    head_bias_row = head_bias_row.at[:, 2 * H:3 * H].set(b2)
    head_bias_row = head_bias_row.at[:, 3 * H:3 * H + 2].set(b3)

    misc = jnp.concatenate([wx0] + biases + [head_bias_row], axis=0)  # (L+2,G)

    headw = jnp.zeros((5 * H, 2 * H), jnp.float32)
    headw = headw.at[0:2 * H, 0:2 * H].set(w1)
    headw = headw.at[2 * H:4 * H, 0:H].set(w2)
    headw = headw.at[4 * H:5 * H, 0:2].set(w3)

    flat = [misc] + layer_ws + [headw]
    return tuple(a.astype(dtype) for a in flat)


# ----------------------------------------------------------------------------
# Pure-JAX reference (eval-mode semantics of the PyTorch module)
# ----------------------------------------------------------------------------
def reference_forward(x, raw, *, hidden_size, num_layers):
    B, T = x.shape
    H = hidden_size
    seq = x[:, :, None]   # (B, T, 1)

    def run_dir(seq, wih, whh, b):
        def step(carry, x_t):
            h, c = carry
            gates = x_t @ wih + h @ whh + b
            i = jax.nn.sigmoid(gates[:, 0 * H:1 * H])
            f = jax.nn.sigmoid(gates[:, 1 * H:2 * H])
            g = jnp.tanh(gates[:, 2 * H:3 * H])
            o = jax.nn.sigmoid(gates[:, 3 * H:4 * H])
            c = f * c + i * g
            h = o * jnp.tanh(c)
            return (h, c), h
        init = (jnp.zeros((B, H), jnp.float32), jnp.zeros((B, H), jnp.float32))
        _, hs = jax.lax.scan(step, init, jnp.transpose(seq, (1, 0, 2)))
        return jnp.transpose(hs, (1, 0, 2))   # (B, T, H)

    for layer in range(num_layers):
        wih_f, whh_f, b_f = raw["lstm"][layer]["fwd"]
        wih_b, whh_b, b_b = raw["lstm"][layer]["bwd"]
        out_f = run_dir(seq, wih_f, whh_f, b_f)
        out_b = run_dir(seq[:, ::-1], wih_b, whh_b, b_b)[:, ::-1]
        seq = jnp.concatenate([out_f, out_b], axis=-1)

    feats = seq.reshape(B * T, 2 * H)
    wm1, bm1, wm2, bm2, wm3, bm3 = raw["mean"]
    wl1, bl1, wl2, bl2, wl3, bl3 = raw["logvar"]
    hm = jax.nn.relu(feats @ wm1 + bm1)
    hm = jax.nn.relu(hm @ wm2 + bm2)
    mean = (hm @ wm3 + bm3).reshape(B, T)
    hl = jax.nn.relu(feats @ wl1 + bl1)
    hl = jax.nn.relu(hl @ wl2 + bl2)
    logvar = (hl @ wl3 + bl3).reshape(B, T)
    return mean, jnp.exp(0.5 * logvar)


if __name__ == "__main__":
    B, T = 2, 8
    HIDDEN = 32
    NUM_LAYERS = 2

    key = jax.random.PRNGKey(0)
    key, kx, kp = jax.random.split(key, 3)
    x = jax.random.normal(kx, (B, T), jnp.float32)

    raw = init_params(kp, input_size=1, hidden_size=HIDDEN,
                      num_layers=NUM_LAYERS, output_size=1)
    flat = pack_params(raw, HIDDEN)   # f32; use dtype=jnp.bfloat16 on v6e/v7x

    fwd = jax.jit(functools.partial(variational_bilstm_forward,
                                    hidden_size=HIDDEN,
                                    num_layers=NUM_LAYERS))
    mean, std = fwd(x, flat)
    jax.block_until_ready((mean, std))

    assert mean.shape == (B, T) and std.shape == (B, T)
    assert bool(jnp.all(jnp.isfinite(mean))) and bool(jnp.all(std > 0))

    # Correctness check against a pure-JAX reference of the same module.
    mean_r, std_r = reference_forward(x, raw, hidden_size=HIDDEN,
                                      num_layers=NUM_LAYERS)
    err_m = float(jnp.max(jnp.abs(mean - mean_r)))
    err_s = float(jnp.max(jnp.abs(std - std_r)))
    assert err_m < 5e-2 and err_s < 5e-2, (err_m, err_s)

    print("KERNEL_OK")
</pallas_src>

<mosaic_0001>
module attributes {stable_mosaic.version = 11 : i64} {
  func.func @_model_kernel(%arg0: i32, %arg1: memref<64x2xf32, #tpu.memory_space<vmem>>, %arg2: memref<4x256xf32, #tpu.memory_space<vmem>>, %arg3: memref<64x256xf32, #tpu.memory_space<vmem>>, %arg4: memref<64x256xf32, #tpu.memory_space<vmem>>, %arg5: memref<64x256xf32, #tpu.memory_space<vmem>>, %arg6: memref<160x64xf32, #tpu.memory_space<vmem>>, %arg7: memref<64x2xf32, #tpu.memory_space<vmem>>, %arg8: memref<64x256xf32, #tpu.memory_space<vmem>>) attributes {dimension_semantics = [#tpu.dimension_semantics<arbitrary>], iteration_bounds = array<i64: 1>, scalar_prefetch = 0 : i64, scratch_operands = 1 : i64, tpu.core_type = #tpu.core_type<tc>, window_params = [{pipeline_mode = #tpu.pipeline_mode<synchronous>, transform_indices = @transform_0, window_bounds = array<i64: 64, 2>}, {pipeline_mode = #tpu.pipeline_mode<synchronous>, transform_indices = @transform_1, window_bounds = array<i64: 4, 256>}, {pipeline_mode = #tpu.pipeline_mode<synchronous>, transform_indices = @transform_2, window_bounds = array<i64: 64, 256>}, {pipeline_mode = #tpu.pipeline_mode<synchronous>, transform_indices = @transform_3, window_bounds = array<i64: 64, 256>}, {pipeline_mode = #tpu.pipeline_mode<synchronous>, transform_indices = @transform_4, window_bounds = array<i64: 64, 256>}, {pipeline_mode = #tpu.pipeline_mode<synchronous>, transform_indices = @transform_5, window_bounds = array<i64: 160, 64>}, {pipeline_mode = #tpu.pipeline_mode<synchronous>, transform_indices = @transform_6, window_bounds = array<i64: 64, 2>}]} {
    %0 = tpu.iota {dimensions = array<i32: 1>} : vector<1x256xi32>
    %c64_i32 = arith.constant 64 : i32
    %c0_i32 = arith.constant 0 : i32
    %1 = arith.cmpi eq, %c64_i32, %c0_i32 : i32
    %c1_i32 = arith.constant 1 : i32
    %2 = arith.select %1, %c1_i32, %c64_i32 : i32
    %3 = vector.broadcast %2 : i32 to vector<1x256xi32>
    %4 = arith.remsi %0, %3 : vector<1x256xi32>
    %c0_i32_0 = arith.constant 0 : i32
    %5 = vector.broadcast %c0_i32_0 : i32 to vector<1x256xi32>
    %6 = arith.cmpi ne, %4, %5 : vector<1x256xi32>
    %c0_i32_1 = arith.constant 0 : i32
    %7 = vector.broadcast %c0_i32_1 : i32 to vector<1x256xi32>
    %8 = arith.cmpi slt, %4, %7 : vector<1x256xi32>
    %c0_i32_2 = arith.constant 0 : i32
    %9 = arith.cmpi slt, %2, %c0_i32_2 : i32
    %10 = vector.broadcast %9 : i1 to vector<1x256xi1>
    %11 = vector.broadcast %10 : vector<1x256xi1> to vector<1x256xi1>
    %12 = arith.xori %8, %11 : vector<1x256xi1>
    %13 = arith.andi %12, %6 : vector<1x256xi1>
    %14 = vector.broadcast %2 : i32 to vector<1x256xi32>
    %15 = arith.addi %4, %14 : vector<1x256xi32>
    %16 = arith.select %13, %15, %4 : vector<1x256xi1>, vector<1x256xi32>
    %c32_i32 = arith.constant 32 : i32
    %17 = vector.broadcast %c32_i32 : i32 to vector<1x256xi32>
    %18 = arith.cmpi slt, %16, %17 : vector<1x256xi32>
    %c0 = arith.constant 0 : index
    %c0_3 = arith.constant 0 : index
    %19 = vector.load %arg2[%c0, %c0_3] : memref<4x256xf32, #tpu.memory_space<vmem>>, vector<4x256xf32>
    %c0_4 = arith.constant 0 : index
    %c0_5 = arith.constant 0 : index
    %20 = vector.load %arg1[%c0_4, %c0_5] : memref<64x2xf32, #tpu.memory_space<vmem>>, vector<64x2xf32>
    %21 = vector.extract_strided_slice %19 {offsets = [0, 0], sizes = [1, 256], strides = [1, 1]} : vector<4x256xf32> to vector<1x256xf32>
    %22 = vector.extract_strided_slice %19 {offsets = [1, 0], sizes = [1, 256], strides = [1, 1]} : vector<4x256xf32> to vector<1x256xf32>
    %cst = arith.constant 0.000000e+00 : f32
    %23 = vector.broadcast %cst : f32 to vector<1x256xf32>
    %24 = arith.select %18, %21, %23 : vector<1x256xi1>, vector<1x256xf32>
    %25 = arith.subf %21, %24 : vector<1x256xf32>
    %26 = vector.extract_strided_slice %20 {offsets = [0, 0], sizes = [64, 1], strides = [1, 1]} : vector<64x2xf32> to vector<64x1xf32>
    %27 = vector.broadcast %26 : vector<64x1xf32> to vector<64x256xf32>
    %28 = vector.broadcast %24 : vector<1x256xf32> to vector<64x256xf32>
    %29 = arith.mulf %27, %28 : vector<64x256xf32>
    %30 = vector.extract_strided_slice %20 {offsets = [0, 1], sizes = [64, 1], strides = [1, 1]} : vector<64x2xf32> to vector<64x1xf32>
    %31 = vector.broadcast %30 : vector<64x1xf32> to vector<64x256xf32>
    %32 = vector.broadcast %25 : vector<1x256xf32> to vector<64x256xf32>
    %33 = arith.mulf %31, %32 : vector<64x256xf32>
    %34 = arith.addf %29, %33 : vector<64x256xf32>
    %35 = vector.broadcast %22 : vector<1x256xf32> to vector<64x256xf32>
    %36 = arith.addf %34, %35 : vector<64x256xf32>
    %c0_6 = arith.constant 0 : index
    %c0_7 = arith.constant 0 : index
    %37 = vector.load %arg8[%c0_6, %c0_7] : memref<64x256xf32, #tpu.memory_space<vmem>>, vector<64x256xf32>
    tpu.vector_store %arg8[%c0_6, %c0_7], %36 {strides = array<i32>} : memref<64x256xf32, #tpu.memory_space<vmem>>, vector<64x256xf32>,
    %c0_8 = arith.constant 0 : index
    %c0_9 = arith.constant 0 : index
    %38 = vector.load %arg3[%c0_8, %c0_9] : memref<64x256xf32, #tpu.memory_space<vmem>>, vector<64x256xf32>
    %cst_10 = arith.constant 0.000000e+00 : f32
    %39 = vector.broadcast %cst_10 : f32 to vector<8x64xf32>
    %cst_11 = arith.constant 0.000000e+00 : f32
    %40 = vector.broadcast %cst_11 : f32 to vector<8x64xf32>
    %c0_12 = arith.constant 0 : index
    %c0_13 = arith.constant 0 : index
    %41 = vector.load %arg8[%c0_12, %c0_13] : memref<64x256xf32, #tpu.memory_space<vmem>>, vector<8x256xf32>
    %cst_14 = arith.constant dense<0.000000e+00> : vector<8x256xf32>
    %42 = tpu.matmul %39, %38, %cst_14 {dimension_numbers = #tpu.dot_dimension_numbers<[1], [0], [0], [1], [0, 0, 1, 1], [], []>} : vector<8x64xf32>, vector<64x256xf32>, vector<8x256xf32> -> vector<8x256xf32>
    %43 = arith.addf %41, %42 : vector<8x256xf32>
    %44 = vector.extract_strided_slice %43 {offsets = [0, 0], sizes = [8, 64], strides = [1, 1]} : vector<8x256xf32> to vector<8x64xf32>
    %45 = arith.negf %44 : vector<8x64xf32>
    %46 = math.exp %45 : vector<8x64xf32>
    %cst_15 = arith.constant 1.000000e+00 : f32
    %47 = vector.broadcast %cst_15 : f32 to vector<8x64xf32>
    %48 = arith.addf %47, %46 : vector<8x64xf32>
    %49 = arith.divf %47, %48 : vector<8x64xf32>
    %50 = vector.extract_strided_slice %43 {offsets = [0, 64], sizes = [8, 64], strides = [1, 1]} : vector<8x256xf32> to vector<8x64xf32>
    %51 = arith.negf %50 : vector<8x64xf32>
    %52 = math.exp %51 : vector<8x64xf32>
    %cst_16 = arith.constant 1.000000e+00 : f32
    %53 = vector.broadcast %cst_16 : f32 to vector<8x64xf32>
    %54 = arith.addf %53, %52 : vector<8x64xf32>
    %55 = arith.divf %53, %54 : vector<8x64xf32>
    %56 = vector.extract_strided_slice %43 {offsets = [0, 128], sizes = [8, 64], strides = [1, 1]} : vector<8x256xf32> to vector<8x64xf32>
    %57 = math.tanh %56 : vector<8x64xf32>
    %58 = vector.extract_strided_slice %43 {offsets = [0, 192], sizes = [8, 64], strides = [1, 1]} : vector<8x256xf32> to vector<8x64xf32>
    %59 = arith.negf %58 : vector<8x64xf32>
    %60 = math.exp %59 : vector<8x64xf32>
    %cst_17 = arith.constant 1.000000e+00 : f32
    %61 = vector.broadcast %cst_17 : f32 to vector<8x64xf32>
    %62 = arith.addf %61, %60 : vector<8x64xf32>
    %63 = arith.divf %61, %62 : vector<8x64xf32>
    %64 = arith.mulf %55, %40 : vector<8x64xf32>
    %65 = arith.mulf %49, %57 : vector<8x64xf32>
    %66 = arith.addf %64, %65 : vector<8x64xf32>
    %67 = math.tanh %66 : vector<8x64xf32>
    %68 = arith.mulf %63, %67 : vector<8x64xf32>
    %c8 = arith.constant 8 : index
    %c0_18 = arith.constant 0 : index
    %69 = vector.load %arg8[%c8, %c0_18] : memref<64x256xf32, #tpu.memory_space<vmem>>, vector<8x256xf32>
    %cst_19 = arith.constant dense<0.000000e+00> : vector<8x256xf32>
    %70 = tpu.matmul %68, %38, %cst_19 {dimension_numbers = #tpu.dot_dimension_numbers<[1], [0], [0], [1], [0, 0, 1, 1], [], []>} : vector<8x64xf32>, vector<64x256xf32>, vector<8x256xf32> -> vector<8x256xf32>
    %71 = arith.addf %69, %70 : vector<8x256xf32>
    %72 = vector.extract_strided_slice %71 {offsets = [0, 0], sizes = [8, 64], strides = [1, 1]} : vector<8x256xf32> to vector<8x64xf32>
    %73 = arith.negf %72 : vector<8x64xf32>
    %74 = math.exp %73 : vector<8x64xf32>
    %cst_20 = arith.constant 1.000000e+00 : f32
    %75 = vector.broadcast %cst_20 : f32 to vector<8x64xf32>
    %76 = arith.addf %75, %74 : vector<8x64xf32>
    %77 = arith.divf %75, %76 : vector<8x64xf32>
    %78 = vector.extract_strided_slice %71 {offsets = [0, 64], sizes = [8, 64], strides = [1, 1]} : vector<8x256xf32> to vector<8x64xf32>
    %79 = arith.negf %78 : vector<8x64xf32>
    %80 = math.exp %79 : vector<8x64xf32>
    %cst_21 = arith.constant 1.000000e+00 : f32
    %81 = vector.broadcast %cst_21 : f32 to vector<8x64xf32>
    %82 = arith.addf %81, %80 : vector<8x64xf32>
    %83 = arith.divf %81, %82 : vector<8x64xf32>
    %84 = vector.extract_strided_slice %71 {offsets = [0, 128], sizes = [8, 64], strides = [1, 1]} : vector<8x256xf32> to vector<8x64xf32>
    %85 = math.tanh %84 : vector<8x64xf32>
    %86 = vector.extract_strided_slice %71 {offsets = [0, 192], sizes = [8, 64], strides = [1, 1]} : vector<8x256xf32> to vector<8x64xf32>
    %87 = arith.negf %86 : vector<8x64xf32>
    %88 = math.exp %87 : vector<8x64xf32>
    %cst_22 = arith.constant 1.000000e+00 : f32
    %89 = vector.broadcast %cst_22 : f32 to vector<8x64xf32>
    %90 = arith.addf %89, %88 : vector<8x64xf32>
    %91 = arith.divf %89, %90 : vector<8x64xf32>
    %92 = arith.mulf %83, %66 : vector<8x64xf32>
    %93 = arith.mulf %77, %85 : vector<8x64xf32>
    %94 = arith.addf %92, %93 : vector<8x64xf32>
    %95 = math.tanh %94 : vector<8x64xf32>
    %96 = arith.mulf %91, %95 : vector<8x64xf32>
    %c16 = arith.constant 16 : index
    %c0_23 = arith.constant 0 : index
    %97 = vector.load %arg8[%c16, %c0_23] : memref<64x256xf32, #tpu.memory_space<vmem>>, vector<8x256xf32>
    %cst_24 = arith.constant dense<0.000000e+00> : vector<8x256xf32>
    %98 = tpu.matmul %96, %38, %cst_24 {dimension_numbers = #tpu.dot_dimension_numbers<[1], [0], [0], [1], [0, 0, 1, 1], [], []>} : vector<8x64xf32>, vector<64x256xf32>, vector<8x256xf32> -> vector<8x256xf32>
    %99 = arith.addf %97, %98 : vector<8x256xf32>
    %100 = vector.extract_strided_slice %99 {offsets = [0, 0], sizes = [8, 64], strides = [1, 1]} : vector<8x256xf32> to vector<8x64xf32>
    %101 = arith.negf %100 : vector<8x64xf32>
    %102 = math.exp %101 : vector<8x64xf32>
    %cst_25 = arith.constant 1.000000e+00 : f32
    %103 = vector.broadcast %cst_25 : f32 to vector<8x64xf32>
    %104 = arith.addf %103, %102 : vector<8x64xf32>
    %105 = arith.divf %103, %104 : vector<8x64xf32>
    %106 = vector.extract_strided_slice %99 {offsets = [0, 64], sizes = [8, 64], strides = [1, 1]} : vector<8x256xf32> to vector<8x64xf32>
    %107 = arith.negf %106 : vector<8x64xf32>
    %108 = math.exp %107 : vector<8x64xf32>
    %cst_26 = arith.constant 1.000000e+00 : f32
    %109 = vector.broadcast %cst_26 : f32 to vector<8x64xf32>
    %110 = arith.addf %109, %108 : vector<8x64xf32>
    %111 = arith.divf %109, %110 : vector<8x64xf32>
    %112 = vector.extract_strided_slice %99 {offsets = [0, 128], sizes = [8, 64], strides = [1, 1]} : vector<8x256xf32> to vector<8x64xf32>
    %113 = math.tanh %112 : vector<8x64xf32>
    %114 = vector.extract_strided_slice %99 {offsets = [0, 192], sizes = [8, 64], strides = [1, 1]} : vector<8x256xf32> to vector<8x64xf32>
    %115 = arith.negf %114 : vector<8x64xf32>
    %116 = math.exp %115 : vector<8x64xf32>
    %cst_27 = arith.constant 1.000000e+00 : f32
    %117 = vector.broadcast %cst_27 : f32 to vector<8x64xf32>
    %118 = arith.addf %117, %116 : vector<8x64xf32>
    %119 = arith.divf %117, %118 : vector<8x64xf32>
    %120 = arith.mulf %111, %94 : vector<8x64xf32>
    %121 = arith.mulf %105, %113 : vector<8x64xf32>
    %122 = arith.addf %120, %121 : vector<8x64xf32>
    %123 = math.tanh %122 : vector<8x64xf32>
    %124 = arith.mulf %119, %123 : vector<8x64xf32>
    %c24 = arith.constant 24 : index
    %c0_28 = arith.constant 0 : index
    %125 = vector.load %arg8[%c24, %c0_28] : memref<64x256xf32, #tpu.memory_space<vmem>>, vector<8x256xf32>
    %cst_29 = arith.constant dense<0.000000e+00> : vector<8x256xf32>
    %126 = tpu.matmul %124, %38, %cst_29 {dimension_numbers = #tpu.dot_dimension_numbers<[1], [0], [0], [1], [0, 0, 1, 1], [], []>} : vector<8x64xf32>, vector<64x256xf32>, vector<8x256xf32> -> vector<8x256xf32>
    %127 = arith.addf %125, %126 : vector<8x256xf32>
    %128 = vector.extract_strided_slice %127 {offsets = [0, 0], sizes = [8, 64], strides = [1, 1]} : vector<8x256xf32> to vector<8x64xf32>
    %129 = arith.negf %128 : vector<8x64xf32>
    %130 = math.exp %129 : vector<8x64xf32>
    %cst_30 = arith.constant 1.000000e+00 : f32
    %131 = vector.broadcast %cst_30 : f32 to vector<8x64xf32>
    %132 = arith.addf %131, %130 : vector<8x64xf32>
    %133 = arith.divf %131, %132 : vector<8x64xf32>
    %134 = vector.extract_strided_slice %127 {offsets = [0, 64], sizes = [8, 64], strides = [1, 1]} : vector<8x256xf32> to vector<8x64xf32>
    %135 = arith.negf %134 : vector<8x64xf32>
    %136 = math.exp %135 : vector<8x64xf32>
    %cst_31 = arith.constant 1.000000e+00 : f32
    %137 = vector.broadcast %cst_31 : f32 to vector<8x64xf32>
    %138 = arith.addf %137, %136 : vector<8x64xf32>
    %139 = arith.divf %137, %138 : vector<8x64xf32>
    %140 = vector.extract_strided_slice %127 {offsets = [0, 128], sizes = [8, 64], strides = [1, 1]} : vector<8x256xf32> to vector<8x64xf32>
    %141 = math.tanh %140 : vector<8x64xf32>
    %142 = vector.extract_strided_slice %127 {offsets = [0, 192], sizes = [8, 64], strides = [1, 1]} : vector<8x256xf32> to vector<8x64xf32>
    %143 = arith.negf %142 : vector<8x64xf32>
    %144 = math.exp %143 : vector<8x64xf32>
    %cst_32 = arith.constant 1.000000e+00 : f32
    %145 = vector.broadcast %cst_32 : f32 to vector<8x64xf32>
    %146 = arith.addf %145, %144 : vector<8x64xf32>
    %147 = arith.divf %145, %146 : vector<8x64xf32>
    %148 = arith.mulf %139, %122 : vector<8x64xf32>
    %149 = arith.mulf %133, %141 : vector<8x64xf32>
    %150 = arith.addf %148, %149 : vector<8x64xf32>
    %151 = math.tanh %150 : vector<8x64xf32>
    %152 = arith.mulf %147, %151 : vector<8x64xf32>
    %c32 = arith.constant 32 : index
    %c0_33 = arith.constant 0 : index
    %153 = vector.load %arg8[%c32, %c0_33] : memref<64x256xf32, #tpu.memory_space<vmem>>, vector<8x256xf32>
    %cst_34 = arith.constant dense<0.000000e+00> : vector<8x256xf32>
    %154 = tpu.matmul %152, %38, %cst_34 {dimension_numbers = #tpu.dot_dimension_numbers<[1], [0], [0], [1], [0, 0, 1, 1], [], []>} : vector<8x64xf32>, vector<64x256xf32>, vector<8x256xf32> -> vector<8x256xf32>
    %155 = arith.addf %153, %154 : vector<8x256xf32>
    %156 = vector.extract_strided_slice %155 {offsets = [0, 0], sizes = [8, 64], strides = [1, 1]} : vector<8x256xf32> to vector<8x64xf32>
    %157 = arith.negf %156 : vector<8x64xf32>
    %158 = math.exp %157 : vector<8x64xf32>
    %cst_35 = arith.constant 1.000000e+00 : f32
    %159 = vector.broadcast %cst_35 : f32 to vector<8x64xf32>
    %160 = arith.addf %159, %158 : vector<8x64xf32>
    %161 = arith.divf %159, %160 : vector<8x64xf32>
    %162 = vector.extract_strided_slice %155 {offsets = [0, 64], sizes = [8, 64], strides = [1, 1]} : vector<8x256xf32> to vector<8x64xf32>
    %163 = arith.negf %162 : vector<8x64xf32>
    %164 = math.exp %163 : vector<8x64xf32>
    %cst_36 = arith.constant 1.000000e+00 : f32
    %165 = vector.broadcast %cst_36 : f32 to vector<8x64xf32>
    %166 = arith.addf %165, %164 : vector<8x64xf32>
    %167 = arith.divf %165, %166 : vector<8x64xf32>
    %168 = vector.extract_strided_slice %155 {offsets = [0, 128], sizes = [8, 64], strides = [1, 1]} : vector<8x256xf32> to vector<8x64xf32>
    %169 = math.tanh %168 : vector<8x64xf32>
    %170 = vector.extract_strided_slice %155 {offsets = [0, 192], sizes = [8, 64], strides = [1, 1]} : vector<8x256xf32> to vector<8x64xf32>
    %171 = arith.negf %170 : vector<8x64xf32>
    %172 = math.exp %171 : vector<8x64xf32>
    %cst_37 = arith.constant 1.000000e+00 : f32
    %173 = vector.broadcast %cst_37 : f32 to vector<8x64xf32>
    %174 = arith.addf %173, %172 : vector<8x64xf32>
    %175 = arith.divf %173, %174 : vector<8x64xf32>
    %176 = arith.mulf %167, %150 : vector<8x64xf32>
    %177 = arith.mulf %161, %169 : vector<8x64xf32>
    %178 = arith.addf %176, %177 : vector<8x64xf32>
    %179 = math.tanh %178 : vector<8x64xf32>
    %180 = arith.mulf %175, %179 : vector<8x64xf32>
    %c40 = arith.constant 40 : index
    %c0_38 = arith.constant 0 : index
    %181 = vector.load %arg8[%c40, %c0_38] : memref<64x256xf32, #tpu.memory_space<vmem>>, vector<8x256xf32>
    %cst_39 = arith.constant dense<0.000000e+00> : vector<8x256xf32>
    %182 = tpu.matmul %180, %38, %cst_39 {dimension_numbers = #tpu.dot_dimension_numbers<[1], [0], [0], [1], [0, 0, 1, 1], [], []>} : vector<8x64xf32>, vector<64x256xf32>, vector<8x256xf32> -> vector<8x256xf32>
    %183 = arith.addf %181, %182 : vector<8x256xf32>
    %184 = vector.extract_strided_slice %183 {offsets = [0, 0], sizes = [8, 64], strides = [1, 1]} : vector<8x256xf32> to vector<8x64xf32>
    %185 = arith.negf %184 : vector<8x64xf32>
    %186 = math.exp %185 : vector<8x64xf32>
    %cst_40 = arith.constant 1.000000e+00 : f32
    %187 = vector.broadcast %cst_40 : f32 to vector<8x64xf32>
    %188 = arith.addf %187, %186 : vector<8x64xf32>
    %189 = arith.divf %187, %188 : vector<8x64xf32>
    %190 = vector.extract_strided_slice %183 {offsets = [0, 64], sizes = [8, 64], strides = [1, 1]} : vector<8x256xf32> to vector<8x64xf32>
    %191 = arith.negf %190 : vector<8x64xf32>
    %192 = math.exp %191 : vector<8x64xf32>
    %cst_41 = arith.constant 1.000000e+00 : f32
    %193 = vector.broadcast %cst_41 : f32 to vector<8x64xf32>
    %194 = arith.addf %193, %192 : vector<8x64xf32>
    %195 = arith.divf %193, %194 : vector<8x64xf32>
    %196 = vector.extract_strided_slice %183 {offsets = [0, 128], sizes = [8, 64], strides = [1, 1]} : vector<8x256xf32> to vector<8x64xf32>
    %197 = math.tanh %196 : vector<8x64xf32>
    %198 = vector.extract_strided_slice %183 {offsets = [0, 192], sizes = [8, 64], strides = [1, 1]} : vector<8x256xf32> to vector<8x64xf32>
    %199 = arith.negf %198 : vector<8x64xf32>
    %200 = math.exp %199 : vector<8x64xf32>
    %cst_42 = arith.constant 1.000000e+00 : f32
    %201 = vector.broadcast %cst_42 : f32 to vector<8x64xf32>
    %202 = arith.addf %201, %200 : vector<8x64xf32>
    %203 = arith.divf %201, %202 : vector<8x64xf32>
    %204 = arith.mulf %195, %178 : vector<8x64xf32>
    %205 = arith.mulf %189, %197 : vector<8x64xf32>
    %206 = arith.addf %204, %205 : vector<8x64xf32>
    %207 = math.tanh %206 : vector<8x64xf32>
    %208 = arith.mulf %203, %207 : vector<8x64xf32>
    %c48 = arith.constant 48 : index
    %c0_43 = arith.constant 0 : index
    %209 = vector.load %arg8[%c48, %c0_43] : memref<64x256xf32, #tpu.memory_space<vmem>>, vector<8x256xf32>
    %cst_44 = arith.constant dense<0.000000e+00> : vector<8x256xf32>
    %210 = tpu.matmul %208, %38, %cst_44 {dimension_numbers = #tpu.dot_dimension_numbers<[1], [0], [0], [1], [0, 0, 1, 1], [], []>} : vector<8x64xf32>, vector<64x256xf32>, vector<8x256xf32> -> vector<8x256xf32>
    %211 = arith.addf %209, %210 : vector<8x256xf32>
    %212 = vector.extract_strided_slice %211 {offsets = [0, 0], sizes = [8, 64], strides = [1, 1]} : vector<8x256xf32> to vector<8x64xf32>
    %213 = arith.negf %212 : vector<8x64xf32>
    %214 = math.exp %213 : vector<8x64xf32>
    %cst_45 = arith.constant 1.000000e+00 : f32
    %215 = vector.broadcast %cst_45 : f32 to vector<8x64xf32>
    %216 = arith.addf %215, %214 : vector<8x64xf32>
    %217 = arith.divf %215, %216 : vector<8x64xf32>
    %218 = vector.extract_strided_slice %211 {offsets = [0, 64], sizes = [8, 64], strides = [1, 1]} : vector<8x256xf32> to vector<8x64xf32>
    %219 = arith.negf %218 : vector<8x64xf32>
    %220 = math.exp %219 : vector<8x64xf32>
    %cst_46 = arith.constant 1.000000e+00 : f32
    %221 = vector.broadcast %cst_46 : f32 to vector<8x64xf32>
    %222 = arith.addf %221, %220 : vector<8x64xf32>
    %223 = arith.divf %221, %222 : vector<8x64xf32>
    %224 = vector.extract_strided_slice %211 {offsets = [0, 128], sizes = [8, 64], strides = [1, 1]} : vector<8x256xf32> to vector<8x64xf32>
    %225 = math.tanh %224 : vector<8x64xf32>
    %226 = vector.extract_strided_slice %211 {offsets = [0, 192], sizes = [8, 64], strides = [1, 1]} : vector<8x256xf32> to vector<8x64xf32>
    %227 = arith.negf %226 : vector<8x64xf32>
    %228 = math.exp %227 : vector<8x64xf32>
    %cst_47 = arith.constant 1.000000e+00 : f32
    %229 = vector.broadcast %cst_47 : f32 to vector<8x64xf32>
    %230 = arith.addf %229, %228 : vector<8x64xf32>
    %231 = arith.divf %229, %230 : vector<8x64xf32>
    %232 = arith.mulf %223, %206 : vector<8x64xf32>
    %233 = arith.mulf %217, %225 : vector<8x64xf32>
    %234 = arith.addf %232, %233 : vector<8x64xf32>
    %235 = math.tanh %234 : vector<8x64xf32>
    %236 = arith.mulf %231, %235 : vector<8x64xf32>
    %c56 = arith.constant 56 : index
    %c0_48 = arith.constant 0 : index
    %237 = vector.load %arg8[%c56, %c0_48] : memref<64x256xf32, #tpu.memory_space<vmem>>, vector<8x256xf32>
    %cst_49 = arith.constant dense<0.000000e+00> : vector<8x256xf32>
    %238 = tpu.matmul %236, %38, %cst_49 {dimension_numbers = #tpu.dot_dimension_numbers<[1], [0], [0], [1], [0, 0, 1, 1], [], []>} : vector<8x64xf32>, vector<64x256xf32>, vector<8x256xf32> -> vector<8x256xf32>
    %239 = arith.addf %237, %238 : vector<8x256xf32>
    %240 = vector.extract_strided_slice %239 {offsets = [0, 0], sizes = [8, 64], strides = [1, 1]} : vector<8x256xf32> to vector<8x64xf32>
    %241 = arith.negf %240 : vector<8x64xf32>
    %242 = math.exp %241 : vector<8x64xf32>
    %cst_50 = arith.constant 1.000000e+00 : f32
    %243 = vector.broadcast %cst_50 : f32 to vector<8x64xf32>
    %244 = arith.addf %243, %242 : vector<8x64xf32>
    %245 = arith.divf %243, %244 : vector<8x64xf32>
    %246 = vector.extract_strided_slice %239 {offsets = [0, 64], sizes = [8, 64], strides = [1, 1]} : vector<8x256xf32> to vector<8x64xf32>
    %247 = arith.negf %246 : vector<8x64xf32>
    %248 = math.exp %247 : vector<8x64xf32>
    %cst_51 = arith.constant 1.000000e+00 : f32
    %249 = vector.broadcast %cst_51 : f32 to vector<8x64xf32>
    %250 = arith.addf %249, %248 : vector<8x64xf32>
    %251 = arith.divf %249, %250 : vector<8x64xf32>
    %252 = vector.extract_strided_slice %239 {offsets = [0, 128], sizes = [8, 64], strides = [1, 1]} : vector<8x256xf32> to vector<8x64xf32>
    %253 = math.tanh %252 : vector<8x64xf32>
    %254 = vector.extract_strided_slice %239 {offsets = [0, 192], sizes = [8, 64], strides = [1, 1]} : vector<8x256xf32> to vector<8x64xf32>
    %255 = arith.negf %254 : vector<8x64xf32>
    %256 = math.exp %255 : vector<8x64xf32>
    %cst_52 = arith.constant 1.000000e+00 : f32
    %257 = vector.broadcast %cst_52 : f32 to vector<8x64xf32>
    %258 = arith.addf %257, %256 : vector<8x64xf32>
    %259 = arith.divf %257, %258 : vector<8x64xf32>
    %260 = arith.mulf %251, %234 : vector<8x64xf32>
    %261 = arith.mulf %245, %253 : vector<8x64xf32>
    %262 = arith.addf %260, %261 : vector<8x64xf32>
    %263 = math.tanh %262 : vector<8x64xf32>
    %264 = arith.mulf %259, %263 : vector<8x64xf32>
    %265 = vector.extract_strided_slice %68 {offsets = [0, 0], sizes = [8, 32], strides = [1, 1]} : vector<8x64xf32> to vector<8x32xf32>
    %266 = vector.extract_strided_slice %264 {offsets = [0, 32], sizes = [8, 32], strides = [1, 1]} : vector<8x64xf32> to vector<8x32xf32>
    %267 = tpu.concatenate %265, %266 in 1 : vector<8x32xf32>, vector<8x32xf32> -> vector<8x64xf32>
    %268 = vector.extract_strided_slice %96 {offsets = [0, 0], sizes = [8, 32], strides = [1, 1]} : vector<8x64xf32> to vector<8x32xf32>
    %269 = vector.extract_strided_slice %236 {offsets = [0, 32], sizes = [8, 32], strides = [1, 1]} : vector<8x64xf32> to vector<8x32xf32>
    %270 = tpu.concatenate %268, %269 in 1 : vector<8x32xf32>, vector<8x32xf32> -> vector<8x64xf32>
    %271 = vector.extract_strided_slice %124 {offsets = [0, 0], sizes = [8, 32], strides = [1, 1]} : vector<8x64xf32> to vector<8x32xf32>
    %272 = vector.extract_strided_slice %208 {offsets = [0, 32], sizes = [8, 32], strides = [1, 1]} : vector<8x64xf32> to vector<8x32xf32>
    %273 = tpu.concatenate %271, %272 in 1 : vector<8x32xf32>, vector<8x32xf32> -> vector<8x64xf32>
    %274 = vector.extract_strided_slice %152 {offsets = [0, 0], sizes = [8, 32], strides = [1, 1]} : vector<8x64xf32> to vector<8x32xf32>
    %275 = vector.extract_strided_slice %180 {offsets = [0, 32], sizes = [8, 32], strides = [1, 1]} : vector<8x64xf32> to vector<8x32xf32>
    %276 = tpu.concatenate %274, %275 in 1 : vector<8x32xf32>, vector<8x32xf32> -> vector<8x64xf32>
    %277 = vector.extract_strided_slice %180 {offsets = [0, 0], sizes = [8, 32], strides = [1, 1]} : vector<8x64xf32> to vector<8x32xf32>
    %278 = vector.extract_strided_slice %152 {offsets = [0, 32], sizes = [8, 32], strides = [1, 1]} : vector<8x64xf32> to vector<8x32xf32>
    %279 = tpu.concatenate %277, %278 in 1 : vector<8x32xf32>, vector<8x32xf32> -> vector<8x64xf32>
    %280 = vector.extract_strided_slice %208 {offsets = [0, 0], sizes = [8, 32], strides = [1, 1]} : vector<8x64xf32> to vector<8x32xf32>
    %281 = vector.extract_strided_slice %124 {offsets = [0, 32], sizes = [8, 32], strides = [1, 1]} : vector<8x64xf32> to vector<8x32xf32>
    %282 = tpu.concatenate %280, %281 in 1 : vector<8x32xf32>, vector<8x32xf32> -> vector<8x64xf32>
    %283 = vector.extract_strided_slice %236 {offsets = [0, 0], sizes = [8, 32], strides = [1, 1]} : vector<8x64xf32> to vector<8x32xf32>
    %284 = vector.extract_strided_slice %96 {offsets = [0, 32], sizes = [8, 32], strides = [1, 1]} : vector<8x64xf32> to vector<8x32xf32>
    %285 = tpu.concatenate %283, %284 in 1 : vector<8x32xf32>, vector<8x32xf32> -> vector<8x64xf32>
    %286 = vector.extract_strided_slice %264 {offsets = [0, 0], sizes = [8, 32], strides = [1, 1]} : vector<8x64xf32> to vector<8x32xf32>
    %287 = vector.extract_strided_slice %68 {offsets = [0, 32], sizes = [8, 32], strides = [1, 1]} : vector<8x64xf32> to vector<8x32xf32>
    %288 = tpu.concatenate %286, %287 in 1 : vector<8x32xf32>, vector<8x32xf32> -> vector<8x64xf32>
    %289 = tpu.concatenate %267, %270, %273, %276, %279, %282, %285, %288 in 0 : vector<8x64xf32>, vector<8x64xf32>, vector<8x64xf32>, vector<8x64xf32>, vector<8x64xf32>, vector<8x64xf32>, vector<8x64xf32>, vector<8x64xf32> -> vector<64x64xf32>
    %290 = tpu.concatenate %288, %285, %282, %279, %276, %273, %270, %267 in 0 : vector<8x64xf32>, vector<8x64xf32>, vector<8x64xf32>, vector<8x64xf32>, vector<8x64xf32>, vector<8x64xf32>, vector<8x64xf32>, vector<8x64xf32> -> vector<64x64xf32>
    %c0_53 = arith.constant 0 : index
    %c0_54 = arith.constant 0 : index
    %291 = vector.load %arg4[%c0_53, %c0_54] : memref<64x256xf32, #tpu.memory_space<vmem>>, vector<64x256xf32>
    %292 = vector.extract_strided_slice %19 {offsets = [2, 0], sizes = [1, 256], strides = [1, 1]} : vector<4x256xf32> to vector<1x256xf32>
    %cst_55 = arith.constant 0.000000e+00 : f32
    %293 = vector.shape_cast %18 : vector<1x256xi1> to vector<1x256xi1>
    %294 = vector.broadcast %293 : vector<1x256xi1> to vector<64x256xi1>
    %295 = vector.broadcast %cst_55 : f32 to vector<64x256xf32>
    %296 = arith.select %294, %291, %295 : vector<64x256xi1>, vector<64x256xf32>
    %297 = arith.subf %291, %296 : vector<64x256xf32>
    %cst_56 = arith.constant dense<0.000000e+00> : vector<64x256xf32>
    %298 = tpu.matmul %289, %296, %cst_56 {dimension_numbers = #tpu.dot_dimension_numbers<[1], [0], [0], [1], [0, 0, 1, 1], [], []>} : vector<64x64xf32>, vector<64x256xf32>, vector<64x256xf32> -> vector<64x256xf32>
    %cst_57 = arith.constant dense<0.000000e+00> : vector<64x256xf32>
    %299 = tpu.matmul %290, %297, %cst_57 {dimension_numbers = #tpu.dot_dimension_numbers<[1], [0], [0], [1], [0, 0, 1, 1], [], []>} : vector<64x64xf32>, vector<64x256xf32>, vector<64x256xf32> -> vector<64x256xf32>
    %300 = arith.addf %298, %299 : vector<64x256xf32>
    %301 = vector.broadcast %292 : vector<1x256xf32> to vector<64x256xf32>
    %302 = arith.addf %300, %301 : vector<64x256xf32>
    %c0_58 = arith.constant 0 : index
    %c0_59 = arith.constant 0 : index
    %303 = vector.load %arg8[%c0_58, %c0_59] : memref<64x256xf32, #tpu.memory_space<vmem>>, vector<64x256xf32>
    tpu.vector_store %arg8[%c0_58, %c0_59], %302 {strides = array<i32>} : memref<64x256xf32, #tpu.memory_space<vmem>>, vector<64x256xf32>,
    %c0_60 = arith.constant 0 : index
    %c0_61 = arith.constant 0 : index
    %304 = vector.load %arg5[%c0_60, %c0_61] : memref<64x256xf32, #tpu.memory_space<vmem>>, vector<64x256xf32>
    %cst_62 = arith.constant 0.000000e+00 : f32
    %305 = vector.broadcast %cst_62 : f32 to vector<8x64xf32>
    %cst_63 = arith.constant 0.000000e+00 : f32
    %306 = vector.broadcast %cst_63 : f32 to vector<8x64xf32>
    %c0_64 = arith.constant 0 : index
    %c0_65 = arith.constant 0 : index
    %307 = vector.load %arg8[%c0_64, %c0_65] : memref<64x256xf32, #tpu.memory_space<vmem>>, vector<8x256xf32>
    %cst_66 = arith.constant dense<0.000000e+00> : vector<8x256xf32>
    %308 = tpu.matmul %305, %304, %cst_66 {dimension_numbers = #tpu.dot_dimension_numbers<[1], [0], [0], [1], [0, 0, 1, 1], [], []>} : vector<8x64xf32>, vector<64x256xf32>, vector<8x256xf32> -> vector<8x256xf32>
    %309 = arith.addf %307, %308 : vector<8x256xf32>
    %310 = vector.extract_strided_slice %309 {offsets = [0, 0], sizes = [8, 64], strides = [1, 1]} : vector<8x256xf32> to vector<8x64xf32>
    %311 = arith.negf %310 : vector<8x64xf32>
    %312 = math.exp %311 : vector<8x64xf32>
    %cst_67 = arith.constant 1.000000e+00 : f32
    %313 = vector.broadcast %cst_67 : f32 to vector<8x64xf32>
    %314 = arith.addf %313, %312 : vector<8x64xf32>
    %315 = arith.divf %313, %314 : vector<8x64xf32>
    %316 = vector.extract_strided_slice %309 {offsets = [0, 64], sizes = [8, 64], strides = [1, 1]} : vector<8x256xf32> to vector<8x64xf32>
    %317 = arith.negf %316 : vector<8x64xf32>
    %318 = math.exp %317 : vector<8x64xf32>
    %cst_68 = arith.constant 1.000000e+00 : f32
    %319 = vector.broadcast %cst_68 : f32 to vector<8x64xf32>
    %320 = arith.addf %319, %318 : vector<8x64xf32>
    %321 = arith.divf %319, %320 : vector<8x64xf32>
    %322 = vector.extract_strided_slice %309 {offsets = [0, 128], sizes = [8, 64], strides = [1, 1]} : vector<8x256xf32> to vector<8x64xf32>
    %323 = math.tanh %322 : vector<8x64xf32>
    %324 = vector.extract_strided_slice %309 {offsets = [0, 192], sizes = [8, 64], strides = [1, 1]} : vector<8x256xf32> to vector<8x64xf32>
    %325 = arith.negf %324 : vector<8x64xf32>
    %326 = math.exp %325 : vector<8x64xf32>
    %cst_69 = arith.constant 1.000000e+00 : f32
    %327 = vector.broadcast %cst_69 : f32 to vector<8x64xf32>
    %328 = arith.addf %327, %326 : vector<8x64xf32>
    %329 = arith.divf %327, %328 : vector<8x64xf32>
    %330 = arith.mulf %321, %306 : vector<8x64xf32>
    %331 = arith.mulf %315, %323 : vector<8x64xf32>
    %332 = arith.addf %330, %331 : vector<8x64xf32>
    %333 = math.tanh %332 : vector<8x64xf32>
    %334 = arith.mulf %329, %333 : vector<8x64xf32>
    %c8_70 = arith.constant 8 : index
    %c0_71 = arith.constant 0 : index
    %335 = vector.load %arg8[%c8_70, %c0_71] : memref<64x256xf32, #tpu.memory_space<vmem>>, vector<8x256xf32>
    %cst_72 = arith.constant dense<0.000000e+00> : vector<8x256xf32>
    %336 = tpu.matmul %334, %304, %cst_72 {dimension_numbers = #tpu.dot_dimension_numbers<[1], [0], [0], [1], [0, 0, 1, 1], [], []>} : vector<8x64xf32>, vector<64x256xf32>, vector<8x256xf32> -> vector<8x256xf32>
    %337 = arith.addf %335, %336 : vector<8x256xf32>
    %338 = vector.extract_strided_slice %337 {offsets = [0, 0], sizes = [8, 64], strides = [1, 1]} : vector<8x256xf32> to vector<8x64xf32>
    %339 = arith.negf %338 : vector<8x64xf32>
    %340 = math.exp %339 : vector<8x64xf32>
    %cst_73 = arith.constant 1.000000e+00 : f32
    %341 = vector.broadcast %cst_73 : f32 to vector<8x64xf32>
    %342 = arith.addf %341, %340 : vector<8x64xf32>
    %343 = arith.divf %341, %342 : vector<8x64xf32>
    %344 = vector.extract_strided_slice %337 {offsets = [0, 64], sizes = [8, 64], strides = [1, 1]} : vector<8x256xf32> to vector<8x64xf32>
    %345 = arith.negf %344 : vector<8x64xf32>
    %346 = math.exp %345 : vector<8x64xf32>
    %cst_74 = arith.constant 1.000000e+00 : f32
    %347 = vector.broadcast %cst_74 : f32 to vector<8x64xf32>
    %348 = arith.addf %347, %346 : vector<8x64xf32>
    %349 = arith.divf %347, %348 : vector<8x64xf32>
    %350 = vector.extract_strided_slice %337 {offsets = [0, 128], sizes = [8, 64], strides = [1, 1]} : vector<8x256xf32> to vector<8x64xf32>
    %351 = math.tanh %350 : vector<8x64xf32>
    %352 = vector.extract_strided_slice %337 {offsets = [0, 192], sizes = [8, 64], strides = [1, 1]} : vector<8x256xf32> to vector<8x64xf32>
    %353 = arith.negf %352 : vector<8x64xf32>
    %354 = math.exp %353 : vector<8x64xf32>
    %cst_75 = arith.constant 1.000000e+00 : f32
    %355 = vector.broadcast %cst_75 : f32 to vector<8x64xf32>
    %356 = arith.addf %355, %354 : vector<8x64xf32>
    %357 = arith.divf %355, %356 : vector<8x64xf32>
    %358 = arith.mulf %349, %332 : vector<8x64xf32>
    %359 = arith.mulf %343, %351 : vector<8x64xf32>
    %360 = arith.addf %358, %359 : vector<8x64xf32>
    %361 = math.tanh %360 : vector<8x64xf32>
    %362 = arith.mulf %357, %361 : vector<8x64xf32>
    %c16_76 = arith.constant 16 : index
    %c0_77 = arith.constant 0 : index
    %363 = vector.load %arg8[%c16_76, %c0_77] : memref<64x256xf32, #tpu.memory_space<vmem>>, vector<8x256xf32>
    %cst_78 = arith.constant dense<0.000000e+00> : vector<8x256xf32>
    %364 = tpu.matmul %362, %304, %cst_78 {dimension_numbers = #tpu.dot_dimension_numbers<[1], [0], [0], [1], [0, 0, 1, 1], [], []>} : vector<8x64xf32>, vector<64x256xf32>, vector<8x256xf32> -> vector<8x256xf32>
    %365 = arith.addf %363, %364 : vector<8x256xf32>
    %366 = vector.extract_strided_slice %365 {offsets = [0, 0], sizes = [8, 64], strides = [1, 1]} : vector<8x256xf32> to vector<8x64xf32>
    %367 = arith.negf %366 : vector<8x64xf32>
    %368 = math.exp %367 : vector<8x64xf32>
    %cst_79 = arith.constant 1.000000e+00 : f32
    %369 = vector.broadcast %cst_79 : f32 to vector<8x64xf32>
    %370 = arith.addf %369, %368 : vector<8x64xf32>
    %371 = arith.divf %369, %370 : vector<8x64xf32>
    %372 = vector.extract_strided_slice %365 {offsets = [0, 64], sizes = [8, 64], strides = [1, 1]} : vector<8x256xf32> to vector<8x64xf32>
    %373 = arith.negf %372 : vector<8x64xf32>
    %374 = math.exp %373 : vector<8x64xf32>
    %cst_80 = arith.constant 1.000000e+00 : f32
    %375 = vector.broadcast %cst_80 : f32 to vector<8x64xf32>
    %376 = arith.addf %375, %374 : vector<8x64xf32>
    %377 = arith.divf %375, %376 : vector<8x64xf32>
    %378 = vector.extract_strided_slice %365 {offsets = [0, 128], sizes = [8, 64], strides = [1, 1]} : vector<8x256xf32> to vector<8x64xf32>
    %379 = math.tanh %378 : vector<8x64xf32>
    %380 = vector.extract_strided_slice %365 {offsets = [0, 192], sizes = [8, 64], strides = [1, 1]} : vector<8x256xf32> to vector<8x64xf32>
    %381 = arith.negf %380 : vector<8x64xf32>
    %382 = math.exp %381 : vector<8x64xf32>
    %cst_81 = arith.constant 1.000000e+00 : f32
    %383 = vector.broadcast %cst_81 : f32 to vector<8x64xf32>
    %384 = arith.addf %383, %382 : vector<8x64xf32>
    %385 = arith.divf %383, %384 : vector<8x64xf32>
    %386 = arith.mulf %377, %360 : vector<8x64xf32>
    %387 = arith.mulf %371, %379 : vector<8x64xf32>
    %388 = arith.addf %386, %387 : vector<8x64xf32>
    %389 = math.tanh %388 : vector<8x64xf32>
    %390 = arith.mulf %385, %389 : vector<8x64xf32>
    %c24_82 = arith.constant 24 : index
    %c0_83 = arith.constant 0 : index
    %391 = vector.load %arg8[%c24_82, %c0_83] : memref<64x256xf32, #tpu.memory_space<vmem>>, vector<8x256xf32>
    %cst_84 = arith.constant dense<0.000000e+00> : vector<8x256xf32>
    %392 = tpu.matmul %390, %304, %cst_84 {dimension_numbers = #tpu.dot_dimension_numbers<[1], [0], [0], [1], [0, 0, 1, 1], [], []>} : vector<8x64xf32>, vector<64x256xf32>, vector<8x256xf32> -> vector<8x256xf32>
    %393 = arith.addf %391, %392 : vector<8x256xf32>
    %394 = vector.extract_strided_slice %393 {offsets = [0, 0], sizes = [8, 64], strides = [1, 1]} : vector<8x256xf32> to vector<8x64xf32>
    %395 = arith.negf %394 : vector<8x64xf32>
    %396 = math.exp %395 : vector<8x64xf32>
    %cst_85 = arith.constant 1.000000e+00 : f32
    %397 = vector.broadcast %cst_85 : f32 to vector<8x64xf32>
    %398 = arith.addf %397, %396 : vector<8x64xf32>
    %399 = arith.divf %397, %398 : vector<8x64xf32>
    %400 = vector.extract_strided_slice %393 {offsets = [0, 64], sizes = [8, 64], strides = [1, 1]} : vector<8x256xf32> to vector<8x64xf32>
    %401 = arith.negf %400 : vector<8x64xf32>
    %402 = math.exp %401 : vector<8x64xf32>
    %cst_86 = arith.constant 1.000000e+00 : f32
    %403 = vector.broadcast %cst_86 : f32 to vector<8x64xf32>
    %404 = arith.addf %403, %402 : vector<8x64xf32>
    %405 = arith.divf %403, %404 : vector<8x64xf32>
    %406 = vector.extract_strided_slice %393 {offsets = [0, 128], sizes = [8, 64], strides = [1, 1]} : vector<8x256xf32> to vector<8x64xf32>
    %407 = math.tanh %406 : vector<8x64xf32>
    %408 = vector.extract_strided_slice %393 {offsets = [0, 192], sizes = [8, 64], strides = [1, 1]} : vector<8x256xf32> to vector<8x64xf32>
    %409 = arith.negf %408 : vector<8x64xf32>
    %410 = math.exp %409 : vector<8x64xf32>
    %cst_87 = arith.constant 1.000000e+00 : f32
    %411 = vector.broadcast %cst_87 : f32 to vector<8x64xf32>
    %412 = arith.addf %411, %410 : vector<8x64xf32>
    %413 = arith.divf %411, %412 : vector<8x64xf32>
    %414 = arith.mulf %405, %388 : vector<8x64xf32>
    %415 = arith.mulf %399, %407 : vector<8x64xf32>
    %416 = arith.addf %414, %415 : vector<8x64xf32>
    %417 = math.tanh %416 : vector<8x64xf32>
    %418 = arith.mulf %413, %417 : vector<8x64xf32>
    %c32_88 = arith.constant 32 : index
    %c0_89 = arith.constant 0 : index
    %419 = vector.load %arg8[%c32_88, %c0_89] : memref<64x256xf32, #tpu.memory_space<vmem>>, vector<8x256xf32>
    %cst_90 = arith.constant dense<0.000000e+00> : vector<8x256xf32>
    %420 = tpu.matmul %418, %304, %cst_90 {dimension_numbers = #tpu.dot_dimension_numbers<[1], [0], [0], [1], [0, 0, 1, 1], [], []>} : vector<8x64xf32>, vector<64x256xf32>, vector<8x256xf32> -> vector<8x256xf32>
    %421 = arith.addf %419, %420 : vector<8x256xf32>
    %422 = vector.extract_strided_slice %421 {offsets = [0, 0], sizes = [8, 64], strides = [1, 1]} : vector<8x256xf32> to vector<8x64xf32>
    %423 = arith.negf %422 : vector<8x64xf32>
    %424 = math.exp %423 : vector<8x64xf32>
    %cst_91 = arith.constant 1.000000e+00 : f32
    %425 = vector.broadcast %cst_91 : f32 to vector<8x64xf32>
    %426 = arith.addf %425, %424 : vector<8x64xf32>
    %427 = arith.divf %425, %426 : vector<8x64xf32>
    %428 = vector.extract_strided_slice %421 {offsets = [0, 64], sizes = [8, 64], strides = [1, 1]} : vector<8x256xf32> to vector<8x64xf32>
    %429 = arith.negf %428 : vector<8x64xf32>
    %430 = math.exp %429 : vector<8x64xf32>
    %cst_92 = arith.constant 1.000000e+00 : f32
    %431 = vector.broadcast %cst_92 : f32 to vector<8x64xf32>
    %432 = arith.addf %431, %430 : vector<8x64xf32>
    %433 = arith.divf %431, %432 : vector<8x64xf32>
    %434 = vector.extract_strided_slice %421 {offsets = [0, 128], sizes = [8, 64], strides = [1, 1]} : vector<8x256xf32> to vector<8x64xf32>
    %435 = math.tanh %434 : vector<8x64xf32>
    %436 = vector.extract_strided_slice %421 {offsets = [0, 192], sizes = [8, 64], strides = [1, 1]} : vector<8x256xf32> to vector<8x64xf32>
    %437 = arith.negf %436 : vector<8x64xf32>
    %438 = math.exp %437 : vector<8x64xf32>
    %cst_93 = arith.constant 1.000000e+00 : f32
    %439 = vector.broadcast %cst_93 : f32 to vector<8x64xf32>
    %440 = arith.addf %439, %438 : vector<8x64xf32>
    %441 = arith.divf %439, %440 : vector<8x64xf32>
    %442 = arith.mulf %433, %416 : vector<8x64xf32>
    %443 = arith.mulf %427, %435 : vector<8x64xf32>
    %444 = arith.addf %442, %443 : vector<8x64xf32>
    %445 = math.tanh %444 : vector<8x64xf32>
    %446 = arith.mulf %441, %445 : vector<8x64xf32>
    %c40_94 = arith.constant 40 : index
    %c0_95 = arith.constant 0 : index
    %447 = vector.load %arg8[%c40_94, %c0_95] : memref<64x256xf32, #tpu.memory_space<vmem>>, vector<8x256xf32>
    %cst_96 = arith.constant dense<0.000000e+00> : vector<8x256xf32>
    %448 = tpu.matmul %446, %304, %cst_96 {dimension_numbers = #tpu.dot_dimension_numbers<[1], [0], [0], [1], [0, 0, 1, 1], [], []>} : vector<8x64xf32>, vector<64x256xf32>, vector<8x256xf32> -> vector<8x256xf32>
    %449 = arith.addf %447, %448 : vector<8x256xf32>
    %450 = vector.extract_strided_slice %449 {offsets = [0, 0], sizes = [8, 64], strides = [1, 1]} : vector<8x256xf32> to vector<8x64xf32>
    %451 = arith.negf %450 : vector<8x64xf32>
    %452 = math.exp %451 : vector<8x64xf32>
    %cst_97 = arith.constant 1.000000e+00 : f32
    %453 = vector.broadcast %cst_97 : f32 to vector<8x64xf32>
    %454 = arith.addf %453, %452 : vector<8x64xf32>
    %455 = arith.divf %453, %454 : vector<8x64xf32>
    %456 = vector.extract_strided_slice %449 {offsets = [0, 64], sizes = [8, 64], strides = [1, 1]} : vector<8x256xf32> to vector<8x64xf32>
    %457 = arith.negf %456 : vector<8x64xf32>
    %458 = math.exp %457 : vector<8x64xf32>
    %cst_98 = arith.constant 1.000000e+00 : f32
    %459 = vector.broadcast %cst_98 : f32 to vector<8x64xf32>
    %460 = arith.addf %459, %458 : vector<8x64xf32>
    %461 = arith.divf %459, %460 : vector<8x64xf32>
    %462 = vector.extract_strided_slice %449 {offsets = [0, 128], sizes = [8, 64], strides = [1, 1]} : vector<8x256xf32> to vector<8x64xf32>
    %463 = math.tanh %462 : vector<8x64xf32>
    %464 = vector.extract_strided_slice %449 {offsets = [0, 192], sizes = [8, 64], strides = [1, 1]} : vector<8x256xf32> to vector<8x64xf32>
    %465 = arith.negf %464 : vector<8x64xf32>
    %466 = math.exp %465 : vector<8x64xf32>
    %cst_99 = arith.constant 1.000000e+00 : f32
    %467 = vector.broadcast %cst_99 : f32 to vector<8x64xf32>
    %468 = arith.addf %467, %466 : vector<8x64xf32>
    %469 = arith.divf %467, %468 : vector<8x64xf32>
    %470 = arith.mulf %461, %444 : vector<8x64xf32>
    %471 = arith.mulf %455, %463 : vector<8x64xf32>
    %472 = arith.addf %470, %471 : vector<8x64xf32>
    %473 = math.tanh %472 : vector<8x64xf32>
    %474 = arith.mulf %469, %473 : vector<8x64xf32>
    %c48_100 = arith.constant 48 : index
    %c0_101 = arith.constant 0 : index
    %475 = vector.load %arg8[%c48_100, %c0_101] : memref<64x256xf32, #tpu.memory_space<vmem>>, vector<8x256xf32>
    %cst_102 = arith.constant dense<0.000000e+00> : vector<8x256xf32>
    %476 = tpu.matmul %474, %304, %cst_102 {dimension_numbers = #tpu.dot_dimension_numbers<[1], [0], [0], [1], [0, 0, 1, 1], [], []>} : vector<8x64xf32>, vector<64x256xf32>, vector<8x256xf32> -> vector<8x256xf32>
    %477 = arith.addf %475, %476 : vector<8x256xf32>
    %478 = vector.extract_strided_slice %477 {offsets = [0, 0], sizes = [8, 64], strides = [1, 1]} : vector<8x256xf32> to vector<8x64xf32>
    %479 = arith.negf %478 : vector<8x64xf32>
    %480 = math.exp %479 : vector<8x64xf32>
    %cst_103 = arith.constant 1.000000e+00 : f32
    %481 = vector.broadcast %cst_103 : f32 to vector<8x64xf32>
    %482 = arith.addf %481, %480 : vector<8x64xf32>
    %483 = arith.divf %481, %482 : vector<8x64xf32>
    %484 = vector.extract_strided_slice %477 {offsets = [0, 64], sizes = [8, 64], strides = [1, 1]} : vector<8x256xf32> to vector<8x64xf32>
    %485 = arith.negf %484 : vector<8x64xf32>
    %486 = math.exp %485 : vector<8x64xf32>
    %cst_104 = arith.constant 1.000000e+00 : f32
    %487 = vector.broadcast %cst_104 : f32 to vector<8x64xf32>
    %488 = arith.addf %487, %486 : vector<8x64xf32>
    %489 = arith.divf %487, %488 : vector<8x64xf32>
    %490 = vector.extract_strided_slice %477 {offsets = [0, 128], sizes = [8, 64], strides = [1, 1]} : vector<8x256xf32> to vector<8x64xf32>
    %491 = math.tanh %490 : vector<8x64xf32>
    %492 = vector.extract_strided_slice %477 {offsets = [0, 192], sizes = [8, 64], strides = [1, 1]} : vector<8x256xf32> to vector<8x64xf32>
    %493 = arith.negf %492 : vector<8x64xf32>
    %494 = math.exp %493 : vector<8x64xf32>
    %cst_105 = arith.constant 1.000000e+00 : f32
    %495 = vector.broadcast %cst_105 : f32 to vector<8x64xf32>
    %496 = arith.addf %495, %494 : vector<8x64xf32>
    %497 = arith.divf %495, %496 : vector<8x64xf32>
    %498 = arith.mulf %489, %472 : vector<8x64xf32>
    %499 = arith.mulf %483, %491 : vector<8x64xf32>
    %500 = arith.addf %498, %499 : vector<8x64xf32>
    %501 = math.tanh %500 : vector<8x64xf32>
    %502 = arith.mulf %497, %501 : vector<8x64xf32>
    %c56_106 = arith.constant 56 : index
    %c0_107 = arith.constant 0 : index
    %503 = vector.load %arg8[%c56_106, %c0_107] : memref<64x256xf32, #tpu.memory_space<vmem>>, vector<8x256xf32>
    %cst_108 = arith.constant dense<0.000000e+00> : vector<8x256xf32>
    %504 = tpu.matmul %502, %304, %cst_108 {dimension_numbers = #tpu.dot_dimension_numbers<[1], [0], [0], [1], [0, 0, 1, 1], [], []>} : vector<8x64xf32>, vector<64x256xf32>, vector<8x256xf32> -> vector<8x256xf32>
    %505 = arith.addf %503, %504 : vector<8x256xf32>
    %506 = vector.extract_strided_slice %505 {offsets = [0, 0], sizes = [8, 64], strides = [1, 1]} : vector<8x256xf32> to vector<8x64xf32>
    %507 = arith.negf %506 : vector<8x64xf32>
    %508 = math.exp %507 : vector<8x64xf32>
    %cst_109 = arith.constant 1.000000e+00 : f32
    %509 = vector.broadcast %cst_109 : f32 to vector<8x64xf32>
    %510 = arith.addf %509, %508 : vector<8x64xf32>
    %511 = arith.divf %509, %510 : vector<8x64xf32>
    %512 = vector.extract_strided_slice %505 {offsets = [0, 64], sizes = [8, 64], strides = [1, 1]} : vector<8x256xf32> to vector<8x64xf32>
    %513 = arith.negf %512 : vector<8x64xf32>
    %514 = math.exp %513 : vector<8x64xf32>
    %cst_110 = arith.constant 1.000000e+00 : f32
    %515 = vector.broadcast %cst_110 : f32 to vector<8x64xf32>
    %516 = arith.addf %515, %514 : vector<8x64xf32>
    %517 = arith.divf %515, %516 : vector<8x64xf32>
    %518 = vector.extract_strided_slice %505 {offsets = [0, 128], sizes = [8, 64], strides = [1, 1]} : vector<8x256xf32> to vector<8x64xf32>
    %519 = math.tanh %518 : vector<8x64xf32>
    %520 = vector.extract_strided_slice %505 {offsets = [0, 192], sizes = [8, 64], strides = [1, 1]} : vector<8x256xf32> to vector<8x64xf32>
    %521 = arith.negf %520 : vector<8x64xf32>
    %522 = math.exp %521 : vector<8x64xf32>
    %cst_111 = arith.constant 1.000000e+00 : f32
    %523 = vector.broadcast %cst_111 : f32 to vector<8x64xf32>
    %524 = arith.addf %523, %522 : vector<8x64xf32>
    %525 = arith.divf %523, %524 : vector<8x64xf32>
    %526 = arith.mulf %517, %500 : vector<8x64xf32>
    %527 = arith.mulf %511, %519 : vector<8x64xf32>
    %528 = arith.addf %526, %527 : vector<8x64xf32>
    %529 = math.tanh %528 : vector<8x64xf32>
    %530 = arith.mulf %525, %529 : vector<8x64xf32>
    %531 = vector.extract_strided_slice %334 {offsets = [0, 0], sizes = [8, 32], strides = [1, 1]} : vector<8x64xf32> to vector<8x32xf32>
    %532 = vector.extract_strided_slice %530 {offsets = [0, 32], sizes = [8, 32], strides = [1, 1]} : vector<8x64xf32> to vector<8x32xf32>
    %533 = tpu.concatenate %531, %532 in 1 : vector<8x32xf32>, vector<8x32xf32> -> vector<8x64xf32>
    %534 = vector.extract_strided_slice %362 {offsets = [0, 0], sizes = [8, 32], strides = [1, 1]} : vector<8x64xf32> to vector<8x32xf32>
    %535 = vector.extract_strided_slice %502 {offsets = [0, 32], sizes = [8, 32], strides = [1, 1]} : vector<8x64xf32> to vector<8x32xf32>
    %536 = tpu.concatenate %534, %535 in 1 : vector<8x32xf32>, vector<8x32xf32> -> vector<8x64xf32>
    %537 = vector.extract_strided_slice %390 {offsets = [0, 0], sizes = [8, 32], strides = [1, 1]} : vector<8x64xf32> to vector<8x32xf32>
    %538 = vector.extract_strided_slice %474 {offsets = [0, 32], sizes = [8, 32], strides = [1, 1]} : vector<8x64xf32> to vector<8x32xf32>
    %539 = tpu.concatenate %537, %538 in 1 : vector<8x32xf32>, vector<8x32xf32> -> vector<8x64xf32>
    %540 = vector.extract_strided_slice %418 {offsets = [0, 0], sizes = [8, 32], strides = [1, 1]} : vector<8x64xf32> to vector<8x32xf32>
    %541 = vector.extract_strided_slice %446 {offsets = [0, 32], sizes = [8, 32], strides = [1, 1]} : vector<8x64xf32> to vector<8x32xf32>
    %542 = tpu.concatenate %540, %541 in 1 : vector<8x32xf32>, vector<8x32xf32> -> vector<8x64xf32>
    %543 = vector.extract_strided_slice %446 {offsets = [0, 0], sizes = [8, 32], strides = [1, 1]} : vector<8x64xf32> to vector<8x32xf32>
    %544 = vector.extract_strided_slice %418 {offsets = [0, 32], sizes = [8, 32], strides = [1, 1]} : vector<8x64xf32> to vector<8x32xf32>
    %545 = tpu.concatenate %543, %544 in 1 : vector<8x32xf32>, vector<8x32xf32> -> vector<8x64xf32>
    %546 = vector.extract_strided_slice %474 {offsets = [0, 0], sizes = [8, 32], strides = [1, 1]} : vector<8x64xf32> to vector<8x32xf32>
    %547 = vector.extract_strided_slice %390 {offsets = [0, 32], sizes = [8, 32], strides = [1, 1]} : vector<8x64xf32> to vector<8x32xf32>
    %548 = tpu.concatenate %546, %547 in 1 : vector<8x32xf32>, vector<8x32xf32> -> vector<8x64xf32>
    %549 = vector.extract_strided_slice %502 {offsets = [0, 0], sizes = [8, 32], strides = [1, 1]} : vector<8x64xf32> to vector<8x32xf32>
    %550 = vector.extract_strided_slice %362 {offsets = [0, 32], sizes = [8, 32], strides = [1, 1]} : vector<8x64xf32> to vector<8x32xf32>
    %551 = tpu.concatenate %549, %550 in 1 : vector<8x32xf32>, vector<8x32xf32> -> vector<8x64xf32>
    %552 = vector.extract_strided_slice %530 {offsets = [0, 0], sizes = [8, 32], strides = [1, 1]} : vector<8x64xf32> to vector<8x32xf32>
    %553 = vector.extract_strided_slice %334 {offsets = [0, 32], sizes = [8, 32], strides = [1, 1]} : vector<8x64xf32> to vector<8x32xf32>
    %554 = tpu.concatenate %552, %553 in 1 : vector<8x32xf32>, vector<8x32xf32> -> vector<8x64xf32>
    %555 = tpu.concatenate %533, %536, %539, %542, %545, %548, %551, %554 in 0 : vector<8x64xf32>, vector<8x64xf32>, vector<8x64xf32>, vector<8x64xf32>, vector<8x64xf32>, vector<8x64xf32>, vector<8x64xf32>, vector<8x64xf32> -> vector<64x64xf32>
    %c0_112 = arith.constant 0 : index
    %c0_113 = arith.constant 0 : index
    %556 = vector.load %arg6[%c0_112, %c0_113] : memref<160x64xf32, #tpu.memory_space<vmem>>, vector<64x64xf32>
    %c64 = arith.constant 64 : index
    %c0_114 = arith.constant 0 : index
    %557 = vector.load %arg6[%c64, %c0_114] : memref<160x64xf32, #tpu.memory_space<vmem>>, vector<64x32xf32>
    %c128 = arith.constant 128 : index
    %c0_115 = arith.constant 0 : index
    %558 = vector.load %arg6[%c128, %c0_115] : memref<160x64xf32, #tpu.memory_space<vmem>>, vector<32x2xf32>
    %559 = vector.extract_strided_slice %19 {offsets = [3, 0], sizes = [1, 256], strides = [1, 1]} : vector<4x256xf32> to vector<1x256xf32>
    %560 = vector.extract_strided_slice %559 {offsets = [0, 0], sizes = [1, 64], strides = [1, 1]} : vector<1x256xf32> to vector<1x64xf32>
    %561 = vector.extract_strided_slice %559 {offsets = [0, 64], sizes = [1, 32], strides = [1, 1]} : vector<1x256xf32> to vector<1x32xf32>
    %562 = vector.extract_strided_slice %559 {offsets = [0, 96], sizes = [1, 2], strides = [1, 1]} : vector<1x256xf32> to vector<1x2xf32>
    %cst_116 = arith.constant dense<0.000000e+00> : vector<64x64xf32>
    %563 = tpu.matmul %555, %556, %cst_116 {dimension_numbers = #tpu.dot_dimension_numbers<[1], [0], [0], [1], [0, 0, 1, 1], [], []>} : vector<64x64xf32>, vector<64x64xf32>, vector<64x64xf32> -> vector<64x64xf32>
    %564 = vector.broadcast %560 : vector<1x64xf32> to vector<64x64xf32>
    %565 = arith.addf %563, %564 : vector<64x64xf32>
    %cst_117 = arith.constant 0.000000e+00 : f32
    %566 = vector.broadcast %cst_117 : f32 to vector<64x64xf32>
    %567 = arith.maximumf %565, %566 : vector<64x64xf32>
    %cst_118 = arith.constant dense<0.000000e+00> : vector<64x32xf32>
    %568 = tpu.matmul %567, %557, %cst_118 {dimension_numbers = #tpu.dot_dimension_numbers<[1], [0], [0], [1], [0, 0, 1, 1], [], []>} : vector<64x64xf32>, vector<64x32xf32>, vector<64x32xf32> -> vector<64x32xf32>
    %569 = vector.broadcast %561 : vector<1x32xf32> to vector<64x32xf32>
    %570 = arith.addf %568, %569 : vector<64x32xf32>
    %cst_119 = arith.constant 0.000000e+00 : f32
    %571 = vector.broadcast %cst_119 : f32 to vector<64x32xf32>
    %572 = arith.maximumf %570, %571 : vector<64x32xf32>
    %cst_120 = arith.constant dense<0.000000e+00> : vector<64x2xf32>
    %573 = tpu.matmul %572, %558, %cst_120 {dimension_numbers = #tpu.dot_dimension_numbers<[1], [0], [0], [1], [0, 0, 1, 1], [], []>} : vector<64x32xf32>, vector<32x2xf32>, vector<64x2xf32> -> vector<64x2xf32>
    %574 = vector.broadcast %562 : vector<1x2xf32> to vector<64x2xf32>
    %575 = arith.addf %573, %574 : vector<64x2xf32>
    %576 = tpu.iota {dimensions = array<i32: 1>} : vector<64x2xi32>
    %c0_i32_121 = arith.constant 0 : i32
    %577 = vector.broadcast %c0_i32_121 : i32 to vector<64x2xi32>
    %578 = arith.cmpi eq, %576, %577 : vector<64x2xi32>
    %cst_122 = arith.constant 5.000000e-01 : f32
    %579 = vector.broadcast %cst_122 : f32 to vector<64x2xf32>
    %580 = arith.mulf %579, %575 : vector<64x2xf32>
    %581 = math.exp %580 : vector<64x2xf32>
    %582 = arith.select %578, %575, %581 : vector<64x2xi1>, vector<64x2xf32>
    %c0_123 = arith.constant 0 : index
    %c0_124 = arith.constant 0 : index
    %583 = vector.load %arg7[%c0_123, %c0_124] : memref<64x2xf32, #tpu.memory_space<vmem>>, vector<64x2xf32>
    tpu.vector_store %arg7[%c0_123, %c0_124], %582 {strides = array<i32>} : memref<64x2xf32, #tpu.memory_space<vmem>>, vector<64x2xf32>,
    return
  }
  func.func @transform_0(%arg0: i32) -> (i32, i32) {
    %c0_i32 = arith.constant 0 : i32
    %c0_i32_0 = arith.constant 0 : i32
    %c0_i32_1 = arith.constant 0 : i32
    return %c0_i32, %c0_i32_0 : i32, i32
  }
  func.func @transform_1(%arg0: i32) -> (i32, i32) {
    %c0_i32 = arith.constant 0 : i32
    %c0_i32_0 = arith.constant 0 : i32
    %c0_i32_1 = arith.constant 0 : i32
    return %c0_i32, %c0_i32_0 : i32, i32
  }
  func.func @transform_2(%arg0: i32) -> (i32, i32) {
    %c0_i32 = arith.constant 0 : i32
    %c0_i32_0 = arith.constant 0 : i32
    %c0_i32_1 = arith.constant 0 : i32
    return %c0_i32, %c0_i32_0 : i32, i32
  }
  func.func @transform_3(%arg0: i32) -> (i32, i32) {
    %c0_i32 = arith.constant 0 : i32
    %c0_i32_0 = arith.constant 0 : i32
    %c0_i32_1 = arith.constant 0 : i32
    return %c0_i32, %c0_i32_0 : i32, i32
  }
  func.func @transform_4(%arg0: i32) -> (i32, i32) {
    %c0_i32 = arith.constant 0 : i32
    %c0_i32_0 = arith.constant 0 : i32
    %c0_i32_1 = arith.constant 0 : i32
    return %c0_i32, %c0_i32_0 : i32, i32
  }
  func.func @transform_5(%arg0: i32) -> (i32, i32) {
    %c0_i32 = arith.constant 0 : i32
    %c0_i32_0 = arith.constant 0 : i32
    %c0_i32_1 = arith.constant 0 : i32
    return %c0_i32, %c0_i32_0 : i32, i32
  }
  func.func @transform_6(%arg0: i32) -> (i32, i32) {
    %c0_i32 = arith.constant 0 : i32
    %c0_i32_0 = arith.constant 0 : i32
    %c0_i32_1 = arith.constant 0 : i32
    return %c0_i32, %c0_i32_0 : i32, i32
  }
}

</mosaic_0001>

<llo_original>
// kernel: variational_bilstm_forward.1
$region0: #{variational_bilstm_forward.1}
  #allocation0 [shape = 'u32[]', space=smem, size = 0x4, offset = 0x4, fixed_abs, tag = 'smem constant byte address 0x4 - core index']
  #allocation1 [shape = 'u32[144,128]{1,0:T(1,128)}', space=vmem, size = 0x12000, scoped, tag = 'internal scratch']
  #allocation2 [shape = 'f32[64,256]{1,0:T(8,128)}', space=vmem, size = 0x10000, scoped, tag = 'scratch operand']
  %s0 = inlined_call_operand.vmem [shape: f32[64,2], index: 0, kind: input, shape index: {}]
  %s1 = inlined_call_operand.vmem [shape: f32[4,256], index: 1, kind: input, shape index: {}]
  %s2 = inlined_call_operand.vmem [shape: f32[64,256], index: 2, kind: input, shape index: {}]
  %s3 = inlined_call_operand.vmem [shape: f32[64,256], index: 3, kind: input, shape index: {}]
  %s4 = inlined_call_operand.hbm [shape: f32[64,256], index: 4, kind: input, shape index: {}]
  %s5 = inlined_call_operand.vmem [shape: f32[160,64], index: 5, kind: input, shape index: {}]
  %s6 = inlined_call_operand.vmem [shape: f32[64,2], index: 6, kind: output, shape index: {}]
  %s7 = sld [smem:[#allocation0]]
  $region38: #{variational_bilstm_forward.1} parent=0
    _
  %s9 = ssub.s32 1, %s7
  %s10 = scalar_select 0, %s9, %s7
  $region1: #{variational_bilstm_forward.1} parent=0
    #allocation3 [shape = 'u8[65536]{0}', space=vmem, size = 0x10000, scoped, tag = 'input window, operand 4, single buffered']
    #allocation4 [shape = 's32[1]{0}', space=sflag, size = 0x4, scoped, tag = 'scoped memory for variational_bilstm_forward.1']
    %11 = vsyncpa [#allocation4], 0
    // Predicated region
    $region2: #{variational_bilstm_forward.1} parent=1 // pred_check
      _
    $region3: #{variational_bilstm_forward.1} parent=1 // pred_check_branch
      %13 = sbr.rel (0) target = $region5
    $region4: #{variational_bilstm_forward.1} parent=1 // pred_region
      _
    $region5: #{variational_bilstm_forward.1} parent=1 // pred_fallthru
      _
    // Predicated region
    $region6: #{variational_bilstm_forward.1} parent=1 // pred_check
      _
    $region7: #{variational_bilstm_forward.1} parent=1 // pred_check_branch
      %15 = sbr.rel (0) target = $region9
    $region8: #{variational_bilstm_forward.1} parent=1 // pred_region
      _
    $region9: #{variational_bilstm_forward.1} parent=1 // pred_fallthru
      _
    // Predicated region
    $region10: #{variational_bilstm_forward.1} parent=1 // pred_check
      _
    $region11: #{variational_bilstm_forward.1} parent=1 // pred_check_branch
      %17 = sbr.rel (0) target = $region13
    $region12: #{variational_bilstm_forward.1} parent=1 // pred_region
      _
    $region13: #{variational_bilstm_forward.1} parent=1 // pred_fallthru
      _
    // Predicated region
    $region14: #{variational_bilstm_forward.1} parent=1 // pred_check
      _
    $region15: #{variational_bilstm_forward.1} parent=1 // pred_check_branch
      %19 = sbr.rel (0) target = $region17
    $region16: #{variational_bilstm_forward.1} parent=1 // pred_region
      _
    $region17: #{variational_bilstm_forward.1} parent=1 // pred_fallthru
      _
    // Predicated region
    $region18: #{variational_bilstm_forward.1} parent=1 // pred_check
      _
    $region19: #{variational_bilstm_forward.1} parent=1 // pred_check_branch
      %21 = sbr.rel (0) target = $region21
    $region20: #{variational_bilstm_forward.1} parent=1 // pred_region
      %s23 = ssub.s32 2048, 2048
      %24 = vsyncadd [#allocation4], %s23
      %s25 = sshll.u32 [#allocation3], 4
      %s26 = int_to_ptr.vmem [resolvable:$true] %s25
      %31 = dma.hbm_to_vmem [thread:$0]  %s4, 2048, %s26, [#allocation4], 256, 256, 16
    $region21: #{variational_bilstm_forward.1} parent=1 // pred_fallthru
      _
    // Predicated region
    $region22: #{variational_bilstm_forward.1} parent=1 // pred_check
      _
    $region23: #{variational_bilstm_forward.1} parent=1 // pred_check_branch
      %33 = sbr.rel (0) target = $region25
    $region24: #{variational_bilstm_forward.1} parent=1 // pred_region
      _
    $region25: #{variational_bilstm_forward.1} parent=1 // pred_fallthru
      _
    // Predicated region
    $region26: #{variational_bilstm_forward.1} parent=1 // pred_check
      _
    $region27: #{variational_bilstm_forward.1} parent=1 // pred_check_branch
      %35 = sbr.rel (0) target = $region29
    $region28: #{variational_bilstm_forward.1} parent=1 // pred_region
      %36 = dma.done [#allocation4], 2048
    $region29: #{variational_bilstm_forward.1} parent=1 // pred_fallthru
      _
    %v37 = vlaneseq
    %v38 = vand.u32 %v37, 127
    %v39 = vadd.s32 %v38, 128
    %vm40 = vcmp.lt.s32.totalorder %v38, 0
    %v41 = vsub.s32 0, %v38
    %v42 = vsel %vm40, %v41, %v38
    %v43 = vshrl.u32 %v42, 6
    %v44 = vand.u32 %v42, 63
    %v45 = vsub.s32 0, %v44
    %v46 = vsel %vm40, %v45, %v44
    %vm47 = vcmp.lt.s32.totalorder %v39, 0
    %v48 = vsub.s32 0, %v39
    %v49 = vsel %vm47, %v48, %v39
    %v50 = vshrl.u32 %v49, 6
    %v51 = vand.u32 %v49, 63
    %v52 = vsub.s32 0, %v51
    %v53 = vsel %vm47, %v52, %v51
    %vm54 = vcmp.ne.s32.totalorder %v46, 0
    %vm55 = vcmp.ne.s32.totalorder %v53, 0
    %vm56 = vcmp.lt.s32.totalorder %v46, 0
    %vm57 = vcmp.lt.s32.totalorder %v53, 0
    %vm58 = vmand %vm56, %vm54
    %vm59 = vmand %vm57, %vm55
    %v60 = vadd.s32 %v46, 64
    %v61 = vadd.s32 %v53, 64
    %v62 = vsel %vm58, %v60, %v46
    %v63 = vsel %vm59, %v61, %v53
    %vm64 = vcmp.lt.s32.totalorder %v62, 32
    %vm65 = vcmp.lt.s32.totalorder %v63, 32
    %v66 = vld [vmem:[%s1] sm:$0xff]
    %v67 = vld [vmem:[%s0] sm:$0xff]
    %v68 = vld [vmem:[%s0 + $0x8] sm:$0xff]
    %v69 = vld [vmem:[%s0 + $0x10] sm:$0xff]
    %v70 = vld [vmem:[%s0 + $0x18] sm:$0xff]
    %v71 = vld [vmem:[%s0 + $0x20] sm:$0xff]
    %v72 = vld [vmem:[%s0 + $0x28] sm:$0xff]
    %v73 = vld [vmem:[%s0 + $0x30] sm:$0xff]
    %v74 = vld [vmem:[%s0 + $0x38] sm:$0xff]
    %v76 = vlaneseq
    %v77 = vshrl.u32 %v76, 7
    %v78 = vsub.s32 0, %v77
    %v79 = vrot.slane %v66, %v78
    %v80 = vlaneseq
    %v81 = vshrl.u32 %v80, 7
    %v82 = vsub.s32 4, %v81
    %v83 = vrot.slane %v66, %v82
    %v86 = vsel %vm64, %v79, 0.0
    %v87 = vsel %vm65, %v83, 0.0
    %v90 = vcombine.low %v86, %v87
    %v92 = vsub.f32 %v66, %v90
    %94 = vset.pattern.permute.xlu0 0
    %95 = vperm.xlu0 %94, %v67
    %v96 = vpop.permute.xlu0 %95
    %99 = vset.pattern.permute.xlu0 0
    %100 = vperm.xlu0 %99, %v68
    %v101 = vpop.permute.xlu0 %100
    %104 = vset.pattern.permute.xlu0 0
    %105 = vperm.xlu0 %104, %v69
    %v106 = vpop.permute.xlu0 %105
    %109 = vset.pattern.permute.xlu0 0
    %110 = vperm.xlu0 %109, %v70
    %v111 = vpop.permute.xlu0 %110
    %114 = vset.pattern.permute.xlu0 0
    %115 = vperm.xlu0 %114, %v71
    %v116 = vpop.permute.xlu0 %115
    %119 = vset.pattern.permute.xlu0 0
    %120 = vperm.xlu0 %119, %v72
    %v121 = vpop.permute.xlu0 %120
    %124 = vset.pattern.permute.xlu0 0
    %125 = vperm.xlu0 %124, %v73
    %v126 = vpop.permute.xlu0 %125
    %129 = vset.pattern.permute.xlu0 0
    %130 = vperm.xlu0 %129, %v74
    %v131 = vpop.permute.xlu0 %130
    %v133 = vlaneseq
    %v134 = vshrl.u32 %v133, 7
    %v135 = vsub.s32 0, %v134
    %v136 = vrot.slane %v86, %v135
    %v137 = vlaneseq
    %v138 = vshrl.u32 %v137, 7
    %v139 = vsub.s32 0, %v138
    %v140 = vrot.slane %v87, %v139
    %v141 = vmul.f32 %v96, %v136
    %v142 = vmul.f32 %v96, %v140
    %v143 = vmul.f32 %v101, %v136
    %v144 = vmul.f32 %v101, %v140
    %v145 = vmul.f32 %v106, %v136
    %v146 = vmul.f32 %v106, %v140
    %v147 = vmul.f32 %v111, %v136
    %v148 = vmul.f32 %v111, %v140
    %v149 = vmul.f32 %v116, %v136
    %v150 = vmul.f32 %v116, %v140
    %v151 = vmul.f32 %v121, %v136
    %v152 = vmul.f32 %v121, %v140
    %v153 = vmul.f32 %v126, %v136
    %v154 = vmul.f32 %v126, %v140
    %v155 = vmul.f32 %v131, %v136
    %v156 = vmul.f32 %v131, %v140
    %157 = vset.pattern.permute.xlu0 1
    %158 = vperm.xlu0 %157, %v67
    %v159 = vpop.permute.xlu0 %158
    %161 = vset.pattern.permute.xlu0 1
    %162 = vperm.xlu0 %161, %v68
    %v163 = vpop.permute.xlu0 %162
    %165 = vset.pattern.permute.xlu0 1
    %166 = vperm.xlu0 %165, %v69
    %v167 = vpop.permute.xlu0 %166
    %169 = vset.pattern.permute.xlu0 1
    %170 = vperm.xlu0 %169, %v70
    %v171 = vpop.permute.xlu0 %170
    %173 = vset.pattern.permute.xlu0 1
    %174 = vperm.xlu0 %173, %v71
    %v175 = vpop.permute.xlu0 %174
    %177 = vset.pattern.permute.xlu0 1
    %178 = vperm.xlu0 %177, %v72
    %v179 = vpop.permute.xlu0 %178
    %181 = vset.pattern.permute.xlu0 1
    %182 = vperm.xlu0 %181, %v73
    %v183 = vpop.permute.xlu0 %182
    %185 = vset.pattern.permute.xlu0 1
    %186 = vperm.xlu0 %185, %v74
    %v187 = vpop.permute.xlu0 %186
    %v190 = vlaneseq
    %v191 = vshrl.u32 %v190, 7
    %v192 = vsub.s32 0, %v191
    %v193 = vrot.slane %v92, %v192
    %v194 = vlaneseq
    %v195 = vshrl.u32 %v194, 7
    %v196 = vsub.s32 4, %v195
    %v197 = vrot.slane %v92, %v196
    %v200 = vlaneseq
    %v201 = vshrl.u32 %v200, 7
    %v202 = vsub.s32 0, %v201
    %v203 = vrot.slane %v193, %v202
    %v204 = vlaneseq
    %v205 = vshrl.u32 %v204, 7
    %v206 = vsub.s32 0, %v205
    %v207 = vrot.slane %v197, %v206
    %v208 = vmul.f32 %v159, %v203
    %v209 = vmul.f32 %v159, %v207
    %v210 = vmul.f32 %v163, %v203
    %v211 = vmul.f32 %v163, %v207
    %v212 = vmul.f32 %v167, %v203
    %v213 = vmul.f32 %v167, %v207
    %v214 = vmul.f32 %v171, %v203
    %v215 = vmul.f32 %v171, %v207
    %v216 = vmul.f32 %v175, %v203
    %v217 = vmul.f32 %v175, %v207
    %v218 = vmul.f32 %v179, %v203
    %v219 = vmul.f32 %v179, %v207
    %v220 = vmul.f32 %v183, %v203
    %v221 = vmul.f32 %v183, %v207
    %v222 = vmul.f32 %v187, %v203
    %v223 = vmul.f32 %v187, %v207
    %v224 = vadd.f32 %v141, %v208
    %v225 = vadd.f32 %v142, %v209
    %v226 = vadd.f32 %v143, %v210
    %v227 = vadd.f32 %v144, %v211
    %v228 = vadd.f32 %v145, %v212
    %v229 = vadd.f32 %v146, %v213
    %v230 = vadd.f32 %v147, %v214
    %v231 = vadd.f32 %v148, %v215
    %v232 = vadd.f32 %v149, %v216
    %v233 = vadd.f32 %v150, %v217
    %v234 = vadd.f32 %v151, %v218
    %v235 = vadd.f32 %v152, %v219
    %v236 = vadd.f32 %v153, %v220
    %v237 = vadd.f32 %v154, %v221
    %v238 = vadd.f32 %v155, %v222
    %v239 = vadd.f32 %v156, %v223
    %v240 = vlaneseq
    %v241 = vshrl.u32 %v240, 7
    %v242 = vsub.s32 1, %v241
    %v243 = vrot.slane %v66, %v242
    %v244 = vlaneseq
    %v245 = vshrl.u32 %v244, 7
    %v246 = vsub.s32 5, %v245
    %v247 = vrot.slane %v66, %v246
    %v250 = vlaneseq
    %v251 = vshrl.u32 %v250, 7
    %v252 = vsub.s32 1, %v251
    %v253 = vrot.slane %v243, %v252
    %v254 = vlaneseq
    %v255 = vshrl.u32 %v254, 7
    %v256 = vsub.s32 1, %v255
    %v257 = vrot.slane %v247, %v256
    %v258 = vadd.f32 %v224, %v253
    %v259 = vadd.f32 %v225, %v257
    %v260 = vadd.f32 %v226, %v253
    %v261 = vadd.f32 %v227, %v257
    %v262 = vadd.f32 %v228, %v253
    %v263 = vadd.f32 %v229, %v257
    %v264 = vadd.f32 %v230, %v253
    %v265 = vadd.f32 %v231, %v257
    %v266 = vadd.f32 %v232, %v253
    %v267 = vadd.f32 %v233, %v257
    %v268 = vadd.f32 %v234, %v253
    %v269 = vadd.f32 %v235, %v257
    %v270 = vadd.f32 %v236, %v253
    %v271 = vadd.f32 %v237, %v257
    %v272 = vadd.f32 %v238, %v253
    %v273 = vadd.f32 %v239, %v257
    %274 = vst [vmem:[#allocation2] sm:$0xff] %v258
    %275 = vst [vmem:[#allocation2 + $0x8] sm:$0xff] %v259
    %276 = vst [vmem:[#allocation2 + $0x10] sm:$0xff] %v260
    %277 = vst [vmem:[#allocation2 + $0x18] sm:$0xff] %v261
    %278 = vst [vmem:[#allocation2 + $0x20] sm:$0xff] %v262
    %279 = vst [vmem:[#allocation2 + $0x28] sm:$0xff] %v263
    %280 = vst [vmem:[#allocation2 + $0x30] sm:$0xff] %v264
    %281 = vst [vmem:[#allocation2 + $0x38] sm:$0xff] %v265
    %282 = vst [vmem:[#allocation2 + $0x40] sm:$0xff] %v266
    %283 = vst [vmem:[#allocation2 + $0x48] sm:$0xff] %v267
    %284 = vst [vmem:[#allocation2 + $0x50] sm:$0xff] %v268
    %285 = vst [vmem:[#allocation2 + $0x58] sm:$0xff] %v269
    %286 = vst [vmem:[#allocation2 + $0x60] sm:$0xff] %v270
    %287 = vst [vmem:[#allocation2 + $0x68] sm:$0xff] %v271
    %288 = vst [vmem:[#allocation2 + $0x70] sm:$0xff] %v272
    %289 = vst [vmem:[#allocation2 + $0x78] sm:$0xff] %v273
    %v290 = vld [vmem:[%s2] sm:$0xff]
    %v291 = vld [vmem:[%s2 + $0x8] sm:$0xff]
    %v292 = vld [vmem:[%s2 + $0x10] sm:$0xff]
    %v293 = vld [vmem:[%s2 + $0x18] sm:$0xff]
    %v294 = vld [vmem:[%s2 + $0x20] sm:$0xff]
    %v295 = vld [vmem:[%s2 + $0x28] sm:$0xff]
    %v296 = vld [vmem:[%s2 + $0x30] sm:$0xff]
    %v297 = vld [vmem:[%s2 + $0x38] sm:$0xff]
    %v298 = vld [vmem:[%s2 + $0x40] sm:$0xff]
    %v299 = vld [vmem:[%s2 + $0x48] sm:$0xff]
    %v300 = vld [vmem:[%s2 + $0x50] sm:$0xff]
    %v301 = vld [vmem:[%s2 + $0x58] sm:$0xff]
    %v302 = vld [vmem:[%s2 + $0x60] sm:$0xff]
    %v303 = vld [vmem:[%s2 + $0x68] sm:$0xff]
    %v304 = vld [vmem:[%s2 + $0x70] sm:$0xff]
    %v305 = vld [vmem:[%s2 + $0x78] sm:$0xff]
    %v306 = vld [vmem:[#allocation2] sm:$0xff]
    %v307 = vld [vmem:[#allocation2 + $0x8] sm:$0xff]
    %vm308 = vcmask 523264
    %v310 = vsel %vm308, 0.0, 0
    %312 = vmatprep.subr.mxu0 %v291
    %313 = vmatpush1.msra.mxu0 %v290
    %314 = vmatprep.subr.mxu0 %v293
    %315 = vmatpush1.msra.mxu0 %v292
    %316 = vmatprep.subr.mxu0 %v295
    %317 = vmatpush1.msra.mxu0 %v294
    %318 = vmatprep.subr.mxu0 %v297
    %319 = vmatpush1.msra.mxu0 %v296
    %320 = vmatprep.subr.mxu0 %v299
    %321 = vmatpush1.msra.mxu0 %v298
    %322 = vmatprep.subr.mxu0 %v301
    %323 = vmatpush1.msra.mxu0 %v300
    %324 = vmatprep.subr.mxu0 %v303
    %325 = vmatpush1.msra.mxu0 %v302
    %326 = vmatprep.subr.mxu0 %v305
    %327 = vmatpush1.msra.mxu0 %v304
    %328 = vmatprep.subr.mxu0 0.0
    %329 = vmatpush1.msra.mxu0 0.0
    %330 = vmatprep.subr.mxu0 0.0
    %331 = vmatpush1.msra.mxu0 0.0
    %332 = vmatprep.subr.mxu0 0.0
    %333 = vmatpush1.msra.mxu0 0.0
    %334 = vmatprep.subr.mxu0 0.0
    %335 = vmatpush1.msra.mxu0 0.0
    %336 = vmatprep.subr.mxu0 0.0
    %337 = vmatpush1.msra.mxu0 0.0
    %338 = vmatprep.subr.mxu0 0.0
    %339 = vmatpush1.msra.mxu0 0.0
    %340 = vmatprep.subr.mxu0 0.0
    %341 = vmatpush1.msra.mxu0 0.0
    %342 = vmatprep.subr.mxu0 0.0
    %343 = vmatpush1.msra.mxu0 0.0
    %344 = vmatprep.subr.mxu0 0.0
    %345 = vmatpush1.msra.mxu0 0.0
    %346 = vmatprep.subr.mxu0 0.0
    %347 = vmatpush1.msra.mxu0 0.0
    %348 = vmatprep.subr.mxu0 0.0
    %349 = vmatpush1.msra.mxu0 0.0
    %350 = vmatprep.subr.mxu0 0.0
    %351 = vmatpush1.msra.mxu0 0.0
    %352 = vmatprep.subr.mxu0 0.0
    %353 = vmatpush1.msra.mxu0 0.0
    %354 = vmatprep.subr.mxu0 0.0
    %355 = vmatpush1.msra.mxu0 0.0
    %356 = vmatprep.subr.mxu0 0.0
    %357 = vmatpush1.msra.mxu0 0.0
    %358 = vmatprep.subr.mxu0 0.0
    %359 = vmatpush1.msra.mxu0 0.0
    %360 = vmatprep.subr.mxu0 0.0
    %361 = vmatpush1.msra.mxu0 0.0
    %362 = vmatprep.subr.mxu0 0.0
    %363 = vmatpush1.msra.mxu0 0.0
    %364 = vmatprep.subr.mxu0 0.0
    %365 = vmatpush1.msra.mxu0 0.0
    %366 = vmatprep.subr.mxu0 0.0
    %367 = vmatpush1.msra.mxu0 0.0
    %368 = vmatprep.subr.mxu0 0.0
    %369 = vmatpush1.msra.mxu0 0.0
    %370 = vmatprep.subr.mxu0 0.0
    %371 = vmatpush1.msra.mxu0 0.0
    %372 = vmatprep.subr.mxu0 0.0
    %373 = vmatpush1.msra.mxu0 0.0
    %374 = vmatprep.subr.mxu0 0.0
    %375 = vmatpush1.msra.mxu0 0.0
    %376 = vmatprep.mubr.f32.mxu0 0.0
    %377 = vmatmul.mubr.f32.gmra.mrb[0].mxu0 %v310
    %v378 = vpop.f32.mrb[0].mxu0
    %v379 = vadd.f32 0.0, %v378
    %v380 = vpop.f32.mrb[0].mxu0
    %v381 = vadd.f32 0.0, %v380
    %382 = vdwg.mxu0
    %v383 = vadd.f32 %v306, %v379
    %v384 = vadd.f32 %v307, %v381
    %v385 = vxor.u32 %v383, 2147483648
    %v386 = vmul.f32 %v385, 1.442695
    %v387 = vpow.pop %v386
    %v388 = vadd.f32 %v387, 1.0
    %v389 = vrcp.pop %v388
    %v390 = vmul.f32 1.0, %v389
    %v391 = vtanh.pop %v384
    %v392 = vxor.u32 %v384, 2147483648
    %v393 = vmul.f32 %v392, 1.442695
    %v394 = vpow.pop %v393
    %v395 = vadd.f32 %v394, 1.0
    %v396 = vrcp.pop %v395
    %v397 = vmul.f32 1.0, %v396
    %v398 = vmul.f32 %v390, 0.0
    %v399 = vmul.f32 %v390, %v391
    %401 = vrot.lane.b32.xlu0 %v399, 64
    %v402 = vpop.permute.xlu0 %401
    %v404 = vadd.f32 %v398, %v402
    %v405 = vtanh.pop %v404
    %v406 = vmul.f32 %v397, %v405
    %v407 = vld [vmem:[#allocation2 + $0x10] sm:$0xff]
    %v408 = vld [vmem:[#allocation2 + $0x18] sm:$0xff]
    %410 = vrot.lane.b32.xlu0 %v406, 64
    %v411 = vpop.permute.xlu0 %410
    %v412 = vsel %vm308, %v411, 0
    %414 = vmatprep.subr.mxu0 %v291
    %415 = vmatpush1.msra.mxu0 %v290
    %416 = vmatprep.subr.mxu0 %v293
    %417 = vmatpush1.msra.mxu0 %v292
    %418 = vmatprep.subr.mxu0 %v295
    %419 = vmatpush1.msra.mxu0 %v294
    %420 = vmatprep.subr.mxu0 %v297
    %421 = vmatpush1.msra.mxu0 %v296
    %422 = vmatprep.subr.mxu0 %v299
    %423 = vmatpush1.msra.mxu0 %v298
    %424 = vmatprep.subr.mxu0 %v301
    %425 = vmatpush1.msra.mxu0 %v300
    %426 = vmatprep.subr.mxu0 %v303
    %427 = vmatpush1.msra.mxu0 %v302
    %428 = vmatprep.subr.mxu0 %v305
    %429 = vmatpush1.msra.mxu0 %v304
    %430 = vmatprep.subr.mxu0 0.0
    %431 = vmatpush1.msra.mxu0 0.0
    %432 = vmatprep.subr.mxu0 0.0
    %433 = vmatpush1.msra.mxu0 0.0
    %434 = vmatprep.subr.mxu0 0.0
    %435 = vmatpush1.msra.mxu0 0.0
    %436 = vmatprep.subr.mxu0 0.0
    %437 = vmatpush1.msra.mxu0 0.0
    %438 = vmatprep.subr.mxu0 0.0
    %439 = vmatpush1.msra.mxu0 0.0
    %440 = vmatprep.subr.mxu0 0.0
    %441 = vmatpush1.msra.mxu0 0.0
    %442 = vmatprep.subr.mxu0 0.0
    %443 = vmatpush1.msra.mxu0 0.0
    %444 = vmatprep.subr.mxu0 0.0
    %445 = vmatpush1.msra.mxu0 0.0
    %446 = vmatprep.subr.mxu0 0.0
    %447 = vmatpush1.msra.mxu0 0.0
    %448 = vmatprep.subr.mxu0 0.0
    %449 = vmatpush1.msra.mxu0 0.0
    %450 = vmatprep.subr.mxu0 0.0
    %451 = vmatpush1.msra.mxu0 0.0
    %452 = vmatprep.subr.mxu0 0.0
    %453 = vmatpush1.msra.mxu0 0.0
    %454 = vmatprep.subr.mxu0 0.0
    %455 = vmatpush1.msra.mxu0 0.0
    %456 = vmatprep.subr.mxu0 0.0
    %457 = vmatpush1.msra.mxu0 0.0
    %458 = vmatprep.subr.mxu0 0.0
    %459 = vmatpush1.msra.mxu0 0.0
    %460 = vmatprep.subr.mxu0 0.0
    %461 = vmatpush1.msra.mxu0 0.0
    %462 = vmatprep.subr.mxu0 0.0
    %463 = vmatpush1.msra.mxu0 0.0
    %464 = vmatprep.subr.mxu0 0.0
    %465 = vmatpush1.msra.mxu0 0.0
    %466 = vmatprep.subr.mxu0 0.0
    %467 = vmatpush1.msra.mxu0 0.0
    %468 = vmatprep.subr.mxu0 0.0
    %469 = vmatpush1.msra.mxu0 0.0
    %470 = vmatprep.subr.mxu0 0.0
    %471 = vmatpush1.msra.mxu0 0.0
    %472 = vmatprep.subr.mxu0 0.0
    %473 = vmatpush1.msra.mxu0 0.0
    %474 = vmatprep.subr.mxu0 0.0
    %475 = vmatpush1.msra.mxu0 0.0
    %476 = vmatprep.subr.mxu0 0.0
    %477 = vmatpush1.msra.mxu0 0.0
    %478 = vmatprep.mubr.f32.mxu0 0.0
    %479 = vmatmul.mubr.f32.gmra.mrb[0].mxu0 %v412
    %v480 = vpop.f32.mrb[0].mxu0
    %v481 = vadd.f32 0.0, %v480
    %v482 = vpop.f32.mrb[0].mxu0
    %v483 = vadd.f32 0.0, %v482
    %484 = vdwg.mxu0
    %v485 = vadd.f32 %v407, %v481
    %v486 = vadd.f32 %v408, %v483
    %v487 = vxor.u32 %v485, 2147483648
    %v488 = vmul.f32 %v487, 1.442695
    %v489 = vpow.pop %v488
    %v490 = vadd.f32 %v489, 1.0
    %v491 = vrcp.pop %v490
    %v492 = vmul.f32 1.0, %v491
    %v493 = vtanh.pop %v486
    %v494 = vxor.u32 %v486, 2147483648
    %v495 = vmul.f32 %v494, 1.442695
    %v496 = vpow.pop %v495
    %v497 = vadd.f32 %v496, 1.0
    %v498 = vrcp.pop %v497
    %v499 = vmul.f32 1.0, %v498
    %v500 = vmul.f32 %v492, %v404
    %v501 = vmul.f32 %v492, %v493
    %503 = vrot.lane.b32.xlu0 %v501, 64
    %v504 = vpop.permute.xlu0 %503
    %v506 = vadd.f32 %v500, %v504
    %v507 = vtanh.pop %v506
    %v508 = vmul.f32 %v499, %v507
    %v509 = vld [vmem:[#allocation2 + $0x20] sm:$0xff]
    %v510 = vld [vmem:[#allocation2 + $0x28] sm:$0xff]
    %512 = vrot.lane.b32.xlu0 %v508, 64
    %v513 = vpop.permute.xlu0 %512
    %v514 = vsel %vm308, %v513, 0
    %516 = vmatprep.subr.mxu0 %v291
    %517 = vmatpush1.msra.mxu0 %v290
    %518 = vmatprep.subr.mxu0 %v293
    %519 = vmatpush1.msra.mxu0 %v292
    %520 = vmatprep.subr.mxu0 %v295
    %521 = vmatpush1.msra.mxu0 %v294
    %522 = vmatprep.subr.mxu0 %v297
    %523 = vmatpush1.msra.mxu0 %v296
    %524 = vmatprep.subr.mxu0 %v299
    %525 = vmatpush1.msra.mxu0 %v298
    %526 = vmatprep.subr.mxu0 %v301
    %527 = vmatpush1.msra.mxu0 %v300
    %528 = vmatprep.subr.mxu0 %v303
    %529 = vmatpush1.msra.mxu0 %v302
    %530 = vmatprep.subr.mxu0 %v305
    %531 = vmatpush1.msra.mxu0 %v304
    %532 = vmatprep.subr.mxu0 0.0
    %533 = vmatpush1.msra.mxu0 0.0
    %534 = vmatprep.subr.mxu0 0.0
    %535 = vmatpush1.msra.mxu0 0.0
    %536 = vmatprep.subr.mxu0 0.0
    %537 = vmatpush1.msra.mxu0 0.0
    %538 = vmatprep.subr.mxu0 0.0
    %539 = vmatpush1.msra.mxu0 0.0
    %540 = vmatprep.subr.mxu0 0.0
    %541 = vmatpush1.msra.mxu0 0.0
    %542 = vmatprep.subr.mxu0 0.0
    %543 = vmatpush1.msra.mxu0 0.0
    %544 = vmatprep.subr.mxu0 0.0
    %545 = vmatpush1.msra.mxu0 0.0
    %546 = vmatprep.subr.mxu0 0.0
    %547 = vmatpush1.msra.mxu0 0.0
    %548 = vmatprep.subr.mxu0 0.0
    %549 = vmatpush1.msra.mxu0 0.0
    %550 = vmatprep.subr.mxu0 0.0
    %551 = vmatpush1.msra.mxu0 0.0
    %552 = vmatprep.subr.mxu0 0.0
    %553 = vmatpush1.msra.mxu0 0.0
    %554 = vmatprep.subr.mxu0 0.0
    %555 = vmatpush1.msra.mxu0 0.0
    %556 = vmatprep.subr.mxu0 0.0
    %557 = vmatpush1.msra.mxu0 0.0
    %558 = vmatprep.subr.mxu0 0.0
    %559 = vmatpush1.msra.mxu0 0.0
    %560 = vmatprep.subr.mxu0 0.0
    %561 = vmatpush1.msra.mxu0 0.0
    %562 = vmatprep.subr.mxu0 0.0
    %563 = vmatpush1.msra.mxu0 0.0
    %564 = vmatprep.subr.mxu0 0.0
    %565 = vmatpush1.msra.mxu0 0.0
    %566 = vmatprep.subr.mxu0 0.0
    %567 = vmatpush1.msra.mxu0 0.0
    %568 = vmatprep.subr.mxu0 0.0
    %569 = vmatpush1.msra.mxu0 0.0
    %570 = vmatprep.subr.mxu0 0.0
    %571 = vmatpush1.msra.mxu0 0.0
    %572 = vmatprep.subr.mxu0 0.0
    %573 = vmatpush1.msra.mxu0 0.0
    %574 = vmatprep.subr.mxu0 0.0
    %575 = vmatpush1.msra.mxu0 0.0
    %576 = vmatprep.subr.mxu0 0.0
    %577 = vmatpush1.msra.mxu0 0.0
    %578 = vmatprep.subr.mxu0 0.0
    %579 = vmatpush1.msra.mxu0 0.0
    %580 = vmatprep.mubr.f32.mxu0 0.0
    %581 = vmatmul.mubr.f32.gmra.mrb[0].mxu0 %v514
    %v582 = vpop.f32.mrb[0].mxu0
    %v583 = vadd.f32 0.0, %v582
    %v584 = vpop.f32.mrb[0].mxu0
    %v585 = vadd.f32 0.0, %v584
    %586 = vdwg.mxu0
    %v587 = vadd.f32 %v509, %v583
    %v588 = vadd.f32 %v510, %v585
    %v589 = vxor.u32 %v587, 2147483648
    %v590 = vmul.f32 %v589, 1.442695
    %v591 = vpow.pop %v590
    %v592 = vadd.f32 %v591, 1.0
    %v593 = vrcp.pop %v592
    %v594 = vmul.f32 1.0, %v593
    %v595 = vtanh.pop %v588
    %v596 = vxor.u32 %v588, 2147483648
    %v597 = vmul.f32 %v596, 1.442695
    %v598 = vpow.pop %v597
    %v599 = vadd.f32 %v598, 1.0
    %v600 = vrcp.pop %v599
    %v601 = vmul.f32 1.0, %v600
    %v602 = vmul.f32 %v594, %v506
    %v603 = vmul.f32 %v594, %v595
    %605 = vrot.lane.b32.xlu0 %v603, 64
    %v606 = vpop.permute.xlu0 %605
    %v608 = vadd.f32 %v602, %v606
    %v609 = vtanh.pop %v608
    %v610 = vmul.f32 %v601, %v609
    %v611 = vld [vmem:[#allocation2 + $0x30] sm:$0xff]
    %v612 = vld [vmem:[#allocation2 + $0x38] sm:$0xff]
    %614 = vrot.lane.b32.xlu0 %v610, 64
    %v615 = vpop.permute.xlu0 %614
    %v616 = vsel %vm308, %v615, 0
    %618 = vmatprep.subr.mxu0 %v291
    %619 = vmatpush1.msra.mxu0 %v290
    %620 = vmatprep.subr.mxu0 %v293
    %621 = vmatpush1.msra.mxu0 %v292
    %622 = vmatprep.subr.mxu0 %v295
    %623 = vmatpush1.msra.mxu0 %v294
    %624 = vmatprep.subr.mxu0 %v297
    %625 = vmatpush1.msra.mxu0 %v296
    %626 = vmatprep.subr.mxu0 %v299
    %627 = vmatpush1.msra.mxu0 %v298
    %628 = vmatprep.subr.mxu0 %v301
    %629 = vmatpush1.msra.mxu0 %v300
    %630 = vmatprep.subr.mxu0 %v303
    %631 = vmatpush1.msra.mxu0 %v302
    %632 = vmatprep.subr.mxu0 %v305
    %633 = vmatpush1.msra.mxu0 %v304
    %634 = vmatprep.subr.mxu0 0.0
    %635 = vmatpush1.msra.mxu0 0.0
    %636 = vmatprep.subr.mxu0 0.0
    %637 = vmatpush1.msra.mxu0 0.0
    %638 = vmatprep.subr.mxu0 0.0
    %639 = vmatpush1.msra.mxu0 0.0
    %640 = vmatprep.subr.mxu0 0.0
    %641 = vmatpush1.msra.mxu0 0.0
    %642 = vmatprep.subr.mxu0 0.0
    %643 = vmatpush1.msra.mxu0 0.0
    %644 = vmatprep.subr.mxu0 0.0
    %645 = vmatpush1.msra.mxu0 0.0
    %646 = vmatprep.subr.mxu0 0.0
    %647 = vmatpush1.msra.mxu0 0.0
    %648 = vmatprep.subr.mxu0 0.0
    %649 = vmatpush1.msra.mxu0 0.0
    %650 = vmatprep.subr.mxu0 0.0
    %651 = vmatpush1.msra.mxu0 0.0
    %652 = vmatprep.subr.mxu0 0.0
    %653 = vmatpush1.msra.mxu0 0.0
    %654 = vmatprep.subr.mxu0 0.0
    %655 = vmatpush1.msra.mxu0 0.0
    %656 = vmatprep.subr.mxu0 0.0
    %657 = vmatpush1.msra.mxu0 0.0
    %658 = vmatprep.subr.mxu0 0.0
    %659 = vmatpush1.msra.mxu0 0.0
    %660 = vmatprep.subr.mxu0 0.0
    %661 = vmatpush1.msra.mxu0 0.0
    %662 = vmatprep.subr.mxu0 0.0
    %663 = vmatpush1.msra.mxu0 0.0
    %664 = vmatprep.subr.mxu0 0.0
    %665 = vmatpush1.msra.mxu0 0.0
    %666 = vmatprep.subr.mxu0 0.0
    %667 = vmatpush1.msra.mxu0 0.0
    %668 = vmatprep.subr.mxu0 0.0
    %669 = vmatpush1.msra.mxu0 0.0
    %670 = vmatprep.subr.mxu0 0.0
    %671 = vmatpush1.msra.mxu0 0.0
    %672 = vmatprep.subr.mxu0 0.0
    %673 = vmatpush1.msra.mxu0 0.0
    %674 = vmatprep.subr.mxu0 0.0
    %675 = vmatpush1.msra.mxu0 0.0
    %676 = vmatprep.subr.mxu0 0.0
    %677 = vmatpush1.msra.mxu0 0.0
    %678 = vmatprep.subr.mxu0 0.0
    %679 = vmatpush1.msra.mxu0 0.0
    %680 = vmatprep.subr.mxu0 0.0
    %681 = vmatpush1.msra.mxu0 0.0
    %682 = vmatprep.mubr.f32.mxu0 0.0
    %683 = vmatmul.mubr.f32.gmra.mrb[0].mxu0 %v616
    %v684 = vpop.f32.mrb[0].mxu0
    %v685 = vadd.f32 0.0, %v684
    %v686 = vpop.f32.mrb[0].mxu0
    %v687 = vadd.f32 0.0, %v686
    %688 = vdwg.mxu0
    %v689 = vadd.f32 %v611, %v685
    %v690 = vadd.f32 %v612, %v687
    %v691 = vxor.u32 %v689, 2147483648
    %v692 = vmul.f32 %v691, 1.442695
    %v693 = vpow.pop %v692
    %v694 = vadd.f32 %v693, 1.0
    %v695 = vrcp.pop %v694
    %v696 = vmul.f32 1.0, %v695
    %v697 = vtanh.pop %v690
    %v698 = vxor.u32 %v690, 2147483648
    %v699 = vmul.f32 %v698, 1.442695
    %v700 = vpow.pop %v699
    %v701 = vadd.f32 %v700, 1.0
    %v702 = vrcp.pop %v701
    %v703 = vmul.f32 1.0, %v702
    %v704 = vmul.f32 %v696, %v608
    %v705 = vmul.f32 %v696, %v697
    %707 = vrot.lane.b32.xlu0 %v705, 64
    %v708 = vpop.permute.xlu0 %707
    %v710 = vadd.f32 %v704, %v708
    %v711 = vtanh.pop %v710
    %v712 = vmul.f32 %v703, %v711
    %v713 = vld [vmem:[#allocation2 + $0x40] sm:$0xff]
    %v714 = vld [vmem:[#allocation2 + $0x48] sm:$0xff]
    %716 = vrot.lane.b32.xlu0 %v712, 64
    %v717 = vpop.permute.xlu0 %716
    %v718 = vsel %vm308, %v717, 0
    %720 = vmatprep.subr.mxu0 %v291
    %721 = vmatpush1.msra.mxu0 %v290
    %722 = vmatprep.subr.mxu0 %v293
    %723 = vmatpush1.msra.mxu0 %v292
    %724 = vmatprep.subr.mxu0 %v295
    %725 = vmatpush1.msra.mxu0 %v294
    %726 = vmatprep.subr.mxu0 %v297
    %727 = vmatpush1.msra.mxu0 %v296
    %728 = vmatprep.subr.mxu0 %v299
    %729 = vmatpush1.msra.mxu0 %v298
    %730 = vmatprep.subr.mxu0 %v301
    %731 = vmatpush1.msra.mxu0 %v300
    %732 = vmatprep.subr.mxu0 %v303
    %733 = vmatpush1.msra.mxu0 %v302
    %734 = vmatprep.subr.mxu0 %v305
    %735 = vmatpush1.msra.mxu0 %v304
    %736 = vmatprep.subr.mxu0 0.0
    %737 = vmatpush1.msra.mxu0 0.0
    %738 = vmatprep.subr.mxu0 0.0
    %739 = vmatpush1.msra.mxu0 0.0
    %740 = vmatprep.subr.mxu0 0.0
    %741 = vmatpush1.msra.mxu0 0.0
    %742 = vmatprep.subr.mxu0 0.0
    %743 = vmatpush1.msra.mxu0 0.0
    %744 = vmatprep.subr.mxu0 0.0
    %745 = vmatpush1.msra.mxu0 0.0
    %746 = vmatprep.subr.mxu0 0.0
    %747 = vmatpush1.msra.mxu0 0.0
    %748 = vmatprep.subr.mxu0 0.0
    %749 = vmatpush1.msra.mxu0 0.0
    %750 = vmatprep.subr.mxu0 0.0
    %751 = vmatpush1.msra.mxu0 0.0
    %752 = vmatprep.subr.mxu0 0.0
    %753 = vmatpush1.msra.mxu0 0.0
    %754 = vmatprep.subr.mxu0 0.0
    %755 = vmatpush1.msra.mxu0 0.0
    %756 = vmatprep.subr.mxu0 0.0
    %757 = vmatpush1.msra.mxu0 0.0
    %758 = vmatprep.subr.mxu0 0.0
    %759 = vmatpush1.msra.mxu0 0.0
    %760 = vmatprep.subr.mxu0 0.0
    %761 = vmatpush1.msra.mxu0 0.0
    %762 = vmatprep.subr.mxu0 0.0
    %763 = vmatpush1.msra.mxu0 0.0
    %764 = vmatprep.subr.mxu0 0.0
    %765 = vmatpush1.msra.mxu0 0.0
    %766 = vmatprep.subr.mxu0 0.0
    %767 = vmatpush1.msra.mxu0 0.0
    %768 = vmatprep.subr.mxu0 0.0
    %769 = vmatpush1.msra.mxu0 0.0
    %770 = vmatprep.subr.mxu0 0.0
    %771 = vmatpush1.msra.mxu0 0.0
    %772 = vmatprep.subr.mxu0 0.0
    %773 = vmatpush1.msra.mxu0 0.0
    %774 = vmatprep.subr.mxu0 0.0
    %775 = vmatpush1.msra.mxu0 0.0
    %776 = vmatprep.subr.mxu0 0.0
    %777 = vmatpush1.msra.mxu0 0.0
    %778 = vmatprep.subr.mxu0 0.0
    %779 = vmatpush1.msra.mxu0 0.0
    %780 = vmatprep.subr.mxu0 0.0
    %781 = vmatpush1.msra.mxu0 0.0
    %782 = vmatprep.subr.mxu0 0.0
    %783 = vmatpush1.msra.mxu0 0.0
    %784 = vmatprep.mubr.f32.mxu0 0.0
    %785 = vmatmul.mubr.f32.gmra.mrb[0].mxu0 %v718
    %v786 = vpop.f32.mrb[0].mxu0
    %v787 = vadd.f32 0.0, %v786
    %v788 = vpop.f32.mrb[0].mxu0
    %v789 = vadd.f32 0.0, %v788
    %790 = vdwg.mxu0
    %v791 = vadd.f32 %v713, %v787
    %v792 = vadd.f32 %v714, %v789
    %v793 = vxor.u32 %v791, 2147483648
    %v794 = vmul.f32 %v793, 1.442695
    %v795 = vpow.pop %v794
    %v796 = vadd.f32 %v795, 1.0
    %v797 = vrcp.pop %v796
    %v798 = vmul.f32 1.0, %v797
    %v799 = vtanh.pop %v792
    %v800 = vxor.u32 %v792, 2147483648
    %v801 = vmul.f32 %v800, 1.442695
    %v802 = vpow.pop %v801
    %v803 = vadd.f32 %v802, 1.0
    %v804 = vrcp.pop %v803
    %v805 = vmul.f32 1.0, %v804
    %v806 = vmul.f32 %v798, %v710
    %v807 = vmul.f32 %v798, %v799
    %809 = vrot.lane.b32.xlu0 %v807, 64
    %v810 = vpop.permute.xlu0 %809
    %v812 = vadd.f32 %v806, %v810
    %v813 = vtanh.pop %v812
    %v814 = vmul.f32 %v805, %v813
    %v815 = vld [vmem:[#allocation2 + $0x50] sm:$0xff]
    %v816 = vld [vmem:[#allocation2 + $0x58] sm:$0xff]
    %818 = vrot.lane.b32.xlu0 %v814, 64
    %v819 = vpop.permute.xlu0 %818
    %v820 = vsel %vm308, %v819, 0
    %822 = vmatprep.subr.mxu0 %v291
    %823 = vmatpush1.msra.mxu0 %v290
    %824 = vmatprep.subr.mxu0 %v293
    %825 = vmatpush1.msra.mxu0 %v292
    %826 = vmatprep.subr.mxu0 %v295
    %827 = vmatpush1.msra.mxu0 %v294
    %828 = vmatprep.subr.mxu0 %v297
    %829 = vmatpush1.msra.mxu0 %v296
    %830 = vmatprep.subr.mxu0 %v299
    %831 = vmatpush1.msra.mxu0 %v298
    %832 = vmatprep.subr.mxu0 %v301
    %833 = vmatpush1.msra.mxu0 %v300
    %834 = vmatprep.subr.mxu0 %v303
    %835 = vmatpush1.msra.mxu0 %v302
    %836 = vmatprep.subr.mxu0 %v305
    %837 = vmatpush1.msra.mxu0 %v304
    %838 = vmatprep.subr.mxu0 0.0
    %839 = vmatpush1.msra.mxu0 0.0
    %840 = vmatprep.subr.mxu0 0.0
    %841 = vmatpush1.msra.mxu0 0.0
    %842 = vmatprep.subr.mxu0 0.0
    %843 = vmatpush1.msra.mxu0 0.0
    %844 = vmatprep.subr.mxu0 0.0
    %845 = vmatpush1.msra.mxu0 0.0
    %846 = vmatprep.subr.mxu0 0.0
    %847 = vmatpush1.msra.mxu0 0.0
    %848 = vmatprep.subr.mxu0 0.0
    %849 = vmatpush1.msra.mxu0 0.0
    %850 = vmatprep.subr.mxu0 0.0
    %851 = vmatpush1.msra.mxu0 0.0
    %852 = vmatprep.subr.mxu0 0.0
    %853 = vmatpush1.msra.mxu0 0.0
    %854 = vmatprep.subr.mxu0 0.0
    %855 = vmatpush1.msra.mxu0 0.0
    %856 = vmatprep.subr.mxu0 0.0
    %857 = vmatpush1.msra.mxu0 0.0
    %858 = vmatprep.subr.mxu0 0.0
    %859 = vmatpush1.msra.mxu0 0.0
    %860 = vmatprep.subr.mxu0 0.0
    %861 = vmatpush1.msra.mxu0 0.0
    %862 = vmatprep.subr.mxu0 0.0
    %863 = vmatpush1.msra.mxu0 0.0
    %864 = vmatprep.subr.mxu0 0.0
    %865 = vmatpush1.msra.mxu0 0.0
    %866 = vmatprep.subr.mxu0 0.0
    %867 = vmatpush1.msra.mxu0 0.0
    %868 = vmatprep.subr.mxu0 0.0
    %869 = vmatpush1.msra.mxu0 0.0
    %870 = vmatprep.subr.mxu0 0.0
    %871 = vmatpush1.msra.mxu0 0.0
    %872 = vmatprep.subr.mxu0 0.0
    %873 = vmatpush1.msra.mxu0 0.0
    %874 = vmatprep.subr.mxu0 0.0
    %875 = vmatpush1.msra.mxu0 0.0
    %876 = vmatprep.subr.mxu0 0.0
    %877 = vmatpush1.msra.mxu0 0.0
    %878 = vmatprep.subr.mxu0 0.0
    %879 = vmatpush1.msra.mxu0 0.0
    %880 = vmatprep.subr.mxu0 0.0
    %881 = vmatpush1.msra.mxu0 0.0
    %882 = vmatprep.subr.mxu0 0.0
    %883 = vmatpush1.msra.mxu0 0.0
    %884 = vmatprep.subr.mxu0 0.0
    %885 = vmatpush1.msra.mxu0 0.0
    %886 = vmatprep.mubr.f32.mxu0 0.0
    %887 = vmatmul.mubr.f32.gmra.mrb[0].mxu0 %v820
    %v888 = vpop.f32.mrb[0].mxu0
    %v889 = vadd.f32 0.0, %v888
    %v890 = vpop.f32.mrb[0].mxu0
    %v891 = vadd.f32 0.0, %v890
    %892 = vdwg.mxu0
    %v893 = vadd.f32 %v815, %v889
    %v894 = vadd.f32 %v816, %v891
    %v895 = vxor.u32 %v893, 2147483648
    %v896 = vmul.f32 %v895, 1.442695
    %v897 = vpow.pop %v896
    %v898 = vadd.f32 %v897, 1.0
    %v899 = vrcp.pop %v898
    %v900 = vmul.f32 1.0, %v899
    %v901 = vtanh.pop %v894
    %v902 = vxor.u32 %v894, 2147483648
    %v903 = vmul.f32 %v902, 1.442695
    %v904 = vpow.pop %v903
    %v905 = vadd.f32 %v904, 1.0
    %v906 = vrcp.pop %v905
    %v907 = vmul.f32 1.0, %v906
    %v908 = vmul.f32 %v900, %v812
    %v909 = vmul.f32 %v900, %v901
    %911 = vrot.lane.b32.xlu0 %v909, 64
    %v912 = vpop.permute.xlu0 %911
    %v914 = vadd.f32 %v908, %v912
    %v915 = vtanh.pop %v914
    %v916 = vmul.f32 %v907, %v915
    %v917 = vld [vmem:[#allocation2 + $0x60] sm:$0xff]
    %v918 = vld [vmem:[#allocation2 + $0x68] sm:$0xff]
    %920 = vrot.lane.b32.xlu0 %v916, 64
    %v921 = vpop.permute.xlu0 %920
    %v922 = vsel %vm308, %v921, 0
    %924 = vmatprep.subr.mxu0 %v291
    %925 = vmatpush1.msra.mxu0 %v290
    %926 = vmatprep.subr.mxu0 %v293
    %927 = vmatpush1.msra.mxu0 %v292
    %928 = vmatprep.subr.mxu0 %v295
    %929 = vmatpush1.msra.mxu0 %v294
    %930 = vmatprep.subr.mxu0 %v297
    %931 = vmatpush1.msra.mxu0 %v296
    %932 = vmatprep.subr.mxu0 %v299
    %933 = vmatpush1.msra.mxu0 %v298
    %934 = vmatprep.subr.mxu0 %v301
    %935 = vmatpush1.msra.mxu0 %v300
    %936 = vmatprep.subr.mxu0 %v303
    %937 = vmatpush1.msra.mxu0 %v302
    %938 = vmatprep.subr.mxu0 %v305
    %939 = vmatpush1.msra.mxu0 %v304
    %940 = vmatprep.subr.mxu0 0.0
    %941 = vmatpush1.msra.mxu0 0.0
    %942 = vmatprep.subr.mxu0 0.0
    %943 = vmatpush1.msra.mxu0 0.0
    %944 = vmatprep.subr.mxu0 0.0
    %945 = vmatpush1.msra.mxu0 0.0
    %946 = vmatprep.subr.mxu0 0.0
    %947 = vmatpush1.msra.mxu0 0.0
    %948 = vmatprep.subr.mxu0 0.0
    %949 = vmatpush1.msra.mxu0 0.0
    %950 = vmatprep.subr.mxu0 0.0
    %951 = vmatpush1.msra.mxu0 0.0
    %952 = vmatprep.subr.mxu0 0.0
    %953 = vmatpush1.msra.mxu0 0.0
    %954 = vmatprep.subr.mxu0 0.0
    %955 = vmatpush1.msra.mxu0 0.0
    %956 = vmatprep.subr.mxu0 0.0
    %957 = vmatpush1.msra.mxu0 0.0
    %958 = vmatprep.subr.mxu0 0.0
    %959 = vmatpush1.msra.mxu0 0.0
    %960 = vmatprep.subr.mxu0 0.0
    %961 = vmatpush1.msra.mxu0 0.0
    %962 = vmatprep.subr.mxu0 0.0
    %963 = vmatpush1.msra.mxu0 0.0
    %964 = vmatprep.subr.mxu0 0.0
    %965 = vmatpush1.msra.mxu0 0.0
    %966 = vmatprep.subr.mxu0 0.0
    %967 = vmatpush1.msra.mxu0 0.0
    %968 = vmatprep.subr.mxu0 0.0
    %969 = vmatpush1.msra.mxu0 0.0
    %970 = vmatprep.subr.mxu0 0.0
    %971 = vmatpush1.msra.mxu0 0.0
    %972 = vmatprep.subr.mxu0 0.0
    %973 = vmatpush1.msra.mxu0 0.0
    %974 = vmatprep.subr.mxu0 0.0
    %975 = vmatpush1.msra.mxu0 0.0
    %976 = vmatprep.subr.mxu0 0.0
    %977 = vmatpush1.msra.mxu0 0.0
    %978 = vmatprep.subr.mxu0 0.0
    %979 = vmatpush1.msra.mxu0 0.0
    %980 = vmatprep.subr.mxu0 0.0
    %981 = vmatpush1.msra.mxu0 0.0
    %982 = vmatprep.subr.mxu0 0.0
    %983 = vmatpush1.msra.mxu0 0.0
    %984 = vmatprep.subr.mxu0 0.0
    %985 = vmatpush1.msra.mxu0 0.0
    %986 = vmatprep.subr.mxu0 0.0
    %987 = vmatpush1.msra.mxu0 0.0
    %988 = vmatprep.mubr.f32.mxu0 0.0
    %989 = vmatmul.mubr.f32.gmra.mrb[0].mxu0 %v922
    %v990 = vpop.f32.mrb[0].mxu0
    %v991 = vadd.f32 0.0, %v990
    %v992 = vpop.f32.mrb[0].mxu0
    %v993 = vadd.f32 0.0, %v992
    %994 = vdwg.mxu0
    %v995 = vadd.f32 %v917, %v991
    %v996 = vadd.f32 %v918, %v993
    %v997 = vxor.u32 %v995, 2147483648
    %v998 = vmul.f32 %v997, 1.442695
    %v999 = vpow.pop %v998
    %v1000 = vadd.f32 %v999, 1.0
    %v1001 = vrcp.pop %v1000
    %v1002 = vmul.f32 1.0, %v1001
    %v1003 = vtanh.pop %v996
    %v1004 = vxor.u32 %v996, 2147483648
    %v1005 = vmul.f32 %v1004, 1.442695
    %v1006 = vpow.pop %v1005
    %v1007 = vadd.f32 %v1006, 1.0
    %v1008 = vrcp.pop %v1007
    %v1009 = vmul.f32 1.0, %v1008
    %v1010 = vmul.f32 %v1002, %v914
    %v1011 = vmul.f32 %v1002, %v1003
    %1013 = vrot.lane.b32.xlu0 %v1011, 64
    %v1014 = vpop.permute.xlu0 %1013
    %v1016 = vadd.f32 %v1010, %v1014
    %v1017 = vtanh.pop %v1016
    %v1018 = vmul.f32 %v1009, %v1017
    %v1019 = vld [vmem:[#allocation2 + $0x70] sm:$0xff]
    %v1020 = vld [vmem:[#allocation2 + $0x78] sm:$0xff]
    %1022 = vrot.lane.b32.xlu0 %v1018, 64
    %v1023 = vpop.permute.xlu0 %1022
    %v1024 = vsel %vm308, %v1023, 0
    %1026 = vmatprep.subr.mxu0 %v291
    %1027 = vmatpush1.msra.mxu0 %v290
    %1028 = vmatprep.subr.mxu0 %v293
    %1029 = vmatpush1.msra.mxu0 %v292
    %1030 = vmatprep.subr.mxu0 %v295
    %1031 = vmatpush1.msra.mxu0 %v294
    %1032 = vmatprep.subr.mxu0 %v297
    %1033 = vmatpush1.msra.mxu0 %v296
    %1034 = vmatprep.subr.mxu0 %v299
    %1035 = vmatpush1.msra.mxu0 %v298
    %1036 = vmatprep.subr.mxu0 %v301
    %1037 = vmatpush1.msra.mxu0 %v300
    %1038 = vmatprep.subr.mxu0 %v303
    %1039 = vmatpush1.msra.mxu0 %v302
    %1040 = vmatprep.subr.mxu0 %v305
    %1041 = vmatpush1.msra.mxu0 %v304
    %1042 = vmatprep.subr.mxu0 0.0
    %1043 = vmatpush1.msra.mxu0 0.0
    %1044 = vmatprep.subr.mxu0 0.0
    %1045 = vmatpush1.msra.mxu0 0.0
    %1046 = vmatprep.subr.mxu0 0.0
    %1047 = vmatpush1.msra.mxu0 0.0
    %1048 = vmatprep.subr.mxu0 0.0
    %1049 = vmatpush1.msra.mxu0 0.0
    %1050 = vmatprep.subr.mxu0 0.0
    %1051 = vmatpush1.msra.mxu0 0.0
    %1052 = vmatprep.subr.mxu0 0.0
    %1053 = vmatpush1.msra.mxu0 0.0
    %1054 = vmatprep.subr.mxu0 0.0
    %1055 = vmatpush1.msra.mxu0 0.0
    %1056 = vmatprep.subr.mxu0 0.0
    %1057 = vmatpush1.msra.mxu0 0.0
    %1058 = vmatprep.subr.mxu0 0.0
    %1059 = vmatpush1.msra.mxu0 0.0
    %1060 = vmatprep.subr.mxu0 0.0
    %1061 = vmatpush1.msra.mxu0 0.0
    %1062 = vmatprep.subr.mxu0 0.0
    %1063 = vmatpush1.msra.mxu0 0.0
    %1064 = vmatprep.subr.mxu0 0.0
    %1065 = vmatpush1.msra.mxu0 0.0
    %1066 = vmatprep.subr.mxu0 0.0
    %1067 = vmatpush1.msra.mxu0 0.0
    %1068 = vmatprep.subr.mxu0 0.0
    %1069 = vmatpush1.msra.mxu0 0.0
    %1070 = vmatprep.subr.mxu0 0.0
    %1071 = vmatpush1.msra.mxu0 0.0
    %1072 = vmatprep.subr.mxu0 0.0
    %1073 = vmatpush1.msra.mxu0 0.0
    %1074 = vmatprep.subr.mxu0 0.0
    %1075 = vmatpush1.msra.mxu0 0.0
    %1076 = vmatprep.subr.mxu0 0.0
    %1077 = vmatpush1.msra.mxu0 0.0
    %1078 = vmatprep.subr.mxu0 0.0
    %1079 = vmatpush1.msra.mxu0 0.0
    %1080 = vmatprep.subr.mxu0 0.0
    %1081 = vmatpush1.msra.mxu0 0.0
    %1082 = vmatprep.subr.mxu0 0.0
    %1083 = vmatpush1.msra.mxu0 0.0
    %1084 = vmatprep.subr.mxu0 0.0
    %1085 = vmatpush1.msra.mxu0 0.0
    %1086 = vmatprep.subr.mxu0 0.0
    %1087 = vmatpush1.msra.mxu0 0.0
    %1088 = vmatprep.subr.mxu0 0.0
    %1089 = vmatpush1.msra.mxu0 0.0
    %1090 = vmatprep.mubr.f32.mxu0 0.0
    %1091 = vmatmul.mubr.f32.gmra.mrb[0].mxu0 %v1024
    %v1092 = vpop.f32.mrb[0].mxu0
    %v1093 = vadd.f32 0.0, %v1092
    %v1094 = vpop.f32.mrb[0].mxu0
    %v1095 = vadd.f32 0.0, %v1094
    %1096 = vdwg.mxu0
    %v1097 = vadd.f32 %v1019, %v1093
    %v1098 = vadd.f32 %v1020, %v1095
    %v1099 = vxor.u32 %v1097, 2147483648
    %v1100 = vmul.f32 %v1099, 1.442695
    %v1101 = vpow.pop %v1100
    %v1102 = vadd.f32 %v1101, 1.0
    %v1103 = vrcp.pop %v1102
    %v1104 = vmul.f32 1.0, %v1103
    %v1105 = vtanh.pop %v1098
    %v1106 = vxor.u32 %v1098, 2147483648
    %v1107 = vmul.f32 %v1106, 1.442695
    %v1108 = vpow.pop %v1107
    %v1109 = vadd.f32 %v1108, 1.0
    %v1110 = vrcp.pop %v1109
    %v1111 = vmul.f32 1.0, %v1110
    %v1112 = vmul.f32 %v1104, %v1016
    %v1113 = vmul.f32 %v1104, %v1105
    %1115 = vrot.lane.b32.xlu0 %v1113, 64
    %v1116 = vpop.permute.xlu0 %1115
    %v1118 = vadd.f32 %v1112, %v1116
    %v1119 = vtanh.pop %v1118
    %v1120 = vmul.f32 %v1111, %v1119
    %1123 = vrot.lane.b32.xlu0 %v1120, 64
    %v1124 = vpop.permute.xlu0 %1123
    %vm1126 = vcmask 261120
    %v1127 = vsel %vm1126, %v411, %v1124
    %v1130 = vsel %vm1126, %v513, %v1023
    %v1133 = vsel %vm1126, %v615, %v921
    %v1136 = vsel %vm1126, %v717, %v819
    %v1137 = vsel %vm1126, %v819, %v717
    %v1138 = vsel %vm1126, %v921, %v615
    %v1139 = vsel %vm1126, %v1023, %v513
    %v1140 = vsel %vm1126, %v1124, %v411
    %v1141 = vld [vmem:[%s3] sm:$0xff]
    %v1142 = vld [vmem:[%s3 + $0x8] sm:$0xff]
    %v1143 = vld [vmem:[%s3 + $0x10] sm:$0xff]
    %v1144 = vld [vmem:[%s3 + $0x18] sm:$0xff]
    %v1145 = vld [vmem:[%s3 + $0x20] sm:$0xff]
    %v1146 = vld [vmem:[%s3 + $0x28] sm:$0xff]
    %v1147 = vld [vmem:[%s3 + $0x30] sm:$0xff]
    %v1148 = vld [vmem:[%s3 + $0x38] sm:$0xff]
    %v1149 = vld [vmem:[%s3 + $0x40] sm:$0xff]
    %v1150 = vld [vmem:[%s3 + $0x48] sm:$0xff]
    %v1151 = vld [vmem:[%s3 + $0x50] sm:$0xff]
    %v1152 = vld [vmem:[%s3 + $0x58] sm:$0xff]
    %v1153 = vld [vmem:[%s3 + $0x60] sm:$0xff]
    %v1154 = vld [vmem:[%s3 + $0x68] sm:$0xff]
    %v1155 = vld [vmem:[%s3 + $0x70] sm:$0xff]
    %v1156 = vld [vmem:[%s3 + $0x78] sm:$0xff]
    %v1157 = vsel %vm64, 1, 0
    %v1158 = vsel %vm65, 1, 0
    %vm1159 = vcmp.eq.s32.totalorder %v1157, 1
    %vm1160 = vcmp.eq.s32.totalorder %v1158, 1
    %v1161 = vsel %vm1159, %v1141, 0.0
    %v1162 = vsel %vm1160, %v1142, 0.0
    %v1163 = vsel %vm1159, %v1143, 0.0
    %v1164 = vsel %vm1160, %v1144, 0.0
    %v1165 = vsel %vm1159, %v1145, 0.0
    %v1166 = vsel %vm1160, %v1146, 0.0
    %v1167 = vsel %vm1159, %v1147, 0.0
    %v1168 = vsel %vm1160, %v1148, 0.0
    %v1169 = vsel %vm1159, %v1149, 0.0
    %v1170 = vsel %vm1160, %v1150, 0.0
    %v1171 = vsel %vm1159, %v1151, 0.0
    %v1172 = vsel %vm1160, %v1152, 0.0
    %v1173 = vsel %vm1159, %v1153, 0.0
    %v1174 = vsel %vm1160, %v1154, 0.0
    %v1175 = vsel %vm1159, %v1155, 0.0
    %v1176 = vsel %vm1160, %v1156, 0.0
    %v1177 = vsub.f32 %v1141, %v1161
    %v1178 = vsub.f32 %v1142, %v1162
    %v1179 = vsub.f32 %v1143, %v1163
    %v1180 = vsub.f32 %v1144, %v1164
    %v1181 = vsub.f32 %v1145, %v1165
    %v1182 = vsub.f32 %v1146, %v1166
    %v1183 = vsub.f32 %v1147, %v1167
    %v1184 = vsub.f32 %v1148, %v1168
    %v1185 = vsub.f32 %v1149, %v1169
    %v1186 = vsub.f32 %v1150, %v1170
    %v1187 = vsub.f32 %v1151, %v1171
    %v1188 = vsub.f32 %v1152, %v1172
    %v1189 = vsub.f32 %v1153, %v1173
    %v1190 = vsub.f32 %v1154, %v1174
    %v1191 = vsub.f32 %v1155, %v1175
    %v1192 = vsub.f32 %v1156, %v1176
    %v1194 = vsel %vm308, %v1140, 0
    %v1197 = vsel %vm308, %v1139, 0
    %v1200 = vsel %vm308, %v1138, 0
    %v1203 = vsel %vm308, %v1137, 0
    %v1206 = vsel %vm308, %v1136, 0
    %v1209 = vsel %vm308, %v1133, 0
    %v1212 = vsel %vm308, %v1130, 0
    %v1215 = vsel %vm308, %v1127, 0
    %1217 = vmatprep.subr.mxu0 %v1178
    %1218 = vmatpush1.msra.mxu0 %v1177
    %1219 = vmatprep.subr.mxu0 %v1180
    %1220 = vmatpush1.msra.mxu0 %v1179
    %1221 = vmatprep.subr.mxu0 %v1182
    %1222 = vmatpush1.msra.mxu0 %v1181
    %1223 = vmatprep.subr.mxu0 %v1184
    %1224 = vmatpush1.msra.mxu0 %v1183
    %1225 = vmatprep.subr.mxu0 %v1186
    %1226 = vmatpush1.msra.mxu0 %v1185
    %1227 = vmatprep.subr.mxu0 %v1188
    %1228 = vmatpush1.msra.mxu0 %v1187
    %1229 = vmatprep.subr.mxu0 %v1190
    %1230 = vmatpush1.msra.mxu0 %v1189
    %1231 = vmatprep.subr.mxu0 %v1192
    %1232 = vmatpush1.msra.mxu0 %v1191
    %1233 = vmatprep.subr.mxu0 0.0
    %1234 = vmatpush1.msra.mxu0 0.0
    %1235 = vmatprep.subr.mxu0 0.0
    %1236 = vmatpush1.msra.mxu0 0.0
    %1237 = vmatprep.subr.mxu0 0.0
    %1238 = vmatpush1.msra.mxu0 0.0
    %1239 = vmatprep.subr.mxu0 0.0
    %1240 = vmatpush1.msra.mxu0 0.0
    %1241 = vmatprep.subr.mxu0 0.0
    %1242 = vmatpush1.msra.mxu0 0.0
    %1243 = vmatprep.subr.mxu0 0.0
    %1244 = vmatpush1.msra.mxu0 0.0
    %1245 = vmatprep.subr.mxu0 0.0
    %1246 = vmatpush1.msra.mxu0 0.0
    %1247 = vmatprep.subr.mxu0 0.0
    %1248 = vmatpush1.msra.mxu0 0.0
    %1249 = vmatprep.subr.mxu0 0.0
    %1250 = vmatpush1.msra.mxu0 0.0
    %1251 = vmatprep.subr.mxu0 0.0
    %1252 = vmatpush1.msra.mxu0 0.0
    %1253 = vmatprep.subr.mxu0 0.0
    %1254 = vmatpush1.msra.mxu0 0.0
    %1255 = vmatprep.subr.mxu0 0.0
    %1256 = vmatpush1.msra.mxu0 0.0
    %1257 = vmatprep.subr.mxu0 0.0
    %1258 = vmatpush1.msra.mxu0 0.0
    %1259 = vmatprep.subr.mxu0 0.0
    %1260 = vmatpush1.msra.mxu0 0.0
    %1261 = vmatprep.subr.mxu0 0.0
    %1262 = vmatpush1.msra.mxu0 0.0
    %1263 = vmatprep.subr.mxu0 0.0
    %1264 = vmatpush1.msra.mxu0 0.0
    %1265 = vmatprep.subr.mxu0 0.0
    %1266 = vmatpush1.msra.mxu0 0.0
    %1267 = vmatprep.subr.mxu0 0.0
    %1268 = vmatpush1.msra.mxu0 0.0
    %1269 = vmatprep.subr.mxu0 0.0
    %1270 = vmatpush1.msra.mxu0 0.0
    %1271 = vmatprep.subr.mxu0 0.0
    %1272 = vmatpush1.msra.mxu0 0.0
    %1273 = vmatprep.subr.mxu0 0.0
    %1274 = vmatpush1.msra.mxu0 0.0
    %1275 = vmatprep.subr.mxu0 0.0
    %1276 = vmatpush1.msra.mxu0 0.0
    %1277 = vmatprep.subr.mxu0 0.0
    %1278 = vmatpush1.msra.mxu0 0.0
    %1279 = vmatprep.subr.mxu0 0.0
    %1280 = vmatpush1.msra.mxu0 0.0
    %1281 = vmatprep.mubr.f32.mxu0 0.0
    %1282 = vmatmul.mubr.f32.gmra.mrb[0].mxu0 %v1194
    %v1283 = vpop.f32.mrb[0].mxu0
    %v1284 = vadd.f32 0.0, %v1283
    %v1285 = vpop.f32.mrb[0].mxu0
    %v1286 = vadd.f32 0.0, %v1285
    %1287 = vmatprep.mubr.f32.mxu0 0.0
    %1288 = vmatmul.mubr.f32.gmra.mrb[0].mxu0 %v1197
    %v1289 = vpop.f32.mrb[0].mxu0
    %v1290 = vadd.f32 0.0, %v1289
    %v1291 = vpop.f32.mrb[0].mxu0
    %v1292 = vadd.f32 0.0, %v1291
    %1293 = vmatprep.mubr.f32.mxu0 0.0
    %1294 = vmatmul.mubr.f32.gmra.mrb[0].mxu0 %v1200
    %v1295 = vpop.f32.mrb[0].mxu0
    %v1296 = vadd.f32 0.0, %v1295
    %v1297 = vpop.f32.mrb[0].mxu0
    %v1298 = vadd.f32 0.0, %v1297
    %1299 = vmatprep.mubr.f32.mxu0 0.0
    %1300 = vmatmul.mubr.f32.gmra.mrb[0].mxu0 %v1203
    %v1301 = vpop.f32.mrb[0].mxu0
    %v1302 = vadd.f32 0.0, %v1301
    %v1303 = vpop.f32.mrb[0].mxu0
    %v1304 = vadd.f32 0.0, %v1303
    %1305 = vmatprep.mubr.f32.mxu0 0.0
    %1306 = vmatmul.mubr.f32.gmra.mrb[0].mxu0 %v1206
    %v1307 = vpop.f32.mrb[0].mxu0
    %v1308 = vadd.f32 0.0, %v1307
    %v1309 = vpop.f32.mrb[0].mxu0
    %v1310 = vadd.f32 0.0, %v1309
    %1311 = vmatprep.mubr.f32.mxu0 0.0
    %1312 = vmatmul.mubr.f32.gmra.mrb[0].mxu0 %v1209
    %v1313 = vpop.f32.mrb[0].mxu0
    %v1314 = vadd.f32 0.0, %v1313
    %v1315 = vpop.f32.mrb[0].mxu0
    %v1316 = vadd.f32 0.0, %v1315
    %1317 = vmatprep.mubr.f32.mxu0 0.0
    %1318 = vmatmul.mubr.f32.gmra.mrb[0].mxu0 %v1212
    %v1319 = vpop.f32.mrb[0].mxu0
    %v1320 = vadd.f32 0.0, %v1319
    %v1321 = vpop.f32.mrb[0].mxu0
    %v1322 = vadd.f32 0.0, %v1321
    %1323 = vmatprep.mubr.f32.mxu0 0.0
    %1324 = vmatmul.mubr.f32.gmra.mrb[0].mxu0 %v1215
    %v1325 = vpop.f32.mrb[0].mxu0
    %v1326 = vadd.f32 0.0, %v1325
    %v1327 = vpop.f32.mrb[0].mxu0
    %v1328 = vadd.f32 0.0, %v1327
    %1329 = vdwg.mxu0
    %1330 = vmatprep.subr.mxu0 %v1162
    %1331 = vmatpush1.msra.mxu0 %v1161
    %1332 = vmatprep.subr.mxu0 %v1164
    %1333 = vmatpush1.msra.mxu0 %v1163
    %1334 = vmatprep.subr.mxu0 %v1166
    %1335 = vmatpush1.msra.mxu0 %v1165
    %1336 = vmatprep.subr.mxu0 %v1168
    %1337 = vmatpush1.msra.mxu0 %v1167
    %1338 = vmatprep.subr.mxu0 %v1170
    %1339 = vmatpush1.msra.mxu0 %v1169
    %1340 = vmatprep.subr.mxu0 %v1172
    %1341 = vmatpush1.msra.mxu0 %v1171
    %1342 = vmatprep.subr.mxu0 %v1174
    %1343 = vmatpush1.msra.mxu0 %v1173
    %1344 = vmatprep.subr.mxu0 %v1176
    %1345 = vmatpush1.msra.mxu0 %v1175
    %1346 = vmatprep.subr.mxu0 0.0
    %1347 = vmatpush1.msra.mxu0 0.0
    %1348 = vmatprep.subr.mxu0 0.0
    %1349 = vmatpush1.msra.mxu0 0.0
    %1350 = vmatprep.subr.mxu0 0.0
    %1351 = vmatpush1.msra.mxu0 0.0
    %1352 = vmatprep.subr.mxu0 0.0
    %1353 = vmatpush1.msra.mxu0 0.0
    %1354 = vmatprep.subr.mxu0 0.0
    %1355 = vmatpush1.msra.mxu0 0.0
    %1356 = vmatprep.subr.mxu0 0.0
    %1357 = vmatpush1.msra.mxu0 0.0
    %1358 = vmatprep.subr.mxu0 0.0
    %1359 = vmatpush1.msra.mxu0 0.0
    %1360 = vmatprep.subr.mxu0 0.0
    %1361 = vmatpush1.msra.mxu0 0.0
    %1362 = vmatprep.subr.mxu0 0.0
    %1363 = vmatpush1.msra.mxu0 0.0
    %1364 = vmatprep.subr.mxu0 0.0
    %1365 = vmatpush1.msra.mxu0 0.0
    %1366 = vmatprep.subr.mxu0 0.0
    %1367 = vmatpush1.msra.mxu0 0.0
    %1368 = vmatprep.subr.mxu0 0.0
    %1369 = vmatpush1.msra.mxu0 0.0
    %1370 = vmatprep.subr.mxu0 0.0
    %1371 = vmatpush1.msra.mxu0 0.0
    %1372 = vmatprep.subr.mxu0 0.0
    %1373 = vmatpush1.msra.mxu0 0.0
    %1374 = vmatprep.subr.mxu0 0.0
    %1375 = vmatpush1.msra.mxu0 0.0
    %1376 = vmatprep.subr.mxu0 0.0
    %1377 = vmatpush1.msra.mxu0 0.0
    %1378 = vmatprep.subr.mxu0 0.0
    %1379 = vmatpush1.msra.mxu0 0.0
    %1380 = vmatprep.subr.mxu0 0.0
    %1381 = vmatpush1.msra.mxu0 0.0
    %1382 = vmatprep.subr.mxu0 0.0
    %1383 = vmatpush1.msra.mxu0 0.0
    %1384 = vmatprep.subr.mxu0 0.0
    %1385 = vmatpush1.msra.mxu0 0.0
    %1386 = vmatprep.subr.mxu0 0.0
    %1387 = vmatpush1.msra.mxu0 0.0
    %1388 = vmatprep.subr.mxu0 0.0
    %1389 = vmatpush1.msra.mxu0 0.0
    %1390 = vmatprep.subr.mxu0 0.0
    %1391 = vmatpush1.msra.mxu0 0.0
    %1392 = vmatprep.subr.mxu0 0.0
    %1393 = vmatpush1.msra.mxu0 0.0
    %1394 = vmatprep.mubr.f32.mxu0 0.0
    %1395 = vmatmul.mubr.f32.gmra.mrb[0].mxu0 %v1215
    %v1396 = vpop.f32.mrb[0].mxu0
    %v1397 = vadd.f32 %v1284, %v1396
    %v1398 = vpop.f32.mrb[0].mxu0
    %v1399 = vadd.f32 %v1286, %v1398
    %1400 = vmatprep.mubr.f32.mxu0 0.0
    %1401 = vmatmul.mubr.f32.gmra.mrb[0].mxu0 %v1212
    %v1402 = vpop.f32.mrb[0].mxu0
    %v1403 = vadd.f32 %v1290, %v1402
    %v1404 = vpop.f32.mrb[0].mxu0
    %v1405 = vadd.f32 %v1292, %v1404
    %1406 = vmatprep.mubr.f32.mxu0 0.0
    %1407 = vmatmul.mubr.f32.gmra.mrb[0].mxu0 %v1209
    %v1408 = vpop.f32.mrb[0].mxu0
    %v1409 = vadd.f32 %v1296, %v1408
    %v1410 = vpop.f32.mrb[0].mxu0
    %v1411 = vadd.f32 %v1298, %v1410
    %1412 = vmatprep.mubr.f32.mxu0 0.0
    %1413 = vmatmul.mubr.f32.gmra.mrb[0].mxu0 %v1206
    %v1414 = vpop.f32.mrb[0].mxu0
    %v1415 = vadd.f32 %v1302, %v1414
    %v1416 = vpop.f32.mrb[0].mxu0
    %v1417 = vadd.f32 %v1304, %v1416
    %1418 = vmatprep.mubr.f32.mxu0 0.0
    %1419 = vmatmul.mubr.f32.gmra.mrb[0].mxu0 %v1203
    %v1420 = vpop.f32.mrb[0].mxu0
    %v1421 = vadd.f32 %v1308, %v1420
    %v1422 = vpop.f32.mrb[0].mxu0
    %v1423 = vadd.f32 %v1310, %v1422
    %1424 = vmatprep.mubr.f32.mxu0 0.0
    %1425 = vmatmul.mubr.f32.gmra.mrb[0].mxu0 %v1200
    %v1426 = vpop.f32.mrb[0].mxu0
    %v1427 = vadd.f32 %v1314, %v1426
    %v1428 = vpop.f32.mrb[0].mxu0
    %v1429 = vadd.f32 %v1316, %v1428
    %1430 = vmatprep.mubr.f32.mxu0 0.0
    %1431 = vmatmul.mubr.f32.gmra.mrb[0].mxu0 %v1197
    %v1432 = vpop.f32.mrb[0].mxu0
    %v1433 = vadd.f32 %v1320, %v1432
    %v1434 = vpop.f32.mrb[0].mxu0
    %v1435 = vadd.f32 %v1322, %v1434
    %1436 = vmatprep.mubr.f32.mxu0 0.0
    %1437 = vmatmul.mubr.f32.gmra.mrb[0].mxu0 %v1194
    %v1438 = vpop.f32.mrb[0].mxu0
    %v1439 = vadd.f32 %v1326, %v1438
    %v1440 = vpop.f32.mrb[0].mxu0
    %v1441 = vadd.f32 %v1328, %v1440
    %1442 = vdwg.mxu0
    %v1443 = vlaneseq
    %v1444 = vshrl.u32 %v1443, 7
    %v1445 = vsub.s32 2, %v1444
    %v1446 = vrot.slane %v66, %v1445
    %v1447 = vlaneseq
    %v1448 = vshrl.u32 %v1447, 7
    %v1449 = vsub.s32 6, %v1448
    %v1450 = vrot.slane %v66, %v1449
    %v1453 = vlaneseq
    %v1454 = vshrl.u32 %v1453, 7
    %v1455 = vsub.s32 2, %v1454
    %v1456 = vrot.slane %v1446, %v1455
    %v1457 = vlaneseq
    %v1458 = vshrl.u32 %v1457, 7
    %v1459 = vsub.s32 2, %v1458
    %v1460 = vrot.slane %v1450, %v1459
    %v1461 = vadd.f32 %v1397, %v1456
    %v1462 = vadd.f32 %v1399, %v1460
    %v1463 = vadd.f32 %v1403, %v1456
    %v1464 = vadd.f32 %v1405, %v1460
    %v1465 = vadd.f32 %v1409, %v1456
    %v1466 = vadd.f32 %v1411, %v1460
    %v1467 = vadd.f32 %v1415, %v1456
    %v1468 = vadd.f32 %v1417, %v1460
    %v1469 = vadd.f32 %v1421, %v1456
    %v1470 = vadd.f32 %v1423, %v1460
    %v1471 = vadd.f32 %v1427, %v1456
    %v1472 = vadd.f32 %v1429, %v1460
    %v1473 = vadd.f32 %v1433, %v1456
    %v1474 = vadd.f32 %v1435, %v1460
    %v1475 = vadd.f32 %v1439, %v1456
    %v1476 = vadd.f32 %v1441, %v1460
    %1477 = vst [vmem:[#allocation2] sm:$0xff] %v1461
    %1478 = vst [vmem:[#allocation2 + $0x8] sm:$0xff] %v1462
    %1479 = vst [vmem:[#allocation2 + $0x10] sm:$0xff] %v1463
    %1480 = vst [vmem:[#allocation2 + $0x18] sm:$0xff] %v1464
    %1481 = vst [vmem:[#allocation2 + $0x20] sm:$0xff] %v1465
    %1482 = vst [vmem:[#allocation2 + $0x28] sm:$0xff] %v1466
    %1483 = vst [vmem:[#allocation2 + $0x30] sm:$0xff] %v1467
    %1484 = vst [vmem:[#allocation2 + $0x38] sm:$0xff] %v1468
    %1485 = vst [vmem:[#allocation2 + $0x40] sm:$0xff] %v1469
    %1486 = vst [vmem:[#allocation2 + $0x48] sm:$0xff] %v1470
    %1487 = vst [vmem:[#allocation2 + $0x50] sm:$0xff] %v1471
    %1488 = vst [vmem:[#allocation2 + $0x58] sm:$0xff] %v1472
    %1489 = vst [vmem:[#allocation2 + $0x60] sm:$0xff] %v1473
    %1490 = vst [vmem:[#allocation2 + $0x68] sm:$0xff] %v1474
    %1491 = vst [vmem:[#allocation2 + $0x70] sm:$0xff] %v1475
    %1492 = vst [vmem:[#allocation2 + $0x78] sm:$0xff] %v1476
    %v1493 = vld [vmem:[#allocation3] sm:$0xff]
    %v1494 = vld [vmem:[#allocation3 + $0x8] sm:$0xff]
    %v1495 = vld [vmem:[#allocation3 + $0x10] sm:$0xff]
    %v1496 = vld [vmem:[#allocation3 + $0x18] sm:$0xff]
    %v1497 = vld [vmem:[#allocation3 + $0x20] sm:$0xff]
    %v1498 = vld [vmem:[#allocation3 + $0x28] sm:$0xff]
    %v1499 = vld [vmem:[#allocation3 + $0x30] sm:$0xff]
    %v1500 = vld [vmem:[#allocation3 + $0x38] sm:$0xff]
    %v1501 = vld [vmem:[#allocation3 + $0x40] sm:$0xff]
    %v1502 = vld [vmem:[#allocation3 + $0x48] sm:$0xff]
    %v1503 = vld [vmem:[#allocation3 + $0x50] sm:$0xff]
    %v1504 = vld [vmem:[#allocation3 + $0x58] sm:$0xff]
    %v1505 = vld [vmem:[#allocation3 + $0x60] sm:$0xff]
    %v1506 = vld [vmem:[#allocation3 + $0x68] sm:$0xff]
    %v1507 = vld [vmem:[#allocation3 + $0x70] sm:$0xff]
    %v1508 = vld [vmem:[#allocation3 + $0x78] sm:$0xff]
    %v1509 = vld [vmem:[#allocation2] sm:$0xff]
    %v1510 = vld [vmem:[#allocation2 + $0x8] sm:$0xff]
    %1511 = vmatprep.subr.mxu0 %v1494
    %1512 = vmatpush1.msra.mxu0 %v1493
    %1513 = vmatprep.subr.mxu0 %v1496
    %1514 = vmatpush1.msra.mxu0 %v1495
    %1515 = vmatprep.subr.mxu0 %v1498
    %1516 = vmatpush1.msra.mxu0 %v1497
    %1517 = vmatprep.subr.mxu0 %v1500
    %1518 = vmatpush1.msra.mxu0 %v1499
    %1519 = vmatprep.subr.mxu0 %v1502
    %1520 = vmatpush1.msra.mxu0 %v1501
    %1521 = vmatprep.subr.mxu0 %v1504
    %1522 = vmatpush1.msra.mxu0 %v1503
    %1523 = vmatprep.subr.mxu0 %v1506
    %1524 = vmatpush1.msra.mxu0 %v1505
    %1525 = vmatprep.subr.mxu0 %v1508
    %1526 = vmatpush1.msra.mxu0 %v1507
    %1527 = vmatprep.subr.mxu0 0.0
    %1528 = vmatpush1.msra.mxu0 0.0
    %1529 = vmatprep.subr.mxu0 0.0
    %1530 = vmatpush1.msra.mxu0 0.0
    %1531 = vmatprep.subr.mxu0 0.0
    %1532 = vmatpush1.msra.mxu0 0.0
    %1533 = vmatprep.subr.mxu0 0.0
    %1534 = vmatpush1.msra.mxu0 0.0
    %1535 = vmatprep.subr.mxu0 0.0
    %1536 = vmatpush1.msra.mxu0 0.0
    %1537 = vmatprep.subr.mxu0 0.0
    %1538 = vmatpush1.msra.mxu0 0.0
    %1539 = vmatprep.subr.mxu0 0.0
    %1540 = vmatpush1.msra.mxu0 0.0
    %1541 = vmatprep.subr.mxu0 0.0
    %1542 = vmatpush1.msra.mxu0 0.0
    %1543 = vmatprep.subr.mxu0 0.0
    %1544 = vmatpush1.msra.mxu0 0.0
    %1545 = vmatprep.subr.mxu0 0.0
    %1546 = vmatpush1.msra.mxu0 0.0
    %1547 = vmatprep.subr.mxu0 0.0
    %1548 = vmatpush1.msra.mxu0 0.0
    %1549 = vmatprep.subr.mxu0 0.0
    %1550 = vmatpush1.msra.mxu0 0.0
    %1551 = vmatprep.subr.mxu0 0.0
    %1552 = vmatpush1.msra.mxu0 0.0
    %1553 = vmatprep.subr.mxu0 0.0
    %1554 = vmatpush1.msra.mxu0 0.0
    %1555 = vmatprep.subr.mxu0 0.0
    %1556 = vmatpush1.msra.mxu0 0.0
    %1557 = vmatprep.subr.mxu0 0.0
    %1558 = vmatpush1.msra.mxu0 0.0
    %1559 = vmatprep.subr.mxu0 0.0
    %1560 = vmatpush1.msra.mxu0 0.0
    %1561 = vmatprep.subr.mxu0 0.0
    %1562 = vmatpush1.msra.mxu0 0.0
    %1563 = vmatprep.subr.mxu0 0.0
    %1564 = vmatpush1.msra.mxu0 0.0
    %1565 = vmatprep.subr.mxu0 0.0
    %1566 = vmatpush1.msra.mxu0 0.0
    %1567 = vmatprep.subr.mxu0 0.0
    %1568 = vmatpush1.msra.mxu0 0.0
    %1569 = vmatprep.subr.mxu0 0.0
    %1570 = vmatpush1.msra.mxu0 0.0
    %1571 = vmatprep.subr.mxu0 0.0
    %1572 = vmatpush1.msra.mxu0 0.0
    %1573 = vmatprep.subr.mxu0 0.0
    %1574 = vmatpush1.msra.mxu0 0.0
    %1575 = vmatprep.mubr.f32.mxu0 0.0
    %1576 = vmatmul.mubr.f32.gmra.mrb[0].mxu0 %v310
    %v1577 = vpop.f32.mrb[0].mxu0
    %v1578 = vadd.f32 0.0, %v1577
    %v1579 = vpop.f32.mrb[0].mxu0
    %v1580 = vadd.f32 0.0, %v1579
    %1581 = vdwg.mxu0
    %v1582 = vadd.f32 %v1509, %v1578
    %v1583 = vadd.f32 %v1510, %v1580
    %v1584 = vxor.u32 %v1582, 2147483648
    %v1585 = vmul.f32 %v1584, 1.442695
    %v1586 = vpow.pop %v1585
    %v1587 = vadd.f32 %v1586, 1.0
    %v1588 = vrcp.pop %v1587
    %v1589 = vmul.f32 1.0, %v1588
    %v1590 = vtanh.pop %v1583
    %v1591 = vxor.u32 %v1583, 2147483648
    %v1592 = vmul.f32 %v1591, 1.442695
    %v1593 = vpow.pop %v1592
    %v1594 = vadd.f32 %v1593, 1.0
    %v1595 = vrcp.pop %v1594
    %v1596 = vmul.f32 1.0, %v1595
    %v1597 = vmul.f32 %v1589, 0.0
    %v1598 = vmul.f32 %v1589, %v1590
    %1600 = vrot.lane.b32.xlu0 %v1598, 64
    %v1601 = vpop.permute.xlu0 %1600
    %v1603 = vadd.f32 %v1597, %v1601
    %v1604 = vtanh.pop %v1603
    %v1605 = vmul.f32 %v1596, %v1604
    %v1606 = vld [vmem:[#allocation2 + $0x10] sm:$0xff]
    %v1607 = vld [vmem:[#allocation2 + $0x18] sm:$0xff]
    %1609 = vrot.lane.b32.xlu0 %v1605, 64
    %v1610 = vpop.permute.xlu0 %1609
    %v1611 = vsel %vm308, %v1610, 0
    %1613 = vmatprep.subr.mxu0 %v1494
    %1614 = vmatpush1.msra.mxu0 %v1493
    %1615 = vmatprep.subr.mxu0 %v1496
    %1616 = vmatpush1.msra.mxu0 %v1495
    %1617 = vmatprep.subr.mxu0 %v1498
    %1618 = vmatpush1.msra.mxu0 %v1497
    %1619 = vmatprep.subr.mxu0 %v1500
    %1620 = vmatpush1.msra.mxu0 %v1499
    %1621 = vmatprep.subr.mxu0 %v1502
    %1622 = vmatpush1.msra.mxu0 %v1501
    %1623 = vmatprep.subr.mxu0 %v1504
    %1624 = vmatpush1.msra.mxu0 %v1503
    %1625 = vmatprep.subr.mxu0 %v1506
    %1626 = vmatpush1.msra.mxu0 %v1505
    %1627 = vmatprep.subr.mxu0 %v1508
    %1628 = vmatpush1.msra.mxu0 %v1507
    %1629 = vmatprep.subr.mxu0 0.0
    %1630 = vmatpush1.msra.mxu0 0.0
    %1631 = vmatprep.subr.mxu0 0.0
    %1632 = vmatpush1.msra.mxu0 0.0
    %1633 = vmatprep.subr.mxu0 0.0
    %1634 = vmatpush1.msra.mxu0 0.0
    %1635 = vmatprep.subr.mxu0 0.0
    %1636 = vmatpush1.msra.mxu0 0.0
    %1637 = vmatprep.subr.mxu0 0.0
    %1638 = vmatpush1.msra.mxu0 0.0
    %1639 = vmatprep.subr.mxu0 0.0
    %1640 = vmatpush1.msra.mxu0 0.0
    %1641 = vmatprep.subr.mxu0 0.0
    %1642 = vmatpush1.msra.mxu0 0.0
    %1643 = vmatprep.subr.mxu0 0.0
    %1644 = vmatpush1.msra.mxu0 0.0
    %1645 = vmatprep.subr.mxu0 0.0
    %1646 = vmatpush1.msra.mxu0 0.0
    %1647 = vmatprep.subr.mxu0 0.0
    %1648 = vmatpush1.msra.mxu0 0.0
    %1649 = vmatprep.subr.mxu0 0.0
    %1650 = vmatpush1.msra.mxu0 0.0
    %1651 = vmatprep.subr.mxu0 0.0
    %1652 = vmatpush1.msra.mxu0 0.0
    %1653 = vmatprep.subr.mxu0 0.0
    %1654 = vmatpush1.msra.mxu0 0.0
    %1655 = vmatprep.subr.mxu0 0.0
    %1656 = vmatpush1.msra.mxu0 0.0
    %1657 = vmatprep.subr.mxu0 0.0
    %1658 = vmatpush1.msra.mxu0 0.0
    %1659 = vmatprep.subr.mxu0 0.0
    %1660 = vmatpush1.msra.mxu0 0.0
    %1661 = vmatprep.subr.mxu0 0.0
    %1662 = vmatpush1.msra.mxu0 0.0
    %1663 = vmatprep.subr.mxu0 0.0
    %1664 = vmatpush1.msra.mxu0 0.0
    %1665 = vmatprep.subr.mxu0 0.0
    %1666 = vmatpush1.msra.mxu0 0.0
    %1667 = vmatprep.subr.mxu0 0.0
    %1668 = vmatpush1.msra.mxu0 0.0
    %1669 = vmatprep.subr.mxu0 0.0
    %1670 = vmatpush1.msra.mxu0 0.0
    %1671 = vmatprep.subr.mxu0 0.0
    %1672 = vmatpush1.msra.mxu0 0.0
    %1673 = vmatprep.subr.mxu0 0.0
    %1674 = vmatpush1.msra.mxu0 0.0
    %1675 = vmatprep.subr.mxu0 0.0
    %1676 = vmatpush1.msra.mxu0 0.0
    %1677 = vmatprep.mubr.f32.mxu0 0.0
    %1678 = vmatmul.mubr.f32.gmra.mrb[0].mxu0 %v1611
    %v1679 = vpop.f32.mrb[0].mxu0
    %v1680 = vadd.f32 0.0, %v1679
    %v1681 = vpop.f32.mrb[0].mxu0
    %v1682 = vadd.f32 0.0, %v1681
    %1683 = vdwg.mxu0
    %v1684 = vadd.f32 %v1606, %v1680
    %v1685 = vadd.f32 %v1607, %v1682
    %v1686 = vxor.u32 %v1684, 2147483648
    %v1687 = vmul.f32 %v1686, 1.442695
    %v1688 = vpow.pop %v1687
    %v1689 = vadd.f32 %v1688, 1.0
    %v1690 = vrcp.pop %v1689
    %v1691 = vmul.f32 1.0, %v1690
    %v1692 = vtanh.pop %v1685
    %v1693 = vxor.u32 %v1685, 2147483648
    %v1694 = vmul.f32 %v1693, 1.442695
    %v1695 = vpow.pop %v1694
    %v1696 = vadd.f32 %v1695, 1.0
    %v1697 = vrcp.pop %v1696
    %v1698 = vmul.f32 1.0, %v1697
    %v1699 = vmul.f32 %v1691, %v1603
    %v1700 = vmul.f32 %v1691, %v1692
    %1702 = vrot.lane.b32.xlu0 %v1700, 64
    %v1703 = vpop.permute.xlu0 %1702
    %v1705 = vadd.f32 %v1699, %v1703
    %v1706 = vtanh.pop %v1705
    %v1707 = vmul.f32 %v1698, %v1706
    %v1708 = vld [vmem:[#allocation2 + $0x20] sm:$0xff]
    %v1709 = vld [vmem:[#allocation2 + $0x28] sm:$0xff]
    %1711 = vrot.lane.b32.xlu0 %v1707, 64
    %v1712 = vpop.permute.xlu0 %1711
    %v1713 = vsel %vm308, %v1712, 0
    %1715 = vmatprep.subr.mxu0 %v1494
    %1716 = vmatpush1.msra.mxu0 %v1493
    %1717 = vmatprep.subr.mxu0 %v1496
    %1718 = vmatpush1.msra.mxu0 %v1495
    %1719 = vmatprep.subr.mxu0 %v1498
    %1720 = vmatpush1.msra.mxu0 %v1497
    %1721 = vmatprep.subr.mxu0 %v1500
    %1722 = vmatpush1.msra.mxu0 %v1499
    %1723 = vmatprep.subr.mxu0 %v1502
    %1724 = vmatpush1.msra.mxu0 %v1501
    %1725 = vmatprep.subr.mxu0 %v1504
    %1726 = vmatpush1.msra.mxu0 %v1503
    %1727 = vmatprep.subr.mxu0 %v1506
    %1728 = vmatpush1.msra.mxu0 %v1505
    %1729 = vmatprep.subr.mxu0 %v1508
    %1730 = vmatpush1.msra.mxu0 %v1507
    %1731 = vmatprep.subr.mxu0 0.0
    %1732 = vmatpush1.msra.mxu0 0.0
    %1733 = vmatprep.subr.mxu0 0.0
    %1734 = vmatpush1.msra.mxu0 0.0
    %1735 = vmatprep.subr.mxu0 0.0
    %1736 = vmatpush1.msra.mxu0 0.0
    %1737 = vmatprep.subr.mxu0 0.0
    %1738 = vmatpush1.msra.mxu0 0.0
    %1739 = vmatprep.subr.mxu0 0.0
    %1740 = vmatpush1.msra.mxu0 0.0
    %1741 = vmatprep.subr.mxu0 0.0
    %1742 = vmatpush1.msra.mxu0 0.0
    %1743 = vmatprep.subr.mxu0 0.0
    %1744 = vmatpush1.msra.mxu0 0.0
    %1745 = vmatprep.subr.mxu0 0.0
    %1746 = vmatpush1.msra.mxu0 0.0
    %1747 = vmatprep.subr.mxu0 0.0
    %1748 = vmatpush1.msra.mxu0 0.0
    %1749 = vmatprep.subr.mxu0 0.0
    %1750 = vmatpush1.msra.mxu0 0.0
    %1751 = vmatprep.subr.mxu0 0.0
    %1752 = vmatpush1.msra.mxu0 0.0
    %1753 = vmatprep.subr.mxu0 0.0
    %1754 = vmatpush1.msra.mxu0 0.0
    %1755 = vmatprep.subr.mxu0 0.0
    %1756 = vmatpush1.msra.mxu0 0.0
    %1757 = vmatprep.subr.mxu0 0.0
    %1758 = vmatpush1.msra.mxu0 0.0
    %1759 = vmatprep.subr.mxu0 0.0
    %1760 = vmatpush1.msra.mxu0 0.0
    %1761 = vmatprep.subr.mxu0 0.0
    %1762 = vmatpush1.msra.mxu0 0.0
    %1763 = vmatprep.subr.mxu0 0.0
    %1764 = vmatpush1.msra.mxu0 0.0
    %1765 = vmatprep.subr.mxu0 0.0
    %1766 = vmatpush1.msra.mxu0 0.0
    %1767 = vmatprep.subr.mxu0 0.0
    %1768 = vmatpush1.msra.mxu0 0.0
    %1769 = vmatprep.subr.mxu0 0.0
    %1770 = vmatpush1.msra.mxu0 0.0
    %1771 = vmatprep.subr.mxu0 0.0
    %1772 = vmatpush1.msra.mxu0 0.0
    %1773 = vmatprep.subr.mxu0 0.0
    %1774 = vmatpush1.msra.mxu0 0.0
    %1775 = vmatprep.subr.mxu0 0.0
    %1776 = vmatpush1.msra.mxu0 0.0
    %1777 = vmatprep.subr.mxu0 0.0
    %1778 = vmatpush1.msra.mxu0 0.0
    %1779 = vmatprep.mubr.f32.mxu0 0.0
    %1780 = vmatmul.mubr.f32.gmra.mrb[0].mxu0 %v1713
    %v1781 = vpop.f32.mrb[0].mxu0
    %v1782 = vadd.f32 0.0, %v1781
    %v1783 = vpop.f32.mrb[0].mxu0
    %v1784 = vadd.f32 0.0, %v1783
    %1785 = vdwg.mxu0
    %v1786 = vadd.f32 %v1708, %v1782
    %v1787 = vadd.f32 %v1709, %v1784
    %v1788 = vxor.u32 %v1786, 2147483648
    %v1789 = vmul.f32 %v1788, 1.442695
    %v1790 = vpow.pop %v1789
    %v1791 = vadd.f32 %v1790, 1.0
    %v1792 = vrcp.pop %v1791
    %v1793 = vmul.f32 1.0, %v1792
    %v1794 = vtanh.pop %v1787
    %v1795 = vxor.u32 %v1787, 2147483648
    %v1796 = vmul.f32 %v1795, 1.442695
    %v1797 = vpow.pop %v1796
    %v1798 = vadd.f32 %v1797, 1.0
    %v1799 = vrcp.pop %v1798
    %v1800 = vmul.f32 1.0, %v1799
    %v1801 = vmul.f32 %v1793, %v1705
    %v1802 = vmul.f32 %v1793, %v1794
    %1804 = vrot.lane.b32.xlu0 %v1802, 64
    %v1805 = vpop.permute.xlu0 %1804
    %v1807 = vadd.f32 %v1801, %v1805
    %v1808 = vtanh.pop %v1807
    %v1809 = vmul.f32 %v1800, %v1808
    %v1810 = vld [vmem:[#allocation2 + $0x30] sm:$0xff]
    %v1811 = vld [vmem:[#allocation2 + $0x38] sm:$0xff]
    %1813 = vrot.lane.b32.xlu0 %v1809, 64
    %v1814 = vpop.permute.xlu0 %1813
    %v1815 = vsel %vm308, %v1814, 0
    %1817 = vmatprep.subr.mxu0 %v1494
    %1818 = vmatpush1.msra.mxu0 %v1493
    %1819 = vmatprep.subr.mxu0 %v1496
    %1820 = vmatpush1.msra.mxu0 %v1495
    %1821 = vmatprep.subr.mxu0 %v1498
    %1822 = vmatpush1.msra.mxu0 %v1497
    %1823 = vmatprep.subr.mxu0 %v1500
    %1824 = vmatpush1.msra.mxu0 %v1499
    %1825 = vmatprep.subr.mxu0 %v1502
    %1826 = vmatpush1.msra.mxu0 %v1501
    %1827 = vmatprep.subr.mxu0 %v1504
    %1828 = vmatpush1.msra.mxu0 %v1503
    %1829 = vmatprep.subr.mxu0 %v1506
    %1830 = vmatpush1.msra.mxu0 %v1505
    %1831 = vmatprep.subr.mxu0 %v1508
    %1832 = vmatpush1.msra.mxu0 %v1507
    %1833 = vmatprep.subr.mxu0 0.0
    %1834 = vmatpush1.msra.mxu0 0.0
    %1835 = vmatprep.subr.mxu0 0.0
    %1836 = vmatpush1.msra.mxu0 0.0
    %1837 = vmatprep.subr.mxu0 0.0
    %1838 = vmatpush1.msra.mxu0 0.0
    %1839 = vmatprep.subr.mxu0 0.0
    %1840 = vmatpush1.msra.mxu0 0.0
    %1841 = vmatprep.subr.mxu0 0.0
    %1842 = vmatpush1.msra.mxu0 0.0
    %1843 = vmatprep.subr.mxu0 0.0
    %1844 = vmatpush1.msra.mxu0 0.0
    %1845 = vmatprep.subr.mxu0 0.0
    %1846 = vmatpush1.msra.mxu0 0.0
    %1847 = vmatprep.subr.mxu0 0.0
    %1848 = vmatpush1.msra.mxu0 0.0
    %1849 = vmatprep.subr.mxu0 0.0
    %1850 = vmatpush1.msra.mxu0 0.0
    %1851 = vmatprep.subr.mxu0 0.0
    %1852 = vmatpush1.msra.mxu0 0.0
    %1853 = vmatprep.subr.mxu0 0.0
    %1854 = vmatpush1.msra.mxu0 0.0
    %1855 = vmatprep.subr.mxu0 0.0
    %1856 = vmatpush1.msra.mxu0 0.0
    %1857 = vmatprep.subr.mxu0 0.0
    %1858 = vmatpush1.msra.mxu0 0.0
    %1859 = vmatprep.subr.mxu0 0.0
    %1860 = vmatpush1.msra.mxu0 0.0
    %1861 = vmatprep.subr.mxu0 0.0
    %1862 = vmatpush1.msra.mxu0 0.0
    %1863 = vmatprep.subr.mxu0 0.0
    %1864 = vmatpush1.msra.mxu0 0.0
    %1865 = vmatprep.subr.mxu0 0.0
    %1866 = vmatpush1.msra.mxu0 0.0
    %1867 = vmatprep.subr.mxu0 0.0
    %1868 = vmatpush1.msra.mxu0 0.0
    %1869 = vmatprep.subr.mxu0 0.0
    %1870 = vmatpush1.msra.mxu0 0.0
    %1871 = vmatprep.subr.mxu0 0.0
    %1872 = vmatpush1.msra.mxu0 0.0
    %1873 = vmatprep.subr.mxu0 0.0
    %1874 = vmatpush1.msra.mxu0 0.0
    %1875 = vmatprep.subr.mxu0 0.0
    %1876 = vmatpush1.msra.mxu0 0.0
    %1877 = vmatprep.subr.mxu0 0.0
    %1878 = vmatpush1.msra.mxu0 0.0
    %1879 = vmatprep.subr.mxu0 0.0
    %1880 = vmatpush1.msra.mxu0 0.0
    %1881 = vmatprep.mubr.f32.mxu0 0.0
    %1882 = vmatmul.mubr.f32.gmra.mrb[0].mxu0 %v1815
    %v1883 = vpop.f32.mrb[0].mxu0
    %v1884 = vadd.f32 0.0, %v1883
    %v1885 = vpop.f32.mrb[0].mxu0
    %v1886 = vadd.f32 0.0, %v1885
    %1887 = vdwg.mxu0
    %v1888 = vadd.f32 %v1810, %v1884
    %v1889 = vadd.f32 %v1811, %v1886
    %v1890 = vxor.u32 %v1888, 2147483648
    %v1891 = vmul.f32 %v1890, 1.442695
    %v1892 = vpow.pop %v1891
    %v1893 = vadd.f32 %v1892, 1.0
    %v1894 = vrcp.pop %v1893
    %v1895 = vmul.f32 1.0, %v1894
    %v1896 = vtanh.pop %v1889
    %v1897 = vxor.u32 %v1889, 2147483648
    %v1898 = vmul.f32 %v1897, 1.442695
    %v1899 = vpow.pop %v1898
    %v1900 = vadd.f32 %v1899, 1.0
    %v1901 = vrcp.pop %v1900
    %v1902 = vmul.f32 1.0, %v1901
    %v1903 = vmul.f32 %v1895, %v1807
    %v1904 = vmul.f32 %v1895, %v1896
    %1906 = vrot.lane.b32.xlu0 %v1904, 64
    %v1907 = vpop.permute.xlu0 %1906
    %v1909 = vadd.f32 %v1903, %v1907
    %v1910 = vtanh.pop %v1909
    %v1911 = vmul.f32 %v1902, %v1910
    %v1912 = vld [vmem:[#allocation2 + $0x40] sm:$0xff]
    %v1913 = vld [vmem:[#allocation2 + $0x48] sm:$0xff]
    %1915 = vrot.lane.b32.xlu0 %v1911, 64
    %v1916 = vpop.permute.xlu0 %1915
    %v1917 = vsel %vm308, %v1916, 0
    %1919 = vmatprep.subr.mxu0 %v1494
    %1920 = vmatpush1.msra.mxu0 %v1493
    %1921 = vmatprep.subr.mxu0 %v1496
    %1922 = vmatpush1.msra.mxu0 %v1495
    %1923 = vmatprep.subr.mxu0 %v1498
    %1924 = vmatpush1.msra.mxu0 %v1497
    %1925 = vmatprep.subr.mxu0 %v1500
    %1926 = vmatpush1.msra.mxu0 %v1499
    %1927 = vmatprep.subr.mxu0 %v1502
    %1928 = vmatpush1.msra.mxu0 %v1501
    %1929 = vmatprep.subr.mxu0 %v1504
    %1930 = vmatpush1.msra.mxu0 %v1503
    %1931 = vmatprep.subr.mxu0 %v1506
    %1932 = vmatpush1.msra.mxu0 %v1505
    %1933 = vmatprep.subr.mxu0 %v1508
    %1934 = vmatpush1.msra.mxu0 %v1507
    %1935 = vmatprep.subr.mxu0 0.0
    %1936 = vmatpush1.msra.mxu0 0.0
    %1937 = vmatprep.subr.mxu0 0.0
    %1938 = vmatpush1.msra.mxu0 0.0
    %1939 = vmatprep.subr.mxu0 0.0
    %1940 = vmatpush1.msra.mxu0 0.0
    %1941 = vmatprep.subr.mxu0 0.0
    %1942 = vmatpush1.msra.mxu0 0.0
    %1943 = vmatprep.subr.mxu0 0.0
    %1944 = vmatpush1.msra.mxu0 0.0
    %1945 = vmatprep.subr.mxu0 0.0
    %1946 = vmatpush1.msra.mxu0 0.0
    %1947 = vmatprep.subr.mxu0 0.0
    %1948 = vmatpush1.msra.mxu0 0.0
    %1949 = vmatprep.subr.mxu0 0.0
    %1950 = vmatpush1.msra.mxu0 0.0
    %1951 = vmatprep.subr.mxu0 0.0
    %1952 = vmatpush1.msra.mxu0 0.0
    %1953 = vmatprep.subr.mxu0 0.0
    %1954 = vmatpush1.msra.mxu0 0.0
    %1955 = vmatprep.subr.mxu0 0.0
    %1956 = vmatpush1.msra.mxu0 0.0
    %1957 = vmatprep.subr.mxu0 0.0
    %1958 = vmatpush1.msra.mxu0 0.0
    %1959 = vmatprep.subr.mxu0 0.0
    %1960 = vmatpush1.msra.mxu0 0.0
    %1961 = vmatprep.subr.mxu0 0.0
    %1962 = vmatpush1.msra.mxu0 0.0
    %1963 = vmatprep.subr.mxu0 0.0
    %1964 = vmatpush1.msra.mxu0 0.0
    %1965 = vmatprep.subr.mxu0 0.0
    %1966 = vmatpush1.msra.mxu0 0.0
    %1967 = vmatprep.subr.mxu0 0.0
    %1968 = vmatpush1.msra.mxu0 0.0
    %1969 = vmatprep.subr.mxu0 0.0
    %1970 = vmatpush1.msra.mxu0 0.0
    %1971 = vmatprep.subr.mxu0 0.0
    %1972 = vmatpush1.msra.mxu0 0.0
    %1973 = vmatprep.subr.mxu0 0.0
    %1974 = vmatpush1.msra.mxu0 0.0
    %1975 = vmatprep.subr.mxu0 0.0
    %1976 = vmatpush1.msra.mxu0 0.0
    %1977 = vmatprep.subr.mxu0 0.0
    %1978 = vmatpush1.msra.mxu0 0.0
    %1979 = vmatprep.subr.mxu0 0.0
    %1980 = vmatpush1.msra.mxu0 0.0
    %1981 = vmatprep.subr.mxu0 0.0
    %1982 = vmatpush1.msra.mxu0 0.0
    %1983 = vmatprep.mubr.f32.mxu0 0.0
    %1984 = vmatmul.mubr.f32.gmra.mrb[0].mxu0 %v1917
    %v1985 = vpop.f32.mrb[0].mxu0
    %v1986 = vadd.f32 0.0, %v1985
    %v1987 = vpop.f32.mrb[0].mxu0
    %v1988 = vadd.f32 0.0, %v1987
    %1989 = vdwg.mxu0
    %v1990 = vadd.f32 %v1912, %v1986
    %v1991 = vadd.f32 %v1913, %v1988
    %v1992 = vxor.u32 %v1990, 2147483648
    %v1993 = vmul.f32 %v1992, 1.442695
    %v1994 = vpow.pop %v1993
    %v1995 = vadd.f32 %v1994, 1.0
    %v1996 = vrcp.pop %v1995
    %v1997 = vmul.f32 1.0, %v1996
    %v1998 = vtanh.pop %v1991
    %v1999 = vxor.u32 %v1991, 2147483648
    %v2000 = vmul.f32 %v1999, 1.442695
    %v2001 = vpow.pop %v2000
    %v2002 = vadd.f32 %v2001, 1.0
    %v2003 = vrcp.pop %v2002
    %v2004 = vmul.f32 1.0, %v2003
    %v2005 = vmul.f32 %v1997, %v1909
    %v2006 = vmul.f32 %v1997, %v1998
    %2008 = vrot.lane.b32.xlu0 %v2006, 64
    %v2009 = vpop.permute.xlu0 %2008
    %v2011 = vadd.f32 %v2005, %v2009
    %v2012 = vtanh.pop %v2011
    %v2013 = vmul.f32 %v2004, %v2012
    %v2014 = vld [vmem:[#allocation2 + $0x50] sm:$0xff]
    %v2015 = vld [vmem:[#allocation2 + $0x58] sm:$0xff]
    %2017 = vrot.lane.b32.xlu0 %v2013, 64
    %v2018 = vpop.permute.xlu0 %2017
    %v2019 = vsel %vm308, %v2018, 0
    %2021 = vmatprep.subr.mxu0 %v1494
    %2022 = vmatpush1.msra.mxu0 %v1493
    %2023 = vmatprep.subr.mxu0 %v1496
    %2024 = vmatpush1.msra.mxu0 %v1495
    %2025 = vmatprep.subr.mxu0 %v1498
    %2026 = vmatpush1.msra.mxu0 %v1497
    %2027 = vmatprep.subr.mxu0 %v1500
    %2028 = vmatpush1.msra.mxu0 %v1499
    %2029 = vmatprep.subr.mxu0 %v1502
    %2030 = vmatpush1.msra.mxu0 %v1501
    %2031 = vmatprep.subr.mxu0 %v1504
    %2032 = vmatpush1.msra.mxu0 %v1503
    %2033 = vmatprep.subr.mxu0 %v1506
    %2034 = vmatpush1.msra.mxu0 %v1505
    %2035 = vmatprep.subr.mxu0 %v1508
    %2036 = vmatpush1.msra.mxu0 %v1507
    %2037 = vmatprep.subr.mxu0 0.0
    %2038 = vmatpush1.msra.mxu0 0.0
    %2039 = vmatprep.subr.mxu0 0.0
    %2040 = vmatpush1.msra.mxu0 0.0
    %2041 = vmatprep.subr.mxu0 0.0
    %2042 = vmatpush1.msra.mxu0 0.0
    %2043 = vmatprep.subr.mxu0 0.0
    %2044 = vmatpush1.msra.mxu0 0.0
    %2045 = vmatprep.subr.mxu0 0.0
    %2046 = vmatpush1.msra.mxu0 0.0
    %2047 = vmatprep.subr.mxu0 0.0
    %2048 = vmatpush1.msra.mxu0 0.0
    %2049 = vmatprep.subr.mxu0 0.0
    %2050 = vmatpush1.msra.mxu0 0.0
    %2051 = vmatprep.subr.mxu0 0.0
    %2052 = vmatpush1.msra.mxu0 0.0
    %2053 = vmatprep.subr.mxu0 0.0
    %2054 = vmatpush1.msra.mxu0 0.0
    %2055 = vmatprep.subr.mxu0 0.0
    %2056 = vmatpush1.msra.mxu0 0.0
    %2057 = vmatprep.subr.mxu0 0.0
    %2058 = vmatpush1.msra.mxu0 0.0
    %2059 = vmatprep.subr.mxu0 0.0
    %2060 = vmatpush1.msra.mxu0 0.0
    %2061 = vmatprep.subr.mxu0 0.0
    %2062 = vmatpush1.msra.mxu0 0.0
    %2063 = vmatprep.subr.mxu0 0.0
    %2064 = vmatpush1.msra.mxu0 0.0
    %2065 = vmatprep.subr.mxu0 0.0
    %2066 = vmatpush1.msra.mxu0 0.0
    %2067 = vmatprep.subr.mxu0 0.0
    %2068 = vmatpush1.msra.mxu0 0.0
    %2069 = vmatprep.subr.mxu0 0.0
    %2070 = vmatpush1.msra.mxu0 0.0
    %2071 = vmatprep.subr.mxu0 0.0
    %2072 = vmatpush1.msra.mxu0 0.0
    %2073 = vmatprep.subr.mxu0 0.0
    %2074 = vmatpush1.msra.mxu0 0.0
    %2075 = vmatprep.subr.mxu0 0.0
    %2076 = vmatpush1.msra.mxu0 0.0
    %2077 = vmatprep.subr.mxu0 0.0
    %2078 = vmatpush1.msra.mxu0 0.0
    %2079 = vmatprep.subr.mxu0 0.0
    %2080 = vmatpush1.msra.mxu0 0.0
    %2081 = vmatprep.subr.mxu0 0.0
    %2082 = vmatpush1.msra.mxu0 0.0
    %2083 = vmatprep.subr.mxu0 0.0
    %2084 = vmatpush1.msra.mxu0 0.0
    %2085 = vmatprep.mubr.f32.mxu0 0.0
    %2086 = vmatmul.mubr.f32.gmra.mrb[0].mxu0 %v2019
    %v2087 = vpop.f32.mrb[0].mxu0
    %v2088 = vadd.f32 0.0, %v2087
    %v2089 = vpop.f32.mrb[0].mxu0
    %v2090 = vadd.f32 0.0, %v2089
    %2091 = vdwg.mxu0
    %v2092 = vadd.f32 %v2014, %v2088
    %v2093 = vadd.f32 %v2015, %v2090
    %v2094 = vxor.u32 %v2092, 2147483648
    %v2095 = vmul.f32 %v2094, 1.442695
    %v2096 = vpow.pop %v2095
    %v2097 = vadd.f32 %v2096, 1.0
    %v2098 = vrcp.pop %v2097
    %v2099 = vmul.f32 1.0, %v2098
    %v2100 = vtanh.pop %v2093
    %v2101 = vxor.u32 %v2093, 2147483648
    %v2102 = vmul.f32 %v2101, 1.442695
    %v2103 = vpow.pop %v2102
    %v2104 = vadd.f32 %v2103, 1.0
    %v2105 = vrcp.pop %v2104
    %v2106 = vmul.f32 1.0, %v2105
    %v2107 = vmul.f32 %v2099, %v2011
    %v2108 = vmul.f32 %v2099, %v2100
    %2110 = vrot.lane.b32.xlu0 %v2108, 64
    %v2111 = vpop.permute.xlu0 %2110
    %v2113 = vadd.f32 %v2107, %v2111
    %v2114 = vtanh.pop %v2113
    %v2115 = vmul.f32 %v2106, %v2114
    %v2116 = vld [vmem:[#allocation2 + $0x60] sm:$0xff]
    %v2117 = vld [vmem:[#allocation2 + $0x68] sm:$0xff]
    %2119 = vrot.lane.b32.xlu0 %v2115, 64
    %v2120 = vpop.permute.xlu0 %2119
    %v2121 = vsel %vm308, %v2120, 0
    %2123 = vmatprep.subr.mxu0 %v1494
    %2124 = vmatpush1.msra.mxu0 %v1493
    %2125 = vmatprep.subr.mxu0 %v1496
    %2126 = vmatpush1.msra.mxu0 %v1495
    %2127 = vmatprep.subr.mxu0 %v1498
    %2128 = vmatpush1.msra.mxu0 %v1497
    %2129 = vmatprep.subr.mxu0 %v1500
    %2130 = vmatpush1.msra.mxu0 %v1499
    %2131 = vmatprep.subr.mxu0 %v1502
    %2132 = vmatpush1.msra.mxu0 %v1501
    %2133 = vmatprep.subr.mxu0 %v1504
    %2134 = vmatpush1.msra.mxu0 %v1503
    %2135 = vmatprep.subr.mxu0 %v1506
    %2136 = vmatpush1.msra.mxu0 %v1505
    %2137 = vmatprep.subr.mxu0 %v1508
    %2138 = vmatpush1.msra.mxu0 %v1507
    %2139 = vmatprep.subr.mxu0 0.0
    %2140 = vmatpush1.msra.mxu0 0.0
    %2141 = vmatprep.subr.mxu0 0.0
    %2142 = vmatpush1.msra.mxu0 0.0
    %2143 = vmatprep.subr.mxu0 0.0
    %2144 = vmatpush1.msra.mxu0 0.0
    %2145 = vmatprep.subr.mxu0 0.0
    %2146 = vmatpush1.msra.mxu0 0.0
    %2147 = vmatprep.subr.mxu0 0.0
    %2148 = vmatpush1.msra.mxu0 0.0
    %2149 = vmatprep.subr.mxu0 0.0
    %2150 = vmatpush1.msra.mxu0 0.0
    %2151 = vmatprep.subr.mxu0 0.0
    %2152 = vmatpush1.msra.mxu0 0.0
    %2153 = vmatprep.subr.mxu0 0.0
    %2154 = vmatpush1.msra.mxu0 0.0
    %2155 = vmatprep.subr.mxu0 0.0
    %2156 = vmatpush1.msra.mxu0 0.0
    %2157 = vmatprep.subr.mxu0 0.0
    %2158 = vmatpush1.msra.mxu0 0.0
    %2159 = vmatprep.subr.mxu0 0.0
    %2160 = vmatpush1.msra.mxu0 0.0
    %2161 = vmatprep.subr.mxu0 0.0
    %2162 = vmatpush1.msra.mxu0 0.0
    %2163 = vmatprep.subr.mxu0 0.0
    %2164 = vmatpush1.msra.mxu0 0.0
    %2165 = vmatprep.subr.mxu0 0.0
    %2166 = vmatpush1.msra.mxu0 0.0
    %2167 = vmatprep.subr.mxu0 0.0
    %2168 = vmatpush1.msra.mxu0 0.0
    %2169 = vmatprep.subr.mxu0 0.0
    %2170 = vmatpush1.msra.mxu0 0.0
    %2171 = vmatprep.subr.mxu0 0.0
    %2172 = vmatpush1.msra.mxu0 0.0
    %2173 = vmatprep.subr.mxu0 0.0
    %2174 = vmatpush1.msra.mxu0 0.0
    %2175 = vmatprep.subr.mxu0 0.0
    %2176 = vmatpush1.msra.mxu0 0.0
    %2177 = vmatprep.subr.mxu0 0.0
    %2178 = vmatpush1.msra.mxu0 0.0
    %2179 = vmatprep.subr.mxu0 0.0
    %2180 = vmatpush1.msra.mxu0 0.0
    %2181 = vmatprep.subr.mxu0 0.0
    %2182 = vmatpush1.msra.mxu0 0.0
    %2183 = vmatprep.subr.mxu0 0.0
    %2184 = vmatpush1.msra.mxu0 0.0
    %2185 = vmatprep.subr.mxu0 0.0
    %2186 = vmatpush1.msra.mxu0 0.0
    %2187 = vmatprep.mubr.f32.mxu0 0.0
    %2188 = vmatmul.mubr.f32.gmra.mrb[0].mxu0 %v2121
    %v2189 = vpop.f32.mrb[0].mxu0
    %v2190 = vadd.f32 0.0, %v2189
    %v2191 = vpop.f32.mrb[0].mxu0
    %v2192 = vadd.f32 0.0, %v2191
    %2193 = vdwg.mxu0
    %v2194 = vadd.f32 %v2116, %v2190
    %v2195 = vadd.f32 %v2117, %v2192
    %v2196 = vxor.u32 %v2194, 2147483648
    %v2197 = vmul.f32 %v2196, 1.442695
    %v2198 = vpow.pop %v2197
    %v2199 = vadd.f32 %v2198, 1.0
    %v2200 = vrcp.pop %v2199
    %v2201 = vmul.f32 1.0, %v2200
    %v2202 = vtanh.pop %v2195
    %v2203 = vxor.u32 %v2195, 2147483648
    %v2204 = vmul.f32 %v2203, 1.442695
    %v2205 = vpow.pop %v2204
    %v2206 = vadd.f32 %v2205, 1.0
    %v2207 = vrcp.pop %v2206
    %v2208 = vmul.f32 1.0, %v2207
    %v2209 = vmul.f32 %v2201, %v2113
    %v2210 = vmul.f32 %v2201, %v2202
    %2212 = vrot.lane.b32.xlu0 %v2210, 64
    %v2213 = vpop.permute.xlu0 %2212
    %v2215 = vadd.f32 %v2209, %v2213
    %v2216 = vtanh.pop %v2215
    %v2217 = vmul.f32 %v2208, %v2216
    %v2218 = vld [vmem:[#allocation2 + $0x70] sm:$0xff]
    %v2219 = vld [vmem:[#allocation2 + $0x78] sm:$0xff]
    %2221 = vrot.lane.b32.xlu0 %v2217, 64
    %v2222 = vpop.permute.xlu0 %2221
    %v2223 = vsel %vm308, %v2222, 0
    %2225 = vmatprep.subr.mxu0 %v1494
    %2226 = vmatpush1.msra.mxu0 %v1493
    %2227 = vmatprep.subr.mxu0 %v1496
    %2228 = vmatpush1.msra.mxu0 %v1495
    %2229 = vmatprep.subr.mxu0 %v1498
    %2230 = vmatpush1.msra.mxu0 %v1497
    %2231 = vmatprep.subr.mxu0 %v1500
    %2232 = vmatpush1.msra.mxu0 %v1499
    %2233 = vmatprep.subr.mxu0 %v1502
    %2234 = vmatpush1.msra.mxu0 %v1501
    %2235 = vmatprep.subr.mxu0 %v1504
    %2236 = vmatpush1.msra.mxu0 %v1503
    %2237 = vmatprep.subr.mxu0 %v1506
    %2238 = vmatpush1.msra.mxu0 %v1505
    %2239 = vmatprep.subr.mxu0 %v1508
    %2240 = vmatpush1.msra.mxu0 %v1507
    %2241 = vmatprep.subr.mxu0 0.0
    %2242 = vmatpush1.msra.mxu0 0.0
    %2243 = vmatprep.subr.mxu0 0.0
    %2244 = vmatpush1.msra.mxu0 0.0
    %2245 = vmatprep.subr.mxu0 0.0
    %2246 = vmatpush1.msra.mxu0 0.0
    %2247 = vmatprep.subr.mxu0 0.0
    %2248 = vmatpush1.msra.mxu0 0.0
    %2249 = vmatprep.subr.mxu0 0.0
    %2250 = vmatpush1.msra.mxu0 0.0
    %2251 = vmatprep.subr.mxu0 0.0
    %2252 = vmatpush1.msra.mxu0 0.0
    %2253 = vmatprep.subr.mxu0 0.0
    %2254 = vmatpush1.msra.mxu0 0.0
    %2255 = vmatprep.subr.mxu0 0.0
    %2256 = vmatpush1.msra.mxu0 0.0
    %2257 = vmatprep.subr.mxu0 0.0
    %2258 = vmatpush1.msra.mxu0 0.0
    %2259 = vmatprep.subr.mxu0 0.0
    %2260 = vmatpush1.msra.mxu0 0.0
    %2261 = vmatprep.subr.mxu0 0.0
    %2262 = vmatpush1.msra.mxu0 0.0
    %2263 = vmatprep.subr.mxu0 0.0
    %2264 = vmatpush1.msra.mxu0 0.0
    %2265 = vmatprep.subr.mxu0 0.0
    %2266 = vmatpush1.msra.mxu0 0.0
    %2267 = vmatprep.subr.mxu0 0.0
    %2268 = vmatpush1.msra.mxu0 0.0
    %2269 = vmatprep.subr.mxu0 0.0
    %2270 = vmatpush1.msra.mxu0 0.0
    %2271 = vmatprep.subr.mxu0 0.0
    %2272 = vmatpush1.msra.mxu0 0.0
    %2273 = vmatprep.subr.mxu0 0.0
    %2274 = vmatpush1.msra.mxu0 0.0
    %2275 = vmatprep.subr.mxu0 0.0
    %2276 = vmatpush1.msra.mxu0 0.0
    %2277 = vmatprep.subr.mxu0 0.0
    %2278 = vmatpush1.msra.mxu0 0.0
    %2279 = vmatprep.subr.mxu0 0.0
    %2280 = vmatpush1.msra.mxu0 0.0
    %2281 = vmatprep.subr.mxu0 0.0
    %2282 = vmatpush1.msra.mxu0 0.0
    %2283 = vmatprep.subr.mxu0 0.0
    %2284 = vmatpush1.msra.mxu0 0.0
    %2285 = vmatprep.subr.mxu0 0.0
    %2286 = vmatpush1.msra.mxu0 0.0
    %2287 = vmatprep.subr.mxu0 0.0
    %2288 = vmatpush1.msra.mxu0 0.0
    %2289 = vmatprep.mubr.f32.mxu0 0.0
    %2290 = vmatmul.mubr.f32.gmra.mrb[0].mxu0 %v2223
    %v2291 = vpop.f32.mrb[0].mxu0
    %v2292 = vadd.f32 0.0, %v2291
    %v2293 = vpop.f32.mrb[0].mxu0
    %v2294 = vadd.f32 0.0, %v2293
    %2295 = vdwg.mxu0
    %v2296 = vadd.f32 %v2218, %v2292
    %v2297 = vadd.f32 %v2219, %v2294
    %v2298 = vxor.u32 %v2296, 2147483648
    %v2299 = vmul.f32 %v2298, 1.442695
    %v2300 = vpow.pop %v2299
    %v2301 = vadd.f32 %v2300, 1.0
    %v2302 = vrcp.pop %v2301
    %v2303 = vmul.f32 1.0, %v2302
    %v2304 = vtanh.pop %v2297
    %v2305 = vxor.u32 %v2297, 2147483648
    %v2306 = vmul.f32 %v2305, 1.442695
    %v2307 = vpow.pop %v2306
    %v2308 = vadd.f32 %v2307, 1.0
    %v2309 = vrcp.pop %v2308
    %v2310 = vmul.f32 1.0, %v2309
    %v2311 = vmul.f32 %v2303, %v2215
    %v2312 = vmul.f32 %v2303, %v2304
    %2314 = vrot.lane.b32.xlu0 %v2312, 64
    %v2315 = vpop.permute.xlu0 %2314
    %v2317 = vadd.f32 %v2311, %v2315
    %v2318 = vtanh.pop %v2317
    %v2319 = vmul.f32 %v2310, %v2318
    %2322 = vrot.lane.b32.xlu0 %v2319, 64
    %v2323 = vpop.permute.xlu0 %2322
    %v2325 = vsel %vm1126, %v1610, %v2323
    %v2328 = vsel %vm1126, %v1712, %v2222
    %v2331 = vsel %vm1126, %v1814, %v2120
    %v2334 = vsel %vm1126, %v1916, %v2018
    %v2335 = vsel %vm1126, %v2018, %v1916
    %v2336 = vsel %vm1126, %v2120, %v1814
    %v2337 = vsel %vm1126, %v2222, %v1712
    %v2338 = vsel %vm1126, %v2323, %v1610
    %v2339 = vld [vmem:[%s5] sm:$0xff]
    %v2340 = vld [vmem:[%s5 + $0x8] sm:$0xff]
    %v2341 = vld [vmem:[%s5 + $0x10] sm:$0xff]
    %v2342 = vld [vmem:[%s5 + $0x18] sm:$0xff]
    %v2343 = vld [vmem:[%s5 + $0x20] sm:$0xff]
    %v2344 = vld [vmem:[%s5 + $0x28] sm:$0xff]
    %v2345 = vld [vmem:[%s5 + $0x30] sm:$0xff]
    %v2346 = vld [vmem:[%s5 + $0x38] sm:$0xff]
    %v2347 = vld [vmem:[%s5 + $0x40] sm:$0xff]
    %v2348 = vld [vmem:[%s5 + $0x48] sm:$0xff]
    %v2349 = vld [vmem:[%s5 + $0x50] sm:$0xff]
    %v2350 = vld [vmem:[%s5 + $0x58] sm:$0xff]
    %v2351 = vld [vmem:[%s5 + $0x60] sm:$0xff]
    %v2352 = vld [vmem:[%s5 + $0x68] sm:$0xff]
    %v2353 = vld [vmem:[%s5 + $0x70] sm:$0xff]
    %v2354 = vld [vmem:[%s5 + $0x78] sm:$0xff]
    %v2355 = vld [vmem:[%s5 + $0x80] sm:$0xff]
    %v2356 = vld [vmem:[%s5 + $0x88] sm:$0xff]
    %v2357 = vld [vmem:[%s5 + $0x90] sm:$0xff]
    %v2358 = vld [vmem:[%s5 + $0x98] sm:$0xff]
    %v2359 = vlaneseq
    %v2360 = vshrl.u32 %v2359, 7
    %v2361 = vsub.s32 3, %v2360
    %v2362 = vrot.slane %v66, %v2361
    %v2364 = vsel %vm308, %v2325, 0
    %v2367 = vsel %vm308, %v2328, 0
    %v2370 = vsel %vm308, %v2331, 0
    %v2373 = vsel %vm308, %v2334, 0
    %v2376 = vsel %vm308, %v2335, 0
    %v2379 = vsel %vm308, %v2336, 0
    %v2382 = vsel %vm308, %v2337, 0
    %v2385 = vsel %vm308, %v2338, 0
    %2387 = vmatprep.subr.mxu0 0.0
    %2388 = vmatpush1.msra.mxu0 %v2339
    %2389 = vmatprep.subr.mxu0 0.0
    %2390 = vmatpush1.msra.mxu0 %v2340
    %2391 = vmatprep.subr.mxu0 0.0
    %2392 = vmatpush1.msra.mxu0 %v2341
    %2393 = vmatprep.subr.mxu0 0.0
    %2394 = vmatpush1.msra.mxu0 %v2342
    %2395 = vmatprep.subr.mxu0 0.0
    %2396 = vmatpush1.msra.mxu0 %v2343
    %2397 = vmatprep.subr.mxu0 0.0
    %2398 = vmatpush1.msra.mxu0 %v2344
    %2399 = vmatprep.subr.mxu0 0.0
    %2400 = vmatpush1.msra.mxu0 %v2345
    %2401 = vmatprep.subr.mxu0 0.0
    %2402 = vmatpush1.msra.mxu0 %v2346
    %2403 = vmatprep.subr.mxu0 0.0
    %2404 = vmatpush1.msra.mxu0 0.0
    %2405 = vmatprep.subr.mxu0 0.0
    %2406 = vmatpush1.msra.mxu0 0.0
    %2407 = vmatprep.subr.mxu0 0.0
    %2408 = vmatpush1.msra.mxu0 0.0
    %2409 = vmatprep.subr.mxu0 0.0
    %2410 = vmatpush1.msra.mxu0 0.0
    %2411 = vmatprep.subr.mxu0 0.0
    %2412 = vmatpush1.msra.mxu0 0.0
    %2413 = vmatprep.subr.mxu0 0.0
    %2414 = vmatpush1.msra.mxu0 0.0
    %2415 = vmatprep.subr.mxu0 0.0
    %2416 = vmatpush1.msra.mxu0 0.0
    %2417 = vmatprep.subr.mxu0 0.0
    %2418 = vmatpush1.msra.mxu0 0.0
    %2419 = vmatprep.subr.mxu0 0.0
    %2420 = vmatpush1.msra.mxu0 0.0
    %2421 = vmatprep.subr.mxu0 0.0
    %2422 = vmatpush1.msra.mxu0 0.0
    %2423 = vmatprep.subr.mxu0 0.0
    %2424 = vmatpush1.msra.mxu0 0.0
    %2425 = vmatprep.subr.mxu0 0.0
    %2426 = vmatpush1.msra.mxu0 0.0
    %2427 = vmatprep.subr.mxu0 0.0
    %2428 = vmatpush1.msra.mxu0 0.0
    %2429 = vmatprep.subr.mxu0 0.0
    %2430 = vmatpush1.msra.mxu0 0.0
    %2431 = vmatprep.subr.mxu0 0.0
    %2432 = vmatpush1.msra.mxu0 0.0
    %2433 = vmatprep.subr.mxu0 0.0
    %2434 = vmatpush1.msra.mxu0 0.0
    %2435 = vmatprep.subr.mxu0 0.0
    %2436 = vmatpush1.msra.mxu0 0.0
    %2437 = vmatprep.subr.mxu0 0.0
    %2438 = vmatpush1.msra.mxu0 0.0
    %2439 = vmatprep.subr.mxu0 0.0
    %2440 = vmatpush1.msra.mxu0 0.0
    %2441 = vmatprep.subr.mxu0 0.0
    %2442 = vmatpush1.msra.mxu0 0.0
    %2443 = vmatprep.subr.mxu0 0.0
    %2444 = vmatpush1.msra.mxu0 0.0
    %2445 = vmatprep.subr.mxu0 0.0
    %2446 = vmatpush1.msra.mxu0 0.0
    %2447 = vmatprep.subr.mxu0 0.0
    %2448 = vmatpush1.msra.mxu0 0.0
    %2449 = vmatprep.subr.mxu0 0.0
    %2450 = vmatpush1.msra.mxu0 0.0
    %2451 = vmatprep.mubr.f32.mxu0 0.0
    %2452 = vmatmul.mubr.f32.gmra.mrb[0].mxu0 %v2364
    %v2453 = vpop.f32.mrb[0].mxu0
    %v2454 = vadd.f32 %v2362, %v2453
    %v2455 = vpop.f32.mrb[0].mxu0
    %2456 = vmatprep.mubr.f32.mxu0 0.0
    %2457 = vmatmul.mubr.f32.gmra.mrb[0].mxu0 %v2367
    %v2458 = vpop.f32.mrb[0].mxu0
    %v2459 = vadd.f32 %v2362, %v2458
    %v2460 = vpop.f32.mrb[0].mxu0
    %2461 = vmatprep.mubr.f32.mxu0 0.0
    %2462 = vmatmul.mubr.f32.gmra.mrb[0].mxu0 %v2370
    %v2463 = vpop.f32.mrb[0].mxu0
    %v2464 = vadd.f32 %v2362, %v2463
    %v2465 = vpop.f32.mrb[0].mxu0
    %2466 = vmatprep.mubr.f32.mxu0 0.0
    %2467 = vmatmul.mubr.f32.gmra.mrb[0].mxu0 %v2373
    %v2468 = vpop.f32.mrb[0].mxu0
    %v2469 = vadd.f32 %v2362, %v2468
    %v2470 = vpop.f32.mrb[0].mxu0
    %2471 = vmatprep.mubr.f32.mxu0 0.0
    %2472 = vmatmul.mubr.f32.gmra.mrb[0].mxu0 %v2376
    %v2473 = vpop.f32.mrb[0].mxu0
    %v2474 = vadd.f32 %v2362, %v2473
    %v2475 = vpop.f32.mrb[0].mxu0
    %2476 = vmatprep.mubr.f32.mxu0 0.0
    %2477 = vmatmul.mubr.f32.gmra.mrb[0].mxu0 %v2379
    %v2478 = vpop.f32.mrb[0].mxu0
    %v2479 = vadd.f32 %v2362, %v2478
    %v2480 = vpop.f32.mrb[0].mxu0
    %2481 = vmatprep.mubr.f32.mxu0 0.0
    %2482 = vmatmul.mubr.f32.gmra.mrb[0].mxu0 %v2382
    %v2483 = vpop.f32.mrb[0].mxu0
    %v2484 = vadd.f32 %v2362, %v2483
    %v2485 = vpop.f32.mrb[0].mxu0
    %2486 = vmatprep.mubr.f32.mxu0 0.0
    %2487 = vmatmul.mubr.f32.gmra.mrb[0].mxu0 %v2385
    %v2488 = vpop.f32.mrb[0].mxu0
    %v2489 = vadd.f32 %v2362, %v2488
    %v2490 = vpop.f32.mrb[0].mxu0
    %2491 = vdwg.mxu0
    %v2492 = vmax.f32 %v2454, 0.0
    %v2493 = vmax.f32 %v2459, 0.0
    %v2494 = vmax.f32 %v2464, 0.0
    %v2495 = vmax.f32 %v2469, 0.0
    %v2496 = vmax.f32 %v2474, 0.0
    %v2497 = vmax.f32 %v2479, 0.0
    %v2498 = vmax.f32 %v2484, 0.0
    %v2499 = vmax.f32 %v2489, 0.0
    %2501 = vrot.lane.b32.xlu0 %v2362, 64
    %v2502 = vpop.permute.xlu0 %2501
    %v2505 = vsel %vm308, %v2492, 0
    %v2508 = vsel %vm308, %v2493, 0
    %v2511 = vsel %vm308, %v2494, 0
    %v2514 = vsel %vm308, %v2495, 0
    %v2517 = vsel %vm308, %v2496, 0
    %v2520 = vsel %vm308, %v2497, 0
    %v2523 = vsel %vm308, %v2498, 0
    %v2526 = vsel %vm308, %v2499, 0
    %2528 = vmatprep.subr.mxu0 0.0
    %2529 = vmatpush1.msra.mxu0 %v2347
    %2530 = vmatprep.subr.mxu0 0.0
    %2531 = vmatpush1.msra.mxu0 %v2348
    %2532 = vmatprep.subr.mxu0 0.0
    %2533 = vmatpush1.msra.mxu0 %v2349
    %2534 = vmatprep.subr.mxu0 0.0
    %2535 = vmatpush1.msra.mxu0 %v2350
    %2536 = vmatprep.subr.mxu0 0.0
    %2537 = vmatpush1.msra.mxu0 %v2351
    %2538 = vmatprep.subr.mxu0 0.0
    %2539 = vmatpush1.msra.mxu0 %v2352
    %2540 = vmatprep.subr.mxu0 0.0
    %2541 = vmatpush1.msra.mxu0 %v2353
    %2542 = vmatprep.subr.mxu0 0.0
    %2543 = vmatpush1.msra.mxu0 %v2354
    %2544 = vmatprep.subr.mxu0 0.0
    %2545 = vmatpush1.msra.mxu0 0.0
    %2546 = vmatprep.subr.mxu0 0.0
    %2547 = vmatpush1.msra.mxu0 0.0
    %2548 = vmatprep.subr.mxu0 0.0
    %2549 = vmatpush1.msra.mxu0 0.0
    %2550 = vmatprep.subr.mxu0 0.0
    %2551 = vmatpush1.msra.mxu0 0.0
    %2552 = vmatprep.subr.mxu0 0.0
    %2553 = vmatpush1.msra.mxu0 0.0
    %2554 = vmatprep.subr.mxu0 0.0
    %2555 = vmatpush1.msra.mxu0 0.0
    %2556 = vmatprep.subr.mxu0 0.0
    %2557 = vmatpush1.msra.mxu0 0.0
    %2558 = vmatprep.subr.mxu0 0.0
    %2559 = vmatpush1.msra.mxu0 0.0
    %2560 = vmatprep.subr.mxu0 0.0
    %2561 = vmatpush1.msra.mxu0 0.0
    %2562 = vmatprep.subr.mxu0 0.0
    %2563 = vmatpush1.msra.mxu0 0.0
    %2564 = vmatprep.subr.mxu0 0.0
    %2565 = vmatpush1.msra.mxu0 0.0
    %2566 = vmatprep.subr.mxu0 0.0
    %2567 = vmatpush1.msra.mxu0 0.0
    %2568 = vmatprep.subr.mxu0 0.0
    %2569 = vmatpush1.msra.mxu0 0.0
    %2570 = vmatprep.subr.mxu0 0.0
    %2571 = vmatpush1.msra.mxu0 0.0
    %2572 = vmatprep.subr.mxu0 0.0
    %2573 = vmatpush1.msra.mxu0 0.0
    %2574 = vmatprep.subr.mxu0 0.0
    %2575 = vmatpush1.msra.mxu0 0.0
    %2576 = vmatprep.subr.mxu0 0.0
    %2577 = vmatpush1.msra.mxu0 0.0
    %2578 = vmatprep.subr.mxu0 0.0
    %2579 = vmatpush1.msra.mxu0 0.0
    %2580 = vmatprep.subr.mxu0 0.0
    %2581 = vmatpush1.msra.mxu0 0.0
    %2582 = vmatprep.subr.mxu0 0.0
    %2583 = vmatpush1.msra.mxu0 0.0
    %2584 = vmatprep.subr.mxu0 0.0
    %2585 = vmatpush1.msra.mxu0 0.0
    %2586 = vmatprep.subr.mxu0 0.0
    %2587 = vmatpush1.msra.mxu0 0.0
    %2588 = vmatprep.subr.mxu0 0.0
    %2589 = vmatpush1.msra.mxu0 0.0
    %2590 = vmatprep.subr.mxu0 0.0
    %2591 = vmatpush1.msra.mxu0 0.0
    %2592 = vmatprep.mubr.f32.mxu0 0.0
    %2593 = vmatmul.mubr.f32.gmra.mrb[0].mxu0 %v2505
    %v2594 = vpop.f32.mrb[0].mxu0
    %v2595 = vadd.f32 %v2502, %v2594
    %v2596 = vpop.f32.mrb[0].mxu0
    %2597 = vmatprep.mubr.f32.mxu0 0.0
    %2598 = vmatmul.mubr.f32.gmra.mrb[0].mxu0 %v2508
    %v2599 = vpop.f32.mrb[0].mxu0
    %v2600 = vadd.f32 %v2502, %v2599
    %v2601 = vpop.f32.mrb[0].mxu0
    %2602 = vmatprep.mubr.f32.mxu0 0.0
    %2603 = vmatmul.mubr.f32.gmra.mrb[0].mxu0 %v2511
    %v2604 = vpop.f32.mrb[0].mxu0
    %v2605 = vadd.f32 %v2502, %v2604
    %v2606 = vpop.f32.mrb[0].mxu0
    %2607 = vmatprep.mubr.f32.mxu0 0.0
    %2608 = vmatmul.mubr.f32.gmra.mrb[0].mxu0 %v2514
    %v2609 = vpop.f32.mrb[0].mxu0
    %v2610 = vadd.f32 %v2502, %v2609
    %v2611 = vpop.f32.mrb[0].mxu0
    %2612 = vmatprep.mubr.f32.mxu0 0.0
    %2613 = vmatmul.mubr.f32.gmra.mrb[0].mxu0 %v2517
    %v2614 = vpop.f32.mrb[0].mxu0
    %v2615 = vadd.f32 %v2502, %v2614
    %v2616 = vpop.f32.mrb[0].mxu0
    %2617 = vmatprep.mubr.f32.mxu0 0.0
    %2618 = vmatmul.mubr.f32.gmra.mrb[0].mxu0 %v2520
    %v2619 = vpop.f32.mrb[0].mxu0
    %v2620 = vadd.f32 %v2502, %v2619
    %v2621 = vpop.f32.mrb[0].mxu0
    %2622 = vmatprep.mubr.f32.mxu0 0.0
    %2623 = vmatmul.mubr.f32.gmra.mrb[0].mxu0 %v2523
    %v2624 = vpop.f32.mrb[0].mxu0
    %v2625 = vadd.f32 %v2502, %v2624
    %v2626 = vpop.f32.mrb[0].mxu0
    %2627 = vmatprep.mubr.f32.mxu0 0.0
    %2628 = vmatmul.mubr.f32.gmra.mrb[0].mxu0 %v2526
    %v2629 = vpop.f32.mrb[0].mxu0
    %v2630 = vadd.f32 %v2502, %v2629
    %v2631 = vpop.f32.mrb[0].mxu0
    %2632 = vdwg.mxu0
    %v2633 = vmax.f32 %v2595, 0.0
    %v2634 = vmax.f32 %v2600, 0.0
    %v2635 = vmax.f32 %v2605, 0.0
    %v2636 = vmax.f32 %v2610, 0.0
    %v2637 = vmax.f32 %v2615, 0.0
    %v2638 = vmax.f32 %v2620, 0.0
    %v2639 = vmax.f32 %v2625, 0.0
    %v2640 = vmax.f32 %v2630, 0.0
    %2641 = vrot.lane.b32.xlu0 %v2362, 32
    %v2642 = vpop.permute.xlu0 %2641
    %v2645 = vsel %vm1126, %v2633, 0
    %v2648 = vsel %vm1126, %v2634, 0
    %v2651 = vsel %vm1126, %v2635, 0
    %v2654 = vsel %vm1126, %v2636, 0
    %v2657 = vsel %vm1126, %v2637, 0
    %v2660 = vsel %vm1126, %v2638, 0
    %v2663 = vsel %vm1126, %v2639, 0
    %v2666 = vsel %vm1126, %v2640, 0
    %2668 = vmatprep.subr.mxu0 0.0
    %2669 = vmatpush1.msra.mxu0 %v2355
    %2670 = vmatprep.subr.mxu0 0.0
    %2671 = vmatpush1.msra.mxu0 %v2356
    %2672 = vmatprep.subr.mxu0 0.0
    %2673 = vmatpush1.msra.mxu0 %v2357
    %2674 = vmatprep.subr.mxu0 0.0
    %2675 = vmatpush1.msra.mxu0 %v2358
    %2676 = vmatprep.subr.mxu0 0.0
    %2677 = vmatpush1.msra.mxu0 0.0
    %2678 = vmatprep.subr.mxu0 0.0
    %2679 = vmatpush1.msra.mxu0 0.0
    %2680 = vmatprep.subr.mxu0 0.0
    %2681 = vmatpush1.msra.mxu0 0.0
    %2682 = vmatprep.subr.mxu0 0.0
    %2683 = vmatpush1.msra.mxu0 0.0
    %2684 = vmatprep.subr.mxu0 0.0
    %2685 = vmatpush1.msra.mxu0 0.0
    %2686 = vmatprep.subr.mxu0 0.0
    %2687 = vmatpush1.msra.mxu0 0.0
    %2688 = vmatprep.subr.mxu0 0.0
    %2689 = vmatpush1.msra.mxu0 0.0
    %2690 = vmatprep.subr.mxu0 0.0
    %2691 = vmatpush1.msra.mxu0 0.0
    %2692 = vmatprep.subr.mxu0 0.0
    %2693 = vmatpush1.msra.mxu0 0.0
    %2694 = vmatprep.subr.mxu0 0.0
    %2695 = vmatpush1.msra.mxu0 0.0
    %2696 = vmatprep.subr.mxu0 0.0
    %2697 = vmatpush1.msra.mxu0 0.0
    %2698 = vmatprep.subr.mxu0 0.0
    %2699 = vmatpush1.msra.mxu0 0.0
    %2700 = vmatprep.subr.mxu0 0.0
    %2701 = vmatpush1.msra.mxu0 0.0
    %2702 = vmatprep.subr.mxu0 0.0
    %2703 = vmatpush1.msra.mxu0 0.0
    %2704 = vmatprep.subr.mxu0 0.0
    %2705 = vmatpush1.msra.mxu0 0.0
    %2706 = vmatprep.subr.mxu0 0.0
    %2707 = vmatpush1.msra.mxu0 0.0
    %2708 = vmatprep.subr.mxu0 0.0
    %2709 = vmatpush1.msra.mxu0 0.0
    %2710 = vmatprep.subr.mxu0 0.0
    %2711 = vmatpush1.msra.mxu0 0.0
    %2712 = vmatprep.subr.mxu0 0.0
    %2713 = vmatpush1.msra.mxu0 0.0
    %2714 = vmatprep.subr.mxu0 0.0
    %2715 = vmatpush1.msra.mxu0 0.0
    %2716 = vmatprep.subr.mxu0 0.0
    %2717 = vmatpush1.msra.mxu0 0.0
    %2718 = vmatprep.subr.mxu0 0.0
    %2719 = vmatpush1.msra.mxu0 0.0
    %2720 = vmatprep.subr.mxu0 0.0
    %2721 = vmatpush1.msra.mxu0 0.0
    %2722 = vmatprep.subr.mxu0 0.0
    %2723 = vmatpush1.msra.mxu0 0.0
    %2724 = vmatprep.subr.mxu0 0.0
    %2725 = vmatpush1.msra.mxu0 0.0
    %2726 = vmatprep.subr.mxu0 0.0
    %2727 = vmatpush1.msra.mxu0 0.0
    %2728 = vmatprep.subr.mxu0 0.0
    %2729 = vmatpush1.msra.mxu0 0.0
    %2730 = vmatprep.subr.mxu0 0.0
    %2731 = vmatpush1.msra.mxu0 0.0
    %2732 = vmatprep.mubr.f32.mxu0 0.0
    %2733 = vmatmul.mubr.f32.gmra.mrb[0].mxu0 %v2645
    %v2734 = vpop.f32.mrb[0].mxu0
    %v2735 = vadd.f32 %v2642, %v2734
    %v2736 = vpop.f32.mrb[0].mxu0
    %2737 = vmatprep.mubr.f32.mxu0 0.0
    %2738 = vmatmul.mubr.f32.gmra.mrb[0].mxu0 %v2648
    %v2739 = vpop.f32.mrb[0].mxu0
    %v2740 = vadd.f32 %v2642, %v2739
    %v2741 = vpop.f32.mrb[0].mxu0
    %2742 = vmatprep.mubr.f32.mxu0 0.0
    %2743 = vmatmul.mubr.f32.gmra.mrb[0].mxu0 %v2651
    %v2744 = vpop.f32.mrb[0].mxu0
    %v2745 = vadd.f32 %v2642, %v2744
    %v2746 = vpop.f32.mrb[0].mxu0
    %2747 = vmatprep.mubr.f32.mxu0 0.0
    %2748 = vmatmul.mubr.f32.gmra.mrb[0].mxu0 %v2654
    %v2749 = vpop.f32.mrb[0].mxu0
    %v2750 = vadd.f32 %v2642, %v2749
    %v2751 = vpop.f32.mrb[0].mxu0
    %2752 = vmatprep.mubr.f32.mxu0 0.0
    %2753 = vmatmul.mubr.f32.gmra.mrb[0].mxu0 %v2657
    %v2754 = vpop.f32.mrb[0].mxu0
    %v2755 = vadd.f32 %v2642, %v2754
    %v2756 = vpop.f32.mrb[0].mxu0
    %2757 = vmatprep.mubr.f32.mxu0 0.0
    %2758 = vmatmul.mubr.f32.gmra.mrb[0].mxu0 %v2660
    %v2759 = vpop.f32.mrb[0].mxu0
    %v2760 = vadd.f32 %v2642, %v2759
    %v2761 = vpop.f32.mrb[0].mxu0
    %2762 = vmatprep.mubr.f32.mxu0 0.0
    %2763 = vmatmul.mubr.f32.gmra.mrb[0].mxu0 %v2663
    %v2764 = vpop.f32.mrb[0].mxu0
    %v2765 = vadd.f32 %v2642, %v2764
    %v2766 = vpop.f32.mrb[0].mxu0
    %2767 = vmatprep.mubr.f32.mxu0 0.0
    %2768 = vmatmul.mubr.f32.gmra.mrb[0].mxu0 %v2666
    %v2769 = vpop.f32.mrb[0].mxu0
    %v2770 = vadd.f32 %v2642, %v2769
    %v2771 = vpop.f32.mrb[0].mxu0
    %2772 = vdwg.mxu0
    %vm2773 = vcmp.eq.s32.totalorder %v38, 0
    %v2774 = vmul.f32 %v2735, 0.5
    %v2775 = vmul.f32 %v2740, 0.5
    %v2776 = vmul.f32 %v2745, 0.5
    %v2777 = vmul.f32 %v2750, 0.5
    %v2778 = vmul.f32 %v2755, 0.5
    %v2779 = vmul.f32 %v2760, 0.5
    %v2780 = vmul.f32 %v2765, 0.5
    %v2781 = vmul.f32 %v2770, 0.5
    %v2782 = vmul.f32 %v2774, 1.442695
    %v2783 = vpow.pop %v2782
    %v2784 = vmul.f32 %v2775, 1.442695
    %v2785 = vpow.pop %v2784
    %v2786 = vmul.f32 %v2776, 1.442695
    %v2787 = vpow.pop %v2786
    %v2788 = vmul.f32 %v2777, 1.442695
    %v2789 = vpow.pop %v2788
    %v2790 = vmul.f32 %v2778, 1.442695
    %v2791 = vpow.pop %v2790
    %v2792 = vmul.f32 %v2779, 1.442695
    %v2793 = vpow.pop %v2792
    %v2794 = vmul.f32 %v2780, 1.442695
    %v2795 = vpow.pop %v2794
    %v2796 = vmul.f32 %v2781, 1.442695
    %v2797 = vpow.pop %v2796
    %v2798 = vsel %vm2773, %v2735, %v2783
    %v2799 = vsel %vm2773, %v2740, %v2785
    %v2800 = vsel %vm2773, %v2745, %v2787
    %v2801 = vsel %vm2773, %v2750, %v2789
    %v2802 = vsel %vm2773, %v2755, %v2791
    %v2803 = vsel %vm2773, %v2760, %v2793
    %v2804 = vsel %vm2773, %v2765, %v2795
    %v2805 = vsel %vm2773, %v2770, %v2797
    %vm2806 = vcmask 15360
    %2807 = vst.msk [vmem:[%s6] sm:$0xff] %vm2806, %v2798
    %2808 = vst.msk [vmem:[%s6 + $0x8] sm:$0xff] %vm2806, %v2799
    %2809 = vst.msk [vmem:[%s6 + $0x10] sm:$0xff] %vm2806, %v2800
    %2810 = vst.msk [vmem:[%s6 + $0x18] sm:$0xff] %vm2806, %v2801
    %2811 = vst.msk [vmem:[%s6 + $0x20] sm:$0xff] %vm2806, %v2802
    %2812 = vst.msk [vmem:[%s6 + $0x28] sm:$0xff] %vm2806, %v2803
    %2813 = vst.msk [vmem:[%s6 + $0x30] sm:$0xff] %vm2806, %v2804
    %2814 = vst.msk [vmem:[%s6 + $0x38] sm:$0xff] %vm2806, %v2805
    // Predicated region
    $region30: #{variational_bilstm_forward.1} parent=1 // pred_check
      _
    $region31: #{variational_bilstm_forward.1} parent=1 // pred_check_branch
      %2816 = sbr.rel (0) target = $region33
    $region32: #{variational_bilstm_forward.1} parent=1 // pred_region
      _
    $region33: #{variational_bilstm_forward.1} parent=1 // pred_fallthru
      _
    // Predicated region
    $region34: #{variational_bilstm_forward.1} parent=1 // pred_check
      _
    $region35: #{variational_bilstm_forward.1} parent=1 // pred_check_branch
      %2818 = sbr.rel (0) target = $region37
    $region36: #{variational_bilstm_forward.1} parent=1 // pred_region
      _
    $region37: #{variational_bilstm_forward.1} parent=1 // pred_fallthru
      _
    %2819 = vsyncpa [#allocation4], 1

</llo_original>
